<compile_context>
chip_gen: v7x
topology: tpu7x:2x2x1
jax: 0.10.0
libtpu: 0.0.40
codegen_flags: <defaults>
</compile_context>

<pallas_src>
import functools

import jax
import jax.numpy as jnp
from jax.experimental import pallas as pl
from jax.experimental.pallas import tpu as pltpu

BN_EPS = 1e-5


def _round_up(x, m):
    return ((x + m - 1) // m) * m


# ----------------------------------------------------------------------------
# Pallas kernels
# ----------------------------------------------------------------------------


def _matmul_affine_kernel(x_ref, w_ref, s_ref, t_ref, o_ref, *, relu):
    # o = (x @ w) * scale + shift  [+ ReLU]; bf16 operands, f32 accum/epilogue.
    acc = jnp.dot(x_ref[...], w_ref[...], preferred_element_type=jnp.float32)
    out = acc * s_ref[...] + t_ref[...]
    if relu:
        out = jnp.maximum(out, 0.0)
    o_ref[...] = out


def matmul_affine(x, w, scale, shift, *, relu=False, tm_max=512):
    """Row-tiled fused matmul + affine (+ReLU). x:(M,K) f32, w:(K,N) bf16."""
    M, K = x.shape
    Kw, N = w.shape
    assert Kw == K
    tm = min(tm_max, _round_up(M, 8))
    Mp = _round_up(M, tm)
    xb = x.astype(jnp.bfloat16)
    if Mp != M:
        xb = jnp.pad(xb, ((0, Mp - M), (0, 0)))
    out = pl.pallas_call(
        functools.partial(_matmul_affine_kernel, relu=relu),
        out_shape=jax.ShapeDtypeStruct((Mp, N), jnp.float32),
        grid=(Mp // tm,),
        in_specs=[
            pl.BlockSpec((tm, K), lambda i: (i, 0)),
            pl.BlockSpec((K, N), lambda i: (0, 0)),
            pl.BlockSpec((1, N), lambda i: (0, 0)),
            pl.BlockSpec((1, N), lambda i: (0, 0)),
        ],
        out_specs=pl.BlockSpec((tm, N), lambda i: (i, 0)),
        compiler_params=pltpu.CompilerParams(
            dimension_semantics=("parallel",)),
    )(xb, w.astype(jnp.bfloat16),
      scale.reshape(1, N).astype(jnp.float32),
      shift.reshape(1, N).astype(jnp.float32))
    return out[:M] if Mp != M else out


def _max4_relu_kernel(t_ref, o_ref):
    # Max over the 4 taps of a 2x2 pooling window, then ReLU (pool -> relu).
    m = jnp.maximum(jnp.maximum(t_ref[0], t_ref[1]),
                    jnp.maximum(t_ref[2], t_ref[3]))
    o_ref[...] = jnp.maximum(m, 0.0)


def maxpool2x2_relu(x):
    """x: (B, H, W, C) f32 NHWC -> (B, H//2, W//2, C), lane-dense reduction."""
    B, H, W, C = x.shape
    Ho, Wo = H // 2, W // 2
    t = x.reshape(B, Ho, 2, Wo, 2, C)
    t = jnp.transpose(t, (2, 4, 0, 1, 3, 5)).reshape(4, B * Ho, Wo * C)
    M, L = B * Ho, Wo * C
    tm = min(512, _round_up(M, 8))
    Mp = _round_up(M, tm)
    if Mp != M:
        t = jnp.pad(t, ((0, 0), (0, Mp - M), (0, 0)))
    out = pl.pallas_call(
        _max4_relu_kernel,
        out_shape=jax.ShapeDtypeStruct((Mp, L), jnp.float32),
        grid=(Mp // tm,),
        in_specs=[pl.BlockSpec((4, tm, L), lambda i: (0, i, 0))],
        out_specs=pl.BlockSpec((tm, L), lambda i: (i, 0)),
        compiler_params=pltpu.CompilerParams(
            dimension_semantics=("parallel",)),
    )(t.astype(jnp.float32))
    if Mp != M:
        out = out[:M]
    return out.reshape(B, Ho, Wo, C)


def _logsoftmax(z):
    m = jnp.max(z, axis=1, keepdims=True)
    s = z - m
    return s - jnp.log(jnp.sum(jnp.exp(s), axis=1, keepdims=True))


def _heads_kernel(x_ref, w1_ref, s1_ref, t1_ref,
                  yw2_ref, ys2_ref, yt2_ref, yw3_ref, yb3_ref,
                  dw2_ref, db2_ref, lab_ref, dom_ref):
    # Fused label-predictor + domain-classifier: one read of `feature`,
    # intermediates stay in VMEM/registers.  Weight columns are 128-aligned
    # (label head in cols [0:128), domain head in [128:256)); pad columns have
    # scale=shift=0 so they contribute exact zeros.
    x = x_ref[...]                                                  # (tm, 800) bf16
    h = jnp.dot(x, w1_ref[...], preferred_element_type=jnp.float32)
    h = jnp.maximum(h * s1_ref[...] + t1_ref[...], 0.0)             # (tm, 256) f32
    hy = h[:, :128].astype(jnp.bfloat16)
    hd = h[:, 128:].astype(jnp.bfloat16)
    y = jnp.dot(hy, yw2_ref[...], preferred_element_type=jnp.float32)
    y = jnp.maximum(y * ys2_ref[...] + yt2_ref[...], 0.0)           # (tm, 128) f32
    zl = jnp.dot(y.astype(jnp.bfloat16), yw3_ref[...],
                 preferred_element_type=jnp.float32) + yb3_ref[...]  # (tm, 10)
    zd = jnp.dot(hd, dw2_ref[...],
                 preferred_element_type=jnp.float32) + db2_ref[...]  # (tm, 2)
    lab_ref[...] = _logsoftmax(zl)
    dom_ref[...] = _logsoftmax(zd)


def heads_forward(feature, p):
    """feature: (B, 800) f32 -> (label_logprobs (B,10), domain_logprobs (B,2))."""
    B = feature.shape[0]
    tm = min(512, _round_up(B, 8))
    Bp = _round_up(B, tm)
    xb = feature.astype(jnp.bfloat16)
    if Bp != B:
        xb = jnp.pad(xb, ((0, Bp - B), (0, 0)))
    const = lambda i: (0, 0)
    row = lambda i: (i, 0)
    label, domain = pl.pallas_call(
        _heads_kernel,
        out_shape=(jax.ShapeDtypeStruct((Bp, 10), jnp.float32),
                   jax.ShapeDtypeStruct((Bp, 2), jnp.float32)),
        grid=(Bp // tm,),
        in_specs=[
            pl.BlockSpec((tm, 800), row),
            pl.BlockSpec((800, 256), const),
            pl.BlockSpec((1, 256), const),
            pl.BlockSpec((1, 256), const),
            pl.BlockSpec((128, 128), const),
            pl.BlockSpec((1, 128), const),
            pl.BlockSpec((1, 128), const),
            pl.BlockSpec((128, 10), const),
            pl.BlockSpec((1, 10), const),
            pl.BlockSpec((128, 2), const),
            pl.BlockSpec((1, 2), const),
        ],
        out_specs=(pl.BlockSpec((tm, 10), row),
                   pl.BlockSpec((tm, 2), row)),
        compiler_params=pltpu.CompilerParams(
            dimension_semantics=("parallel",)),
    )(xb, p["h1_w"], p["h1_s"], p["h1_t"],
      p["y_w2"], p["y_s2"], p["y_t2"], p["y_w3"], p["y_b3"],
      p["d_w2"], p["d_b2"])
    return label[:B], domain[:B]


# ----------------------------------------------------------------------------
# Glue: im2col (NHWC), parameter init / packing
# ----------------------------------------------------------------------------


def im2col_nhwc(x, kh, kw):
    B, H, W, C = x.shape
    Ho, Wo = H - kh + 1, W - kw + 1
    cols = []
    for ki in range(kh):
        for kj in range(kw):
            cols.append(x[:, ki:ki + Ho, kj:kj + Wo, :])   # (B, Ho, Wo, C)
    p = jnp.concatenate(cols, axis=-1)                      # column order (ki, kj, c)
    return p.reshape(B * Ho * Wo, kh * kw * C), (B, Ho, Wo)


def init_params(key):
    """Raw parameters matching the PyTorch module's tensors."""
    ks = jax.random.split(key, 32)

    def nrm(k, shape, s=0.05):
        return jax.random.normal(k, shape, jnp.float32) * s

    p = {}
    # feature extractor
    p["conv1_w"] = nrm(ks[0], (64, 3, 5, 5))
    p["conv1_b"] = nrm(ks[1], (64,))
    p["bn1_g"] = 1.0 + nrm(ks[2], (64,))
    p["bn1_b"] = nrm(ks[3], (64,))
    p["bn1_m"] = jnp.zeros((64,), jnp.float32)
    p["bn1_v"] = jnp.ones((64,), jnp.float32)
    p["conv2_w"] = nrm(ks[4], (50, 64, 5, 5))
    p["conv2_b"] = nrm(ks[5], (50,))
    p["bn2_g"] = 1.0 + nrm(ks[6], (50,))
    p["bn2_b"] = nrm(ks[7], (50,))
    p["bn2_m"] = jnp.zeros((50,), jnp.float32)
    p["bn2_v"] = jnp.ones((50,), jnp.float32)
    # label predictor
    p["y_fc1_w"] = nrm(ks[8], (100, 800))
    p["y_fc1_b"] = nrm(ks[9], (100,))
    p["y_bn1_g"] = 1.0 + nrm(ks[10], (100,))
    p["y_bn1_b"] = nrm(ks[11], (100,))
    p["y_bn1_m"] = jnp.zeros((100,), jnp.float32)
    p["y_bn1_v"] = jnp.ones((100,), jnp.float32)
    p["y_fc2_w"] = nrm(ks[12], (100, 100))
    p["y_fc2_b"] = nrm(ks[13], (100,))
    p["y_bn2_g"] = 1.0 + nrm(ks[14], (100,))
    p["y_bn2_b"] = nrm(ks[15], (100,))
    p["y_bn2_m"] = jnp.zeros((100,), jnp.float32)
    p["y_bn2_v"] = jnp.ones((100,), jnp.float32)
    p["y_fc3_w"] = nrm(ks[16], (10, 100))
    p["y_fc3_b"] = nrm(ks[17], (10,))
    # domain classifier
    p["d_fc1_w"] = nrm(ks[18], (100, 800))
    p["d_fc1_b"] = nrm(ks[19], (100,))
    p["d_bn1_g"] = 1.0 + nrm(ks[20], (100,))
    p["d_bn1_b"] = nrm(ks[21], (100,))
    p["d_bn1_m"] = jnp.zeros((100,), jnp.float32)
    p["d_bn1_v"] = jnp.ones((100,), jnp.float32)
    p["d_fc2_w"] = nrm(ks[22], (2, 100))
    p["d_fc2_b"] = nrm(ks[23], (2,))
    return p


def pack_params(p):
    """One-time weight packing: BN folds, transposes, NHWC reordering, padding."""
    def bn_fold(bias, g, b, m, v):
        s = g / jnp.sqrt(v + BN_EPS)
        t = (bias - m) * s + b
        return s.astype(jnp.float32), t.astype(jnp.float32)

    q = {}
    # conv1: the input's single channel is expanded to 3 identical channels, so
    # summing the conv1 weight over Cin is algebraically exact.
    w1 = p["conv1_w"].sum(axis=1, keepdims=True)                     # (64,1,5,5)
    q["conv1_w"] = jnp.transpose(w1, (2, 3, 1, 0)).reshape(25, 64).astype(jnp.bfloat16)
    q["conv1_s"], q["conv1_t"] = bn_fold(p["conv1_b"], p["bn1_g"], p["bn1_b"],
                                         p["bn1_m"], p["bn1_v"])

    q["conv2_w"] = jnp.transpose(p["conv2_w"], (2, 3, 1, 0)).reshape(1600, 50).astype(jnp.bfloat16)
    q["conv2_s"], q["conv2_t"] = bn_fold(p["conv2_b"], p["bn2_g"], p["bn2_b"],
                                         p["bn2_m"], p["bn2_v"])

    # fc1 weights: reorder the 800 input features from NCHW (c,h,w) flatten order
    # (PyTorch view) to NHWC (h,w,c) flatten order used by this implementation.
    def fc1_nhwc(w):                                                 # (100, 800)
        return jnp.transpose(w.reshape(100, 50, 4, 4), (0, 2, 3, 1)).reshape(100, 800)

    y_s1, y_t1 = bn_fold(p["y_fc1_b"], p["y_bn1_g"], p["y_bn1_b"],
                         p["y_bn1_m"], p["y_bn1_v"])
    d_s1, d_t1 = bn_fold(p["d_fc1_b"], p["d_bn1_g"], p["d_bn1_b"],
                         p["d_bn1_m"], p["d_bn1_v"])
    h1_w = jnp.zeros((800, 256), jnp.float32)
    h1_w = h1_w.at[:, 0:100].set(fc1_nhwc(p["y_fc1_w"]).T)
    h1_w = h1_w.at[:, 128:228].set(fc1_nhwc(p["d_fc1_w"]).T)
    q["h1_w"] = h1_w.astype(jnp.bfloat16)
    q["h1_s"] = jnp.zeros((1, 256), jnp.float32).at[0, 0:100].set(y_s1).at[0, 128:228].set(d_s1)
    q["h1_t"] = jnp.zeros((1, 256), jnp.float32).at[0, 0:100].set(y_t1).at[0, 128:228].set(d_t1)

    y_s2, y_t2 = bn_fold(p["y_fc2_b"], p["y_bn2_g"], p["y_bn2_b"],
                         p["y_bn2_m"], p["y_bn2_v"])
    q["y_w2"] = jnp.zeros((128, 128), jnp.float32).at[0:100, 0:100].set(
        p["y_fc2_w"].T).astype(jnp.bfloat16)
    q["y_s2"] = jnp.zeros((1, 128), jnp.float32).at[0, 0:100].set(y_s2)
    q["y_t2"] = jnp.zeros((1, 128), jnp.float32).at[0, 0:100].set(y_t2)

    q["y_w3"] = jnp.zeros((128, 10), jnp.float32).at[0:100, :].set(
        p["y_fc3_w"].T).astype(jnp.bfloat16)
    q["y_b3"] = p["y_fc3_b"].reshape(1, 10).astype(jnp.float32)

    q["d_w2"] = jnp.zeros((128, 2), jnp.float32).at[0:100, :].set(
        p["d_fc2_w"].T).astype(jnp.bfloat16)
    q["d_b2"] = p["d_fc2_b"].reshape(1, 2).astype(jnp.float32)
    return q


# ----------------------------------------------------------------------------
# Model forward
# ----------------------------------------------------------------------------


def dda_forward(packed, x, lamda):
    # GRL.apply(feature, lamda): forward is identity; lamda only scales gradients.
    del lamda
    B = x.shape[0]
    # input_data.expand(B,3,28,28): the 3 channels are identical copies of the
    # single input channel; the expansion is folded into conv1's summed weights.
    assert x.shape[1] == 1, "expects single-channel MNIST-style input"
    x = jnp.transpose(x.astype(jnp.float32), (0, 2, 3, 1))          # NHWC (B,28,28,1)

    # feature extractor
    cols, (_, Ho, Wo) = im2col_nhwc(x, 5, 5)                        # (B*576, 25)
    h = matmul_affine(cols, packed["conv1_w"], packed["conv1_s"], packed["conv1_t"])
    h = maxpool2x2_relu(h.reshape(B, Ho, Wo, 64))                   # (B,12,12,64)

    cols, (_, Ho, Wo) = im2col_nhwc(h, 5, 5)                        # (B*64, 1600)
    h = matmul_affine(cols, packed["conv2_w"], packed["conv2_s"], packed["conv2_t"])
    # TODO(synk): Dropout2d (f_drop1) is stochastic in train mode; eval-mode identity here.
    h = maxpool2x2_relu(h.reshape(B, Ho, Wo, 50))                   # (B,4,4,50)

    feature = h.reshape(B, 800)     # NHWC flatten; fc1 weights were reordered to match

    # fused label predictor + domain classifier
    # TODO(synk): Dropout (y_drop1) is stochastic in train mode; eval-mode identity here.
    label_output, domain_output = heads_forward(feature, packed)
    return label_output, domain_output


if __name__ == "__main__":
    key = jax.random.PRNGKey(0)
    pkey, xkey = jax.random.split(key)
    params = init_params(pkey)
    packed = pack_params(params)   # one-time weight packing (outside the step)

    B = 2
    # MNIST-style single-channel input; forward() expands it to 3 channels.
    x = jax.random.normal(xkey, (B, 1, 28, 28), jnp.float32)
    lamda = jnp.float32(0.5)

    fwd = jax.jit(dda_forward)
    label_out, domain_out = fwd(packed, x, lamda)
    jax.block_until_ready((label_out, domain_out))

    assert label_out.shape == (B, 10)
    assert domain_out.shape == (B, 2)
    assert bool(jnp.all(jnp.isfinite(label_out)))
    assert bool(jnp.all(jnp.isfinite(domain_out)))
    # log-softmax rows should exponentiate-sum to ~1
    assert jnp.allclose(jnp.sum(jnp.exp(label_out), axis=1), 1.0, atol=1e-4)
    assert jnp.allclose(jnp.sum(jnp.exp(domain_out), axis=1), 1.0, atol=1e-4)

    print("KERNEL_OK")
</pallas_src>

<mosaic_0001>
module attributes {stable_mosaic.version = 11 : i64} {
  func.func @_matmul_affine_kernel(%arg0: i32, %arg1: memref<512x25xbf16, #tpu.memory_space<vmem>>, %arg2: memref<25x64xbf16, #tpu.memory_space<vmem>>, %arg3: memref<1x64xf32, #tpu.memory_space<vmem>>, %arg4: memref<1x64xf32, #tpu.memory_space<vmem>>, %arg5: memref<512x64xf32, #tpu.memory_space<vmem>>) attributes {dimension_semantics = [#tpu.dimension_semantics<parallel>], iteration_bounds = array<i64: 3>, scalar_prefetch = 0 : i64, scratch_operands = 0 : i64, tpu.core_type = #tpu.core_type<tc>, window_params = [{transform_indices = @transform_0, window_bounds = array<i64: 512, 25>}, {pipeline_mode = #tpu.pipeline_mode<synchronous>, transform_indices = @transform_1, window_bounds = array<i64: 25, 64>}, {pipeline_mode = #tpu.pipeline_mode<synchronous>, transform_indices = @transform_2, window_bounds = array<i64: 1, 64>}, {pipeline_mode = #tpu.pipeline_mode<synchronous>, transform_indices = @transform_3, window_bounds = array<i64: 1, 64>}, {transform_indices = @transform_4, window_bounds = array<i64: 512, 64>}]} {
    %c0 = arith.constant 0 : index
    %c0_0 = arith.constant 0 : index
    %0 = vector.load %arg1[%c0, %c0_0] : memref<512x25xbf16, #tpu.memory_space<vmem>>, vector<512x25xbf16>
    %c0_1 = arith.constant 0 : index
    %c0_2 = arith.constant 0 : index
    %1 = vector.load %arg2[%c0_1, %c0_2] : memref<25x64xbf16, #tpu.memory_space<vmem>>, vector<25x64xbf16>
    %cst = arith.constant dense<0.000000e+00> : vector<512x64xf32>
    %2 = tpu.matmul %0, %1, %cst {dimension_numbers = #tpu.dot_dimension_numbers<[1], [0], [0], [1], [0, 0, 1, 1], [], []>} : vector<512x25xbf16>, vector<25x64xbf16>, vector<512x64xf32> -> vector<512x64xf32>
    %c0_3 = arith.constant 0 : index
    %c0_4 = arith.constant 0 : index
    %3 = vector.load %arg3[%c0_3, %c0_4] : memref<1x64xf32, #tpu.memory_space<vmem>>, vector<1x64xf32>
    %4 = vector.broadcast %3 : vector<1x64xf32> to vector<512x64xf32>
    %5 = arith.mulf %2, %4 : vector<512x64xf32>
    %c0_5 = arith.constant 0 : index
    %c0_6 = arith.constant 0 : index
    %6 = vector.load %arg4[%c0_5, %c0_6] : memref<1x64xf32, #tpu.memory_space<vmem>>, vector<1x64xf32>
    %7 = vector.broadcast %6 : vector<1x64xf32> to vector<512x64xf32>
    %8 = arith.addf %5, %7 : vector<512x64xf32>
    %c0_7 = arith.constant 0 : index
    %c0_8 = arith.constant 0 : index
    %9 = vector.load %arg5[%c0_7, %c0_8] : memref<512x64xf32, #tpu.memory_space<vmem>>, vector<512x64xf32>
    tpu.vector_store %arg5[%c0_7, %c0_8], %8 {strides = array<i32>} : memref<512x64xf32, #tpu.memory_space<vmem>>, vector<512x64xf32>,
    return
  }
  func.func @transform_0(%arg0: i32) -> (i32, i32) {
    %c0_i32 = arith.constant 0 : i32
    %c0_i32_0 = arith.constant 0 : i32
    return %arg0, %c0_i32 : i32, i32
  }
  func.func @transform_1(%arg0: i32) -> (i32, i32) {
    %c0_i32 = arith.constant 0 : i32
    %c0_i32_0 = arith.constant 0 : i32
    %c0_i32_1 = arith.constant 0 : i32
    return %c0_i32, %c0_i32_0 : i32, i32
  }
  func.func @transform_2(%arg0: i32) -> (i32, i32) {
    %c0_i32 = arith.constant 0 : i32
    %c0_i32_0 = arith.constant 0 : i32
    %c0_i32_1 = arith.constant 0 : i32
    return %c0_i32, %c0_i32_0 : i32, i32
  }
  func.func @transform_3(%arg0: i32) -> (i32, i32) {
    %c0_i32 = arith.constant 0 : i32
    %c0_i32_0 = arith.constant 0 : i32
    %c0_i32_1 = arith.constant 0 : i32
    return %c0_i32, %c0_i32_0 : i32, i32
  }
  func.func @transform_4(%arg0: i32) -> (i32, i32) {
    %c0_i32 = arith.constant 0 : i32
    %c0_i32_0 = arith.constant 0 : i32
    return %arg0, %c0_i32 : i32, i32
  }
}

module attributes {stable_mosaic.version = 11 : i64} {
  func.func @_max4_relu_kernel(%arg0: i32, %arg1: memref<4x24x768xf32, #tpu.memory_space<vmem>>, %arg2: memref<24x768xf32, #tpu.memory_space<vmem>>) attributes {dimension_semantics = [#tpu.dimension_semantics<parallel>], iteration_bounds = array<i64: 1>, scalar_prefetch = 0 : i64, scratch_operands = 0 : i64, tpu.core_type = #tpu.core_type<tc>, window_params = [{transform_indices = @transform_0, window_bounds = array<i64: 4, 24, 768>}, {transform_indices = @transform_1, window_bounds = array<i64: 24, 768>}]} {
    %c0 = arith.constant 0 : index
    %c0_0 = arith.constant 0 : index
    %c0_1 = arith.constant 0 : index
    %0 = vector.load %arg1[%c0, %c0_0, %c0_1] : memref<4x24x768xf32, #tpu.memory_space<vmem>>, vector<1x24x768xf32>
    %1 = vector.shape_cast %0 : vector<1x24x768xf32> to vector<24x768xf32>
    %c1 = arith.constant 1 : index
    %c0_2 = arith.constant 0 : index
    %c0_3 = arith.constant 0 : index
    %2 = vector.load %arg1[%c1, %c0_2, %c0_3] : memref<4x24x768xf32, #tpu.memory_space<vmem>>, vector<1x24x768xf32>
    %3 = vector.shape_cast %2 : vector<1x24x768xf32> to vector<24x768xf32>
    %4 = arith.maximumf %1, %3 : vector<24x768xf32>
    %c2 = arith.constant 2 : index
    %c0_4 = arith.constant 0 : index
    %c0_5 = arith.constant 0 : index
    %5 = vector.load %arg1[%c2, %c0_4, %c0_5] : memref<4x24x768xf32, #tpu.memory_space<vmem>>, vector<1x24x768xf32>
    %6 = vector.shape_cast %5 : vector<1x24x768xf32> to vector<24x768xf32>
    %c3 = arith.constant 3 : index
    %c0_6 = arith.constant 0 : index
    %c0_7 = arith.constant 0 : index
    %7 = vector.load %arg1[%c3, %c0_6, %c0_7] : memref<4x24x768xf32, #tpu.memory_space<vmem>>, vector<1x24x768xf32>
    %8 = vector.shape_cast %7 : vector<1x24x768xf32> to vector<24x768xf32>
    %9 = arith.maximumf %6, %8 : vector<24x768xf32>
    %10 = arith.maximumf %4, %9 : vector<24x768xf32>
    %cst = arith.constant 0.000000e+00 : f32
    %11 = vector.broadcast %cst : f32 to vector<24x768xf32>
    %12 = arith.maximumf %10, %11 : vector<24x768xf32>
    %c0_8 = arith.constant 0 : index
    %c0_9 = arith.constant 0 : index
    %13 = vector.load %arg2[%c0_8, %c0_9] : memref<24x768xf32, #tpu.memory_space<vmem>>, vector<24x768xf32>
    tpu.vector_store %arg2[%c0_8, %c0_9], %12 {strides = array<i32>} : memref<24x768xf32, #tpu.memory_space<vmem>>, vector<24x768xf32>,
    return
  }
  func.func @transform_0(%arg0: i32) -> (i32, i32, i32) {
    %c0_i32 = arith.constant 0 : i32
    %c0_i32_0 = arith.constant 0 : i32
    %c0_i32_1 = arith.constant 0 : i32
    return %c0_i32, %arg0, %c0_i32_0 : i32, i32, i32
  }
  func.func @transform_1(%arg0: i32) -> (i32, i32) {
    %c0_i32 = arith.constant 0 : i32
    %c0_i32_0 = arith.constant 0 : i32
    return %arg0, %c0_i32 : i32, i32
  }
}

module attributes {stable_mosaic.version = 11 : i64} {
  func.func @_matmul_affine_kernel(%arg0: i32, %arg1: memref<128x1600xbf16, #tpu.memory_space<vmem>>, %arg2: memref<1600x50xbf16, #tpu.memory_space<vmem>>, %arg3: memref<1x50xf32, #tpu.memory_space<vmem>>, %arg4: memref<1x50xf32, #tpu.memory_space<vmem>>, %arg5: memref<128x50xf32, #tpu.memory_space<vmem>>) attributes {dimension_semantics = [#tpu.dimension_semantics<parallel>], iteration_bounds = array<i64: 1>, scalar_prefetch = 0 : i64, scratch_operands = 0 : i64, tpu.core_type = #tpu.core_type<tc>, window_params = [{transform_indices = @transform_0, window_bounds = array<i64: 128, 1600>}, {pipeline_mode = #tpu.pipeline_mode<synchronous>, transform_indices = @transform_1, window_bounds = array<i64: 1600, 50>}, {pipeline_mode = #tpu.pipeline_mode<synchronous>, transform_indices = @transform_2, window_bounds = array<i64: 1, 50>}, {pipeline_mode = #tpu.pipeline_mode<synchronous>, transform_indices = @transform_3, window_bounds = array<i64: 1, 50>}, {transform_indices = @transform_4, window_bounds = array<i64: 128, 50>}]} {
    %c0 = arith.constant 0 : index
    %c0_0 = arith.constant 0 : index
    %0 = vector.load %arg1[%c0, %c0_0] : memref<128x1600xbf16, #tpu.memory_space<vmem>>, vector<128x1600xbf16>
    %c0_1 = arith.constant 0 : index
    %c0_2 = arith.constant 0 : index
    %1 = vector.load %arg2[%c0_1, %c0_2] : memref<1600x50xbf16, #tpu.memory_space<vmem>>, vector<1600x50xbf16>
    %cst = arith.constant dense<0.000000e+00> : vector<128x50xf32>
    %2 = tpu.matmul %0, %1, %cst {dimension_numbers = #tpu.dot_dimension_numbers<[1], [0], [0], [1], [0, 0, 1, 1], [], []>} : vector<128x1600xbf16>, vector<1600x50xbf16>, vector<128x50xf32> -> vector<128x50xf32>
    %c0_3 = arith.constant 0 : index
    %c0_4 = arith.constant 0 : index
    %3 = vector.load %arg3[%c0_3, %c0_4] : memref<1x50xf32, #tpu.memory_space<vmem>>, vector<1x50xf32>
    %4 = vector.broadcast %3 : vector<1x50xf32> to vector<128x50xf32>
    %5 = arith.mulf %2, %4 : vector<128x50xf32>
    %c0_5 = arith.constant 0 : index
    %c0_6 = arith.constant 0 : index
    %6 = vector.load %arg4[%c0_5, %c0_6] : memref<1x50xf32, #tpu.memory_space<vmem>>, vector<1x50xf32>
    %7 = vector.broadcast %6 : vector<1x50xf32> to vector<128x50xf32>
    %8 = arith.addf %5, %7 : vector<128x50xf32>
    %c0_7 = arith.constant 0 : index
    %c0_8 = arith.constant 0 : index
    %9 = vector.load %arg5[%c0_7, %c0_8] : memref<128x50xf32, #tpu.memory_space<vmem>>, vector<128x50xf32>
    tpu.vector_store %arg5[%c0_7, %c0_8], %8 {strides = array<i32>} : memref<128x50xf32, #tpu.memory_space<vmem>>, vector<128x50xf32>,
    return
  }
  func.func @transform_0(%arg0: i32) -> (i32, i32) {
    %c0_i32 = arith.constant 0 : i32
    %c0_i32_0 = arith.constant 0 : i32
    return %arg0, %c0_i32 : i32, i32
  }
  func.func @transform_1(%arg0: i32) -> (i32, i32) {
    %c0_i32 = arith.constant 0 : i32
    %c0_i32_0 = arith.constant 0 : i32
    %c0_i32_1 = arith.constant 0 : i32
    return %c0_i32, %c0_i32_0 : i32, i32
  }
  func.func @transform_2(%arg0: i32) -> (i32, i32) {
    %c0_i32 = arith.constant 0 : i32
    %c0_i32_0 = arith.constant 0 : i32
    %c0_i32_1 = arith.constant 0 : i32
    return %c0_i32, %c0_i32_0 : i32, i32
  }
  func.func @transform_3(%arg0: i32) -> (i32, i32) {
    %c0_i32 = arith.constant 0 : i32
    %c0_i32_0 = arith.constant 0 : i32
    %c0_i32_1 = arith.constant 0 : i32
    return %c0_i32, %c0_i32_0 : i32, i32
  }
  func.func @transform_4(%arg0: i32) -> (i32, i32) {
    %c0_i32 = arith.constant 0 : i32
    %c0_i32_0 = arith.constant 0 : i32
    return %arg0, %c0_i32 : i32, i32
  }
}

module attributes {stable_mosaic.version = 11 : i64} {
  func.func @_max4_relu_kernel(%arg0: i32, %arg1: memref<4x8x200xf32, #tpu.memory_space<vmem>>, %arg2: memref<8x200xf32, #tpu.memory_space<vmem>>) attributes {dimension_semantics = [#tpu.dimension_semantics<parallel>], iteration_bounds = array<i64: 1>, scalar_prefetch = 0 : i64, scratch_operands = 0 : i64, tpu.core_type = #tpu.core_type<tc>, window_params = [{transform_indices = @transform_0, window_bounds = array<i64: 4, 8, 200>}, {transform_indices = @transform_1, window_bounds = array<i64: 8, 200>}]} {
    %c0 = arith.constant 0 : index
    %c0_0 = arith.constant 0 : index
    %c0_1 = arith.constant 0 : index
    %0 = vector.load %arg1[%c0, %c0_0, %c0_1] : memref<4x8x200xf32, #tpu.memory_space<vmem>>, vector<1x8x200xf32>
    %1 = vector.shape_cast %0 : vector<1x8x200xf32> to vector<8x200xf32>
    %c1 = arith.constant 1 : index
    %c0_2 = arith.constant 0 : index
    %c0_3 = arith.constant 0 : index
    %2 = vector.load %arg1[%c1, %c0_2, %c0_3] : memref<4x8x200xf32, #tpu.memory_space<vmem>>, vector<1x8x200xf32>
    %3 = vector.shape_cast %2 : vector<1x8x200xf32> to vector<8x200xf32>
    %4 = arith.maximumf %1, %3 : vector<8x200xf32>
    %c2 = arith.constant 2 : index
    %c0_4 = arith.constant 0 : index
    %c0_5 = arith.constant 0 : index
    %5 = vector.load %arg1[%c2, %c0_4, %c0_5] : memref<4x8x200xf32, #tpu.memory_space<vmem>>, vector<1x8x200xf32>
    %6 = vector.shape_cast %5 : vector<1x8x200xf32> to vector<8x200xf32>
    %c3 = arith.constant 3 : index
    %c0_6 = arith.constant 0 : index
    %c0_7 = arith.constant 0 : index
    %7 = vector.load %arg1[%c3, %c0_6, %c0_7] : memref<4x8x200xf32, #tpu.memory_space<vmem>>, vector<1x8x200xf32>
    %8 = vector.shape_cast %7 : vector<1x8x200xf32> to vector<8x200xf32>
    %9 = arith.maximumf %6, %8 : vector<8x200xf32>
    %10 = arith.maximumf %4, %9 : vector<8x200xf32>
    %cst = arith.constant 0.000000e+00 : f32
    %11 = vector.broadcast %cst : f32 to vector<8x200xf32>
    %12 = arith.maximumf %10, %11 : vector<8x200xf32>
    %c0_8 = arith.constant 0 : index
    %c0_9 = arith.constant 0 : index
    %13 = vector.load %arg2[%c0_8, %c0_9] : memref<8x200xf32, #tpu.memory_space<vmem>>, vector<8x200xf32>
    tpu.vector_store %arg2[%c0_8, %c0_9], %12 {strides = array<i32>} : memref<8x200xf32, #tpu.memory_space<vmem>>, vector<8x200xf32>,
    return
  }
  func.func @transform_0(%arg0: i32) -> (i32, i32, i32) {
    %c0_i32 = arith.constant 0 : i32
    %c0_i32_0 = arith.constant 0 : i32
    %c0_i32_1 = arith.constant 0 : i32
    return %c0_i32, %arg0, %c0_i32_0 : i32, i32, i32
  }
  func.func @transform_1(%arg0: i32) -> (i32, i32) {
    %c0_i32 = arith.constant 0 : i32
    %c0_i32_0 = arith.constant 0 : i32
    return %arg0, %c0_i32 : i32, i32
  }
}

module attributes {stable_mosaic.version = 11 : i64} {
  func.func @_heads_kernel(%arg0: i32, %arg1: memref<8x800xbf16, #tpu.memory_space<vmem>>, %arg2: memref<800x256xbf16, #tpu.memory_space<vmem>>, %arg3: memref<1x256xf32, #tpu.memory_space<vmem>>, %arg4: memref<1x256xf32, #tpu.memory_space<vmem>>, %arg5: memref<128x128xbf16, #tpu.memory_space<vmem>>, %arg6: memref<1x128xf32, #tpu.memory_space<vmem>>, %arg7: memref<1x128xf32, #tpu.memory_space<vmem>>, %arg8: memref<128x10xbf16, #tpu.memory_space<vmem>>, %arg9: memref<1x10xf32, #tpu.memory_space<vmem>>, %arg10: memref<128x2xbf16, #tpu.memory_space<vmem>>, %arg11: memref<1x2xf32, #tpu.memory_space<vmem>>, %arg12: memref<8x10xf32, #tpu.memory_space<vmem>>, %arg13: memref<8x2xf32, #tpu.memory_space<vmem>>) attributes {dimension_semantics = [#tpu.dimension_semantics<parallel>], iteration_bounds = array<i64: 1>, scalar_prefetch = 0 : i64, scratch_operands = 0 : i64, tpu.core_type = #tpu.core_type<tc>, window_params = [{transform_indices = @transform_0, window_bounds = array<i64: 8, 800>}, {pipeline_mode = #tpu.pipeline_mode<synchronous>, transform_indices = @transform_1, window_bounds = array<i64: 800, 256>}, {pipeline_mode = #tpu.pipeline_mode<synchronous>, transform_indices = @transform_2, window_bounds = array<i64: 1, 256>}, {pipeline_mode = #tpu.pipeline_mode<synchronous>, transform_indices = @transform_3, window_bounds = array<i64: 1, 256>}, {pipeline_mode = #tpu.pipeline_mode<synchronous>, transform_indices = @transform_4, window_bounds = array<i64: 128, 128>}, {pipeline_mode = #tpu.pipeline_mode<synchronous>, transform_indices = @transform_5, window_bounds = array<i64: 1, 128>}, {pipeline_mode = #tpu.pipeline_mode<synchronous>, transform_indices = @transform_6, window_bounds = array<i64: 1, 128>}, {pipeline_mode = #tpu.pipeline_mode<synchronous>, transform_indices = @transform_7, window_bounds = array<i64: 128, 10>}, {pipeline_mode = #tpu.pipeline_mode<synchronous>, transform_indices = @transform_8, window_bounds = array<i64: 1, 10>}, {pipeline_mode = #tpu.pipeline_mode<synchronous>, transform_indices = @transform_9, window_bounds = array<i64: 128, 2>}, {pipeline_mode = #tpu.pipeline_mode<synchronous>, transform_indices = @transform_10, window_bounds = array<i64: 1, 2>}, {transform_indices = @transform_11, window_bounds = array<i64: 8, 10>}, {transform_indices = @transform_12, window_bounds = array<i64: 8, 2>}]} {
    %c0 = arith.constant 0 : index
    %c0_0 = arith.constant 0 : index
    %0 = vector.load %arg1[%c0, %c0_0] : memref<8x800xbf16, #tpu.memory_space<vmem>>, vector<8x800xbf16>
    %c0_1 = arith.constant 0 : index
    %c0_2 = arith.constant 0 : index
    %1 = vector.load %arg2[%c0_1, %c0_2] : memref<800x256xbf16, #tpu.memory_space<vmem>>, vector<800x256xbf16>
    %cst = arith.constant dense<0.000000e+00> : vector<8x256xf32>
    %2 = tpu.matmul %0, %1, %cst {dimension_numbers = #tpu.dot_dimension_numbers<[1], [0], [0], [1], [0, 0, 1, 1], [], []>} : vector<8x800xbf16>, vector<800x256xbf16>, vector<8x256xf32> -> vector<8x256xf32>
    %c0_3 = arith.constant 0 : index
    %c0_4 = arith.constant 0 : index
    %3 = vector.load %arg3[%c0_3, %c0_4] : memref<1x256xf32, #tpu.memory_space<vmem>>, vector<1x256xf32>
    %4 = vector.broadcast %3 : vector<1x256xf32> to vector<8x256xf32>
    %5 = arith.mulf %2, %4 : vector<8x256xf32>
    %c0_5 = arith.constant 0 : index
    %c0_6 = arith.constant 0 : index
    %6 = vector.load %arg4[%c0_5, %c0_6] : memref<1x256xf32, #tpu.memory_space<vmem>>, vector<1x256xf32>
    %7 = vector.broadcast %6 : vector<1x256xf32> to vector<8x256xf32>
    %8 = arith.addf %5, %7 : vector<8x256xf32>
    %cst_7 = arith.constant 0.000000e+00 : f32
    %9 = vector.broadcast %cst_7 : f32 to vector<8x256xf32>
    %10 = arith.maximumf %8, %9 : vector<8x256xf32>
    %11 = vector.extract_strided_slice %10 {offsets = [0, 0], sizes = [8, 128], strides = [1, 1]} : vector<8x256xf32> to vector<8x128xf32>
    %12 = arith.truncf %11 : vector<8x128xf32> to vector<8x128xbf16>
    %13 = vector.extract_strided_slice %10 {offsets = [0, 128], sizes = [8, 128], strides = [1, 1]} : vector<8x256xf32> to vector<8x128xf32>
    %14 = arith.truncf %13 : vector<8x128xf32> to vector<8x128xbf16>
    %c0_8 = arith.constant 0 : index
    %c0_9 = arith.constant 0 : index
    %15 = vector.load %arg5[%c0_8, %c0_9] : memref<128x128xbf16, #tpu.memory_space<vmem>>, vector<128x128xbf16>
    %cst_10 = arith.constant dense<0.000000e+00> : vector<8x128xf32>
    %16 = tpu.matmul %12, %15, %cst_10 {dimension_numbers = #tpu.dot_dimension_numbers<[1], [0], [0], [1], [0, 0, 1, 1], [], []>} : vector<8x128xbf16>, vector<128x128xbf16>, vector<8x128xf32> -> vector<8x128xf32>
    %c0_11 = arith.constant 0 : index
    %c0_12 = arith.constant 0 : index
    %17 = vector.load %arg6[%c0_11, %c0_12] : memref<1x128xf32, #tpu.memory_space<vmem>>, vector<1x128xf32>
    %18 = vector.broadcast %17 : vector<1x128xf32> to vector<8x128xf32>
    %19 = arith.mulf %16, %18 : vector<8x128xf32>
    %c0_13 = arith.constant 0 : index
    %c0_14 = arith.constant 0 : index
    %20 = vector.load %arg7[%c0_13, %c0_14] : memref<1x128xf32, #tpu.memory_space<vmem>>, vector<1x128xf32>
    %21 = vector.broadcast %20 : vector<1x128xf32> to vector<8x128xf32>
    %22 = arith.addf %19, %21 : vector<8x128xf32>
    %cst_15 = arith.constant 0.000000e+00 : f32
    %23 = vector.broadcast %cst_15 : f32 to vector<8x128xf32>
    %24 = arith.maximumf %22, %23 : vector<8x128xf32>
    %25 = arith.truncf %24 : vector<8x128xf32> to vector<8x128xbf16>
    %c0_16 = arith.constant 0 : index
    %c0_17 = arith.constant 0 : index
    %26 = vector.load %arg8[%c0_16, %c0_17] : memref<128x10xbf16, #tpu.memory_space<vmem>>, vector<128x10xbf16>
    %cst_18 = arith.constant dense<0.000000e+00> : vector<8x10xf32>
    %27 = tpu.matmul %25, %26, %cst_18 {dimension_numbers = #tpu.dot_dimension_numbers<[1], [0], [0], [1], [0, 0, 1, 1], [], []>} : vector<8x128xbf16>, vector<128x10xbf16>, vector<8x10xf32> -> vector<8x10xf32>
    %c0_19 = arith.constant 0 : index
    %c0_20 = arith.constant 0 : index
    %28 = vector.load %arg9[%c0_19, %c0_20] : memref<1x10xf32, #tpu.memory_space<vmem>>, vector<1x10xf32>
    %29 = vector.broadcast %28 : vector<1x10xf32> to vector<8x10xf32>
    %30 = arith.addf %27, %29 : vector<8x10xf32>
    %c0_21 = arith.constant 0 : index
    %c0_22 = arith.constant 0 : index
    %31 = vector.load %arg10[%c0_21, %c0_22] : memref<128x2xbf16, #tpu.memory_space<vmem>>, vector<128x2xbf16>
    %cst_23 = arith.constant dense<0.000000e+00> : vector<8x2xf32>
    %32 = tpu.matmul %14, %31, %cst_23 {dimension_numbers = #tpu.dot_dimension_numbers<[1], [0], [0], [1], [0, 0, 1, 1], [], []>} : vector<8x128xbf16>, vector<128x2xbf16>, vector<8x2xf32> -> vector<8x2xf32>
    %c0_24 = arith.constant 0 : index
    %c0_25 = arith.constant 0 : index
    %33 = vector.load %arg11[%c0_24, %c0_25] : memref<1x2xf32, #tpu.memory_space<vmem>>, vector<1x2xf32>
    %34 = vector.broadcast %33 : vector<1x2xf32> to vector<8x2xf32>
    %35 = arith.addf %32, %34 : vector<8x2xf32>
    %cst_26 = arith.constant dense<0xFF800000> : vector<8xf32>
    %36 = vector.multi_reduction <maximumf>, %30, %cst_26 [1] : vector<8x10xf32> to vector<8xf32>
    %37 = vector.shape_cast %36 : vector<8xf32> to vector<8x1xf32>
    %38 = vector.broadcast %37 : vector<8x1xf32> to vector<8x10xf32>
    %39 = arith.subf %30, %38 : vector<8x10xf32>
    %40 = math.exp %39 : vector<8x10xf32>
    %cst_27 = arith.constant dense<0.000000e+00> : vector<8xf32>
    %41 = vector.multi_reduction <add>, %40, %cst_27 [1] : vector<8x10xf32> to vector<8xf32>
    %42 = vector.shape_cast %41 : vector<8xf32> to vector<8x1xf32>
    %43 = math.log %42 : vector<8x1xf32>
    %44 = vector.broadcast %43 : vector<8x1xf32> to vector<8x10xf32>
    %45 = arith.subf %39, %44 : vector<8x10xf32>
    %c0_28 = arith.constant 0 : index
    %c0_29 = arith.constant 0 : index
    %46 = vector.load %arg12[%c0_28, %c0_29] : memref<8x10xf32, #tpu.memory_space<vmem>>, vector<8x10xf32>
    tpu.vector_store %arg12[%c0_28, %c0_29], %45 {strides = array<i32>} : memref<8x10xf32, #tpu.memory_space<vmem>>, vector<8x10xf32>,
    %cst_30 = arith.constant dense<0xFF800000> : vector<8xf32>
    %47 = vector.multi_reduction <maximumf>, %35, %cst_30 [1] : vector<8x2xf32> to vector<8xf32>
    %48 = vector.shape_cast %47 : vector<8xf32> to vector<8x1xf32>
    %49 = vector.broadcast %48 : vector<8x1xf32> to vector<8x2xf32>
    %50 = arith.subf %35, %49 : vector<8x2xf32>
    %51 = math.exp %50 : vector<8x2xf32>
    %cst_31 = arith.constant dense<0.000000e+00> : vector<8xf32>
    %52 = vector.multi_reduction <add>, %51, %cst_31 [1] : vector<8x2xf32> to vector<8xf32>
    %53 = vector.shape_cast %52 : vector<8xf32> to vector<8x1xf32>
    %54 = math.log %53 : vector<8x1xf32>
    %55 = vector.broadcast %54 : vector<8x1xf32> to vector<8x2xf32>
    %56 = arith.subf %50, %55 : vector<8x2xf32>
    %c0_32 = arith.constant 0 : index
    %c0_33 = arith.constant 0 : index
    %57 = vector.load %arg13[%c0_32, %c0_33] : memref<8x2xf32, #tpu.memory_space<vmem>>, vector<8x2xf32>
    tpu.vector_store %arg13[%c0_32, %c0_33], %56 {strides = array<i32>} : memref<8x2xf32, #tpu.memory_space<vmem>>, vector<8x2xf32>,
    return
  }
  func.func @transform_0(%arg0: i32) -> (i32, i32) {
    %c0_i32 = arith.constant 0 : i32
    %c0_i32_0 = arith.constant 0 : i32
    return %arg0, %c0_i32 : i32, i32
  }
  func.func @transform_1(%arg0: i32) -> (i32, i32) {
    %c0_i32 = arith.constant 0 : i32
    %c0_i32_0 = arith.constant 0 : i32
    %c0_i32_1 = arith.constant 0 : i32
    return %c0_i32, %c0_i32_0 : i32, i32
  }
  func.func @transform_2(%arg0: i32) -> (i32, i32) {
    %c0_i32 = arith.constant 0 : i32
    %c0_i32_0 = arith.constant 0 : i32
    %c0_i32_1 = arith.constant 0 : i32
    return %c0_i32, %c0_i32_0 : i32, i32
  }
  func.func @transform_3(%arg0: i32) -> (i32, i32) {
    %c0_i32 = arith.constant 0 : i32
    %c0_i32_0 = arith.constant 0 : i32
    %c0_i32_1 = arith.constant 0 : i32
    return %c0_i32, %c0_i32_0 : i32, i32
  }
  func.func @transform_4(%arg0: i32) -> (i32, i32) {
    %c0_i32 = arith.constant 0 : i32
    %c0_i32_0 = arith.constant 0 : i32
    %c0_i32_1 = arith.constant 0 : i32
    return %c0_i32, %c0_i32_0 : i32, i32
  }
  func.func @transform_5(%arg0: i32) -> (i32, i32) {
    %c0_i32 = arith.constant 0 : i32
    %c0_i32_0 = arith.constant 0 : i32
    %c0_i32_1 = arith.constant 0 : i32
    return %c0_i32, %c0_i32_0 : i32, i32
  }
  func.func @transform_6(%arg0: i32) -> (i32, i32) {
    %c0_i32 = arith.constant 0 : i32
    %c0_i32_0 = arith.constant 0 : i32
    %c0_i32_1 = arith.constant 0 : i32
    return %c0_i32, %c0_i32_0 : i32, i32
  }
  func.func @transform_7(%arg0: i32) -> (i32, i32) {
    %c0_i32 = arith.constant 0 : i32
    %c0_i32_0 = arith.constant 0 : i32
    %c0_i32_1 = arith.constant 0 : i32
    return %c0_i32, %c0_i32_0 : i32, i32
  }
  func.func @transform_8(%arg0: i32) -> (i32, i32) {
    %c0_i32 = arith.constant 0 : i32
    %c0_i32_0 = arith.constant 0 : i32
    %c0_i32_1 = arith.constant 0 : i32
    return %c0_i32, %c0_i32_0 : i32, i32
  }
  func.func @transform_9(%arg0: i32) -> (i32, i32) {
    %c0_i32 = arith.constant 0 : i32
    %c0_i32_0 = arith.constant 0 : i32
    %c0_i32_1 = arith.constant 0 : i32
    return %c0_i32, %c0_i32_0 : i32, i32
  }
  func.func @transform_10(%arg0: i32) -> (i32, i32) {
    %c0_i32 = arith.constant 0 : i32
    %c0_i32_0 = arith.constant 0 : i32
    %c0_i32_1 = arith.constant 0 : i32
    return %c0_i32, %c0_i32_0 : i32, i32
  }
  func.func @transform_11(%arg0: i32) -> (i32, i32) {
    %c0_i32 = arith.constant 0 : i32
    %c0_i32_0 = arith.constant 0 : i32
    return %arg0, %c0_i32 : i32, i32
  }
  func.func @transform_12(%arg0: i32) -> (i32, i32) {
    %c0_i32 = arith.constant 0 : i32
    %c0_i32_0 = arith.constant 0 : i32
    return %arg0, %c0_i32 : i32, i32
  }
}

</mosaic_0001>

<llo_original>
// kernel: dda_forward.6
$region0: #{dda_forward.6}
  #allocation0 [shape = 'u32[]', space=smem, size = 0x4, offset = 0x4, fixed_abs, tag = 'smem constant byte address 0x4 - core index']
  #allocation1 [shape = 'u32[144,128]{1,0:T(1,128)}', space=vmem, size = 0x12000, scoped, tag = 'internal scratch']
  %s0 = inlined_call_operand.vmem [shape: f32[4,24,768], index: 0, kind: input, shape index: {}]
  %s1 = inlined_call_operand.vmem [shape: f32[24,768], index: 1, kind: output, shape index: {}]
  %s2 = sld [smem:[#allocation0]]
  $region14: #{dda_forward.6} parent=0
    _
  %s4 = ssub.s32 1, %s2
  %s5 = scalar_select 0, %s4, %s2
  // Predicated region
  $region2: #{dda_forward.6} parent=0 // pred_check
    _
  $region3: #{dda_forward.6} parent=0 // pred_check_branch
    %7 = sbr.rel (0) target = $region5
  $region4: #{dda_forward.6} parent=0 // pred_region
    _
  $region5: #{dda_forward.6} parent=0 // pred_fallthru
    _
  %v8 = vld [vmem:[%s0] sm:$0xff]
  %v9 = vld [vmem:[%s0 + $0x8] sm:$0xff]
  %v10 = vld [vmem:[%s0 + $0x10] sm:$0xff]
  %v11 = vld [vmem:[%s0 + $0x18] sm:$0xff]
  %v12 = vld [vmem:[%s0 + $0x20] sm:$0xff]
  %v13 = vld [vmem:[%s0 + $0x28] sm:$0xff]
  %v14 = vld [vmem:[%s0 + $0x30] sm:$0xff]
  %v15 = vld [vmem:[%s0 + $0x38] sm:$0xff]
  %v16 = vld [vmem:[%s0 + $0x40] sm:$0xff]
  %v17 = vld [vmem:[%s0 + $0x48] sm:$0xff]
  %v18 = vld [vmem:[%s0 + $0x50] sm:$0xff]
  %v19 = vld [vmem:[%s0 + $0x58] sm:$0xff]
  %v20 = vld [vmem:[%s0 + $0x60] sm:$0xff]
  %v21 = vld [vmem:[%s0 + $0x68] sm:$0xff]
  %v22 = vld [vmem:[%s0 + $0x70] sm:$0xff]
  %v23 = vld [vmem:[%s0 + $0x78] sm:$0xff]
  %v24 = vld [vmem:[%s0 + $0x80] sm:$0xff]
  %v25 = vld [vmem:[%s0 + $0x88] sm:$0xff]
  %s26 = scalar_lea.vmem %s0, 144
  %v27 = vld [vmem:[%s26] sm:$0xff]
  %v28 = vld [vmem:[%s26 + $0x8] sm:$0xff]
  %v29 = vld [vmem:[%s26 + $0x10] sm:$0xff]
  %v30 = vld [vmem:[%s26 + $0x18] sm:$0xff]
  %v31 = vld [vmem:[%s26 + $0x20] sm:$0xff]
  %v32 = vld [vmem:[%s26 + $0x28] sm:$0xff]
  %v33 = vld [vmem:[%s26 + $0x30] sm:$0xff]
  %v34 = vld [vmem:[%s26 + $0x38] sm:$0xff]
  %v35 = vld [vmem:[%s26 + $0x40] sm:$0xff]
  %v36 = vld [vmem:[%s26 + $0x48] sm:$0xff]
  %v37 = vld [vmem:[%s26 + $0x50] sm:$0xff]
  %v38 = vld [vmem:[%s26 + $0x58] sm:$0xff]
  %v39 = vld [vmem:[%s26 + $0x60] sm:$0xff]
  %v40 = vld [vmem:[%s26 + $0x68] sm:$0xff]
  %v41 = vld [vmem:[%s26 + $0x70] sm:$0xff]
  %v42 = vld [vmem:[%s26 + $0x78] sm:$0xff]
  %v43 = vld [vmem:[%s26 + $0x80] sm:$0xff]
  %v44 = vld [vmem:[%s26 + $0x88] sm:$0xff]
  %v45 = vmax.f32 %v8, %v27
  %v46 = vmax.f32 %v9, %v28
  %v47 = vmax.f32 %v10, %v29
  %v48 = vmax.f32 %v11, %v30
  %v49 = vmax.f32 %v12, %v31
  %v50 = vmax.f32 %v13, %v32
  %v51 = vmax.f32 %v14, %v33
  %v52 = vmax.f32 %v15, %v34
  %v53 = vmax.f32 %v16, %v35
  %v54 = vmax.f32 %v17, %v36
  %v55 = vmax.f32 %v18, %v37
  %v56 = vmax.f32 %v19, %v38
  %v57 = vmax.f32 %v20, %v39
  %v58 = vmax.f32 %v21, %v40
  %v59 = vmax.f32 %v22, %v41
  %v60 = vmax.f32 %v23, %v42
  %v61 = vmax.f32 %v24, %v43
  %v62 = vmax.f32 %v25, %v44
  %s63 = scalar_lea.vmem %s0, 288
  %v64 = vld [vmem:[%s63] sm:$0xff]
  %v65 = vld [vmem:[%s63 + $0x8] sm:$0xff]
  %v66 = vld [vmem:[%s63 + $0x10] sm:$0xff]
  %v67 = vld [vmem:[%s63 + $0x18] sm:$0xff]
  %v68 = vld [vmem:[%s63 + $0x20] sm:$0xff]
  %v69 = vld [vmem:[%s63 + $0x28] sm:$0xff]
  %v70 = vld [vmem:[%s63 + $0x30] sm:$0xff]
  %v71 = vld [vmem:[%s63 + $0x38] sm:$0xff]
  %v72 = vld [vmem:[%s63 + $0x40] sm:$0xff]
  %v73 = vld [vmem:[%s63 + $0x48] sm:$0xff]
  %v74 = vld [vmem:[%s63 + $0x50] sm:$0xff]
  %v75 = vld [vmem:[%s63 + $0x58] sm:$0xff]
  %v76 = vld [vmem:[%s63 + $0x60] sm:$0xff]
  %v77 = vld [vmem:[%s63 + $0x68] sm:$0xff]
  %v78 = vld [vmem:[%s63 + $0x70] sm:$0xff]
  %v79 = vld [vmem:[%s63 + $0x78] sm:$0xff]
  %v80 = vld [vmem:[%s63 + $0x80] sm:$0xff]
  %v81 = vld [vmem:[%s63 + $0x88] sm:$0xff]
  %s82 = scalar_lea.vmem %s0, 432
  %v83 = vld [vmem:[%s82] sm:$0xff]
  %v84 = vld [vmem:[%s82 + $0x8] sm:$0xff]
  %v85 = vld [vmem:[%s82 + $0x10] sm:$0xff]
  %v86 = vld [vmem:[%s82 + $0x18] sm:$0xff]
  %v87 = vld [vmem:[%s82 + $0x20] sm:$0xff]
  %v88 = vld [vmem:[%s82 + $0x28] sm:$0xff]
  %v89 = vld [vmem:[%s82 + $0x30] sm:$0xff]
  %v90 = vld [vmem:[%s82 + $0x38] sm:$0xff]
  %v91 = vld [vmem:[%s82 + $0x40] sm:$0xff]
  %v92 = vld [vmem:[%s82 + $0x48] sm:$0xff]
  %v93 = vld [vmem:[%s82 + $0x50] sm:$0xff]
  %v94 = vld [vmem:[%s82 + $0x58] sm:$0xff]
  %v95 = vld [vmem:[%s82 + $0x60] sm:$0xff]
  %v96 = vld [vmem:[%s82 + $0x68] sm:$0xff]
  %v97 = vld [vmem:[%s82 + $0x70] sm:$0xff]
  %v98 = vld [vmem:[%s82 + $0x78] sm:$0xff]
  %v99 = vld [vmem:[%s82 + $0x80] sm:$0xff]
  %v100 = vld [vmem:[%s82 + $0x88] sm:$0xff]
  %v101 = vmax.f32 %v64, %v83
  %v102 = vmax.f32 %v65, %v84
  %v103 = vmax.f32 %v66, %v85
  %v104 = vmax.f32 %v67, %v86
  %v105 = vmax.f32 %v68, %v87
  %v106 = vmax.f32 %v69, %v88
  %v107 = vmax.f32 %v70, %v89
  %v108 = vmax.f32 %v71, %v90
  %v109 = vmax.f32 %v72, %v91
  %v110 = vmax.f32 %v73, %v92
  %v111 = vmax.f32 %v74, %v93
  %v112 = vmax.f32 %v75, %v94
  %v113 = vmax.f32 %v76, %v95
  %v114 = vmax.f32 %v77, %v96
  %v115 = vmax.f32 %v78, %v97
  %v116 = vmax.f32 %v79, %v98
  %v117 = vmax.f32 %v80, %v99
  %v118 = vmax.f32 %v81, %v100
  %v119 = vmax.f32 %v45, %v101
  %v120 = vmax.f32 %v46, %v102
  %v121 = vmax.f32 %v47, %v103
  %v122 = vmax.f32 %v48, %v104
  %v123 = vmax.f32 %v49, %v105
  %v124 = vmax.f32 %v50, %v106
  %v125 = vmax.f32 %v51, %v107
  %v126 = vmax.f32 %v52, %v108
  %v127 = vmax.f32 %v53, %v109
  %v128 = vmax.f32 %v54, %v110
  %v129 = vmax.f32 %v55, %v111
  %v130 = vmax.f32 %v56, %v112
  %v131 = vmax.f32 %v57, %v113
  %v132 = vmax.f32 %v58, %v114
  %v133 = vmax.f32 %v59, %v115
  %v134 = vmax.f32 %v60, %v116
  %v135 = vmax.f32 %v61, %v117
  %v136 = vmax.f32 %v62, %v118
  %v137 = vmax.f32 %v119, 0.0
  %v138 = vmax.f32 %v120, 0.0
  %v139 = vmax.f32 %v121, 0.0
  %v140 = vmax.f32 %v122, 0.0
  %v141 = vmax.f32 %v123, 0.0
  %v142 = vmax.f32 %v124, 0.0
  %v143 = vmax.f32 %v125, 0.0
  %v144 = vmax.f32 %v126, 0.0
  %v145 = vmax.f32 %v127, 0.0
  %v146 = vmax.f32 %v128, 0.0
  %v147 = vmax.f32 %v129, 0.0
  %v148 = vmax.f32 %v130, 0.0
  %v149 = vmax.f32 %v131, 0.0
  %v150 = vmax.f32 %v132, 0.0
  %v151 = vmax.f32 %v133, 0.0
  %v152 = vmax.f32 %v134, 0.0
  %v153 = vmax.f32 %v135, 0.0
  %v154 = vmax.f32 %v136, 0.0
  %155 = vst [vmem:[%s1] sm:$0xff] %v137
  %156 = vst [vmem:[%s1 + $0x8] sm:$0xff] %v138
  %157 = vst [vmem:[%s1 + $0x10] sm:$0xff] %v139
  %158 = vst [vmem:[%s1 + $0x18] sm:$0xff] %v140
  %159 = vst [vmem:[%s1 + $0x20] sm:$0xff] %v141
  %160 = vst [vmem:[%s1 + $0x28] sm:$0xff] %v142
  %161 = vst [vmem:[%s1 + $0x30] sm:$0xff] %v143
  %162 = vst [vmem:[%s1 + $0x38] sm:$0xff] %v144
  %163 = vst [vmem:[%s1 + $0x40] sm:$0xff] %v145
  %164 = vst [vmem:[%s1 + $0x48] sm:$0xff] %v146
  %165 = vst [vmem:[%s1 + $0x50] sm:$0xff] %v147
  %166 = vst [vmem:[%s1 + $0x58] sm:$0xff] %v148
  %167 = vst [vmem:[%s1 + $0x60] sm:$0xff] %v149
  %168 = vst [vmem:[%s1 + $0x68] sm:$0xff] %v150
  %169 = vst [vmem:[%s1 + $0x70] sm:$0xff] %v151
  %170 = vst [vmem:[%s1 + $0x78] sm:$0xff] %v152
  %171 = vst [vmem:[%s1 + $0x80] sm:$0xff] %v153
  %172 = vst [vmem:[%s1 + $0x88] sm:$0xff] %v154
  // Predicated region
  $region6: #{dda_forward.6} parent=0 // pred_check
    _
  $region7: #{dda_forward.6} parent=0 // pred_check_branch
    %174 = sbr.rel (0) target = $region9
  $region8: #{dda_forward.6} parent=0 // pred_region
    _
  $region9: #{dda_forward.6} parent=0 // pred_fallthru
    _
  // Predicated region
  $region10: #{dda_forward.6} parent=0 // pred_check
    _
  $region11: #{dda_forward.6} parent=0 // pred_check_branch
    %176 = sbr.rel (0) target = $region13
  $region12: #{dda_forward.6} parent=0 // pred_region
    _
  $region13: #{dda_forward.6} parent=0 // pred_fallthru
    _

// kernel: dda_forward.5
$region0: #{dda_forward.5}
  #allocation0 [shape = 'u32[]', space=smem, size = 0x4, offset = 0x4, fixed_abs, tag = 'smem constant byte address 0x4 - core index']
  #allocation1 [shape = 'u32[144,128]{1,0:T(1,128)}', space=vmem, size = 0x12000, scoped, tag = 'internal scratch']
  %s0 = inlined_call_operand.vmem [shape: bf16[1536,25], index: 0, kind: input, shape index: {}]
  %s1 = inlined_call_operand.vmem [shape: bf16[25,64], index: 1, kind: input, shape index: {}]
  %s2 = inlined_call_operand.vmem [shape: f32[1,64], index: 2, kind: input, shape index: {}]
  %s3 = inlined_call_operand.vmem [shape: f32[1,64], index: 3, kind: input, shape index: {}]
  %s4 = inlined_call_operand.vmem [shape: f32[1536,64], index: 4, kind: output, shape index: {}]
  %s5 = sld [smem:[#allocation0]]
  $region49: #{dda_forward.5} parent=0
    _
  %s7 = ssub.s32 1, %s5
  %s8 = scalar_select 0, %s7, %s5
  loop: start=0, step=1, limit=5
  $region2: #{dda_forward.5} parent=0 // loop_pre_header
    _
  $region3: #{dda_forward.5} parent=0 // loop_header
    %s10 = sphi 0, %s14
    %p11 = scmp.ge.s32.totalorder %s10, 5
    %s20 = sphi 0, %s22
    %s23 = sphi 0, %s20
    %s24 = sphi 0, %s23
    %s40 = sphi 0, %s24
    %s44 = sphi 0, %s44
    %s46 = sphi 0, %s44
    %s47 = sphi 0, %s46
    %s61 = sphi 0, %s47
    %s65 = sphi 0, %s65
    %s67 = sphi 0, %s65
    %s68 = sphi 0, %s67
    %s82 = sphi 0, %s68
    %s86 = sphi 0, %s86
    %s88 = sphi 0, %s86
    %s89 = sphi 0, %s88
    %s103 = sphi 0, %s89
    %s109 = sphi 0, %s111
    %s112 = sphi 0, %s109
    %s113 = sphi 0, %s112
    %s129 = sphi 0, %s113
  $region4: #{dda_forward.5} parent=0 // loop_header_branch
    %13 = sbr.rel (%p11) target = $region8
  $region5: #{dda_forward.5} parent=0 // loop_body
    %s15 = ssub.s32 %s10, 1
    %s16 = ssub.s32 %s10, 2
    %s17 = sadd.s32 %s10, 1
    %s18 = ssub.s32 %s10, %s17
    %p19 = scmp.eq.s32.totalorder %s18, 0
    %s21 = sadd.s32 %s20, 1
    %s22 = scalar_select %p19, %s20, %s21
    %p25 = pneg %p19
    %p26 = scmp.eq.s32.totalorder %s10, 2
    %p27 = por %p25, %p26
    %p28 = scmp.ne.s32.totalorder %s20, %s23
    %p29 = scmp.eq.s32.totalorder %s10, 0
    %p30 = por %p28, %p29
    %p31 = scmp.ne.s32.totalorder %s20, %s23
    %p32 = scmp.eq.s32.totalorder %s15, 2
    %p33 = por %p31, %p32
    %p34 = scmp.ne.s32.totalorder %s23, %s24
    %p35 = scmp.eq.s32.totalorder %s15, 0
    %p36 = por %p34, %p35
    %p37 = scmp.ne.s32.totalorder %s23, %s24
    %p38 = scmp.eq.s32.totalorder %s16, 2
    %p39 = por %p37, %p38
    %p41 = scmp.ne.s32.totalorder %s24, %s40
    %p42 = scmp.eq.s32.totalorder %s16, 0
    %p43 = por %p41, %p42
    %s45 = sadd.s32 %s44, 1
    %p48 = scmp.eq.s32.totalorder %s10, 2
    %p49 = scmp.ne.s32.totalorder %s44, %s46
    %p50 = scmp.eq.s32.totalorder %s10, 0
    %p51 = por %p49, %p50
    %p52 = scmp.ne.s32.totalorder %s44, %s46
    %p53 = scmp.eq.s32.totalorder %s15, 2
    %p54 = por %p52, %p53
    %p55 = scmp.ne.s32.totalorder %s46, %s47
    %p56 = scmp.eq.s32.totalorder %s15, 0
    %p57 = por %p55, %p56
    %p58 = scmp.ne.s32.totalorder %s46, %s47
    %p59 = scmp.eq.s32.totalorder %s16, 2
    %p60 = por %p58, %p59
    %p62 = scmp.ne.s32.totalorder %s47, %s61
    %p63 = scmp.eq.s32.totalorder %s16, 0
    %p64 = por %p62, %p63
    %s66 = sadd.s32 %s65, 1
    %p69 = scmp.eq.s32.totalorder %s10, 2
    %p70 = scmp.ne.s32.totalorder %s65, %s67
    %p71 = scmp.eq.s32.totalorder %s10, 0
    %p72 = por %p70, %p71
    %p73 = scmp.ne.s32.totalorder %s65, %s67
    %p74 = scmp.eq.s32.totalorder %s15, 2
    %p75 = por %p73, %p74
    %p76 = scmp.ne.s32.totalorder %s67, %s68
    %p77 = scmp.eq.s32.totalorder %s15, 0
    %p78 = por %p76, %p77
    %p79 = scmp.ne.s32.totalorder %s67, %s68
    %p80 = scmp.eq.s32.totalorder %s16, 2
    %p81 = por %p79, %p80
    %p83 = scmp.ne.s32.totalorder %s68, %s82
    %p84 = scmp.eq.s32.totalorder %s16, 0
    %p85 = por %p83, %p84
    %s87 = sadd.s32 %s86, 1
    %p90 = scmp.eq.s32.totalorder %s10, 2
    %p91 = scmp.ne.s32.totalorder %s86, %s88
    %p92 = scmp.eq.s32.totalorder %s10, 0
    %p93 = por %p91, %p92
    %p94 = scmp.ne.s32.totalorder %s86, %s88
    %p95 = scmp.eq.s32.totalorder %s15, 2
    %p96 = por %p94, %p95
    %p97 = scmp.ne.s32.totalorder %s88, %s89
    %p98 = scmp.eq.s32.totalorder %s15, 0
    %p99 = por %p97, %p98
    %p100 = scmp.ne.s32.totalorder %s88, %s89
    %p101 = scmp.eq.s32.totalorder %s16, 2
    %p102 = por %p100, %p101
    %p104 = scmp.ne.s32.totalorder %s89, %s103
    %p105 = scmp.eq.s32.totalorder %s16, 0
    %p106 = por %p104, %p105
    %s107 = ssub.s32 %s10, %s17
    %p108 = scmp.eq.s32.totalorder %s107, 0
    %s110 = sadd.s32 %s109, 1
    %s111 = scalar_select %p108, %s109, %s110
    %p114 = pneg %p108
    %p115 = scmp.eq.s32.totalorder %s10, 2
    %p116 = por %p114, %p115
    %p117 = scmp.ne.s32.totalorder %s109, %s112
    %p118 = scmp.eq.s32.totalorder %s10, 0
    %p119 = por %p117, %p118
    %p120 = scmp.ne.s32.totalorder %s109, %s112
    %p121 = scmp.eq.s32.totalorder %s15, 2
    %p122 = por %p120, %p121
    %p123 = scmp.ne.s32.totalorder %s112, %s113
    %p124 = scmp.eq.s32.totalorder %s15, 0
    %p125 = por %p123, %p124
    %p126 = scmp.ne.s32.totalorder %s112, %s113
    %p127 = scmp.eq.s32.totalorder %s16, 2
    %p128 = por %p126, %p127
    %p130 = scmp.ne.s32.totalorder %s113, %s129
    %p131 = scmp.eq.s32.totalorder %s16, 0
    %p132 = por %p130, %p131
    %p133 = scmp.le.s32.totalorder 1, %s10
    %p134 = scmp.lt.s32.totalorder %s10, 4
    %p135 = pnand %p133, %p134
    %p136 = pneg %p135
    // Predicated region
    $region9: #{dda_forward.5} parent=5 // pred_check
      _
    $region10: #{dda_forward.5} parent=5 // pred_check_branch
      %138 = sbr.rel (%p135) target = $region12
    $region11: #{dda_forward.5} parent=5 // pred_region
      %s139 = ssub.s32 %s10, 1
      // Predicated region
      $region13: #{dda_forward.5} parent=11 // pred_check
        %p140 = pneg %p57
      $region14: #{dda_forward.5} parent=11 // pred_check_branch
        %142 = sbr.rel (%p140) target = $region16
      $region15: #{dda_forward.5} parent=11 // pred_region
        _
      $region16: #{dda_forward.5} parent=11 // pred_fallthru
        _
      // Predicated region
      $region17: #{dda_forward.5} parent=11 // pred_check
        %p143 = pneg %p78
      $region18: #{dda_forward.5} parent=11 // pred_check_branch
        %145 = sbr.rel (%p143) target = $region20
      $region19: #{dda_forward.5} parent=11 // pred_region
        _
      $region20: #{dda_forward.5} parent=11 // pred_fallthru
        _
      // Predicated region
      $region21: #{dda_forward.5} parent=11 // pred_check
        %p146 = pneg %p99
      $region22: #{dda_forward.5} parent=11 // pred_check_branch
        %148 = sbr.rel (%p146) target = $region24
      $region23: #{dda_forward.5} parent=11 // pred_region
        _
      $region24: #{dda_forward.5} parent=11 // pred_fallthru
        _
    $region12: #{dda_forward.5} parent=5 // pred_fallthru
      _
    %p149 = scmp.lt.s32.totalorder %s10, 3
    // Predicated region
    $region25: #{dda_forward.5} parent=5 // pred_check
      %p150 = pneg %p149
    $region26: #{dda_forward.5} parent=5 // pred_check_branch
      %152 = sbr.rel (%p150) target = $region28
    $region27: #{dda_forward.5} parent=5 // pred_region
      // Predicated region
      $region29: #{dda_forward.5} parent=27 // pred_check
        %p153 = pneg %p30
      $region30: #{dda_forward.5} parent=27 // pred_check_branch
        %155 = sbr.rel (%p153) target = $region32
      $region31: #{dda_forward.5} parent=27 // pred_region
        %s156 = smul.u32 64, %s10
        %p157 = scmp.lt.s32.totalorder %s156, 191
        %s158 = scalar_select %p157, %s156, 191
        %s159 = smul.addr %s158, 4
        %s160 = scalar_lea.vmem %s0, %s159
        %s161 = smul.u32 64, %s10
      $region32: #{dda_forward.5} parent=27 // pred_fallthru
        _
    $region28: #{dda_forward.5} parent=5 // pred_fallthru
      _
    %p162 = scmp.le.s32.totalorder 1, %s10
    %p163 = scmp.lt.s32.totalorder %s10, 4
    %p164 = pnand %p162, %p163
    %p165 = pneg %p164
    // Predicated region
    $region33: #{dda_forward.5} parent=5 // pred_check
      _
    $region34: #{dda_forward.5} parent=5 // pred_check_branch
      %167 = sbr.rel (%p164) target = $region36
    $region35: #{dda_forward.5} parent=5 // pred_region
      %s168 = ssub.s32 %s10, 1
      %s169 = smul.u32 64, %s15
      %p170 = scmp.lt.s32.totalorder %s169, 191
      %s171 = scalar_select %p170, %s169, 191
      %s172 = smul.addr %s171, 4
      %s173 = scalar_lea.vmem %s0, %s172
      %p174 = pneg %p36
      %p175 = pneg %p33
      %p176 = pneg %p57
      %p177 = pneg %p54
      %p178 = pneg %p78
      %p179 = pneg %p75
      %p180 = pneg %p99
      %p181 = pneg %p96
      %p182 = pneg %p125
      %p183 = pneg %p122
      %s184 = smul.u32 64, %s15
      %p185 = scmp.lt.s32.totalorder %s184, 191
      %s186 = scalar_select %p185, %s184, 191
      %s187 = smul.addr %s186, 8
      %s188 = scalar_lea.vmem %s4, %s187
      %s189 = smul.u32 64, %s15
      %p190 = scmp.lt.s32.totalorder %s189, 191
      %s191 = scalar_select %p190, %s189, 191
      %s192 = smul.addr %s191, 4
      %s193 = scalar_lea.vmem %s0, %s192
      %s194 = smul.u32 64, %s15
      %s195 = smul.u32 64, %s15
      %p196 = scmp.lt.s32.totalorder %s195, 191
      %s197 = scalar_select %p196, %s195, 191
      %s198 = smul.addr %s197, 8
      %s199 = scalar_lea.vmem %s4, %s198
      %s200 = smul.u32 64, %s15
      %v202 = vld [vmem:[%s193] sm:$0xf]
      %v203 = vld [vmem:[%s193 + $0x4] sm:$0xf]
      %v204 = vld [vmem:[%s193 + $0x8] sm:$0xf]
      %v205 = vld [vmem:[%s193 + $0xc] sm:$0xf]
      %v206 = vld [vmem:[%s193 + $0x10] sm:$0xf]
      %v207 = vld [vmem:[%s193 + $0x14] sm:$0xf]
      %v208 = vld [vmem:[%s193 + $0x18] sm:$0xf]
      %v209 = vld [vmem:[%s193 + $0x1c] sm:$0xf]
      %v210 = vld [vmem:[%s193 + $0x20] sm:$0xf]
      %v211 = vld [vmem:[%s193 + $0x24] sm:$0xf]
      %v212 = vld [vmem:[%s193 + $0x28] sm:$0xf]
      %v213 = vld [vmem:[%s193 + $0x2c] sm:$0xf]
      %v214 = vld [vmem:[%s193 + $0x30] sm:$0xf]
      %v215 = vld [vmem:[%s193 + $0x34] sm:$0xf]
      %v216 = vld [vmem:[%s193 + $0x38] sm:$0xf]
      %v217 = vld [vmem:[%s193 + $0x3c] sm:$0xf]
      %v218 = vld [vmem:[%s193 + $0x40] sm:$0xf]
      %v219 = vld [vmem:[%s193 + $0x44] sm:$0xf]
      %v220 = vld [vmem:[%s193 + $0x48] sm:$0xf]
      %v221 = vld [vmem:[%s193 + $0x4c] sm:$0xf]
      %v222 = vld [vmem:[%s193 + $0x50] sm:$0xf]
      %v223 = vld [vmem:[%s193 + $0x54] sm:$0xf]
      %v224 = vld [vmem:[%s193 + $0x58] sm:$0xf]
      %v225 = vld [vmem:[%s193 + $0x5c] sm:$0xf]
      %v226 = vld [vmem:[%s193 + $0x60] sm:$0xf]
      %v227 = vld [vmem:[%s193 + $0x64] sm:$0xf]
      %v228 = vld [vmem:[%s193 + $0x68] sm:$0xf]
      %v229 = vld [vmem:[%s193 + $0x6c] sm:$0xf]
      %v230 = vld [vmem:[%s193 + $0x70] sm:$0xf]
      %v231 = vld [vmem:[%s193 + $0x74] sm:$0xf]
      %v232 = vld [vmem:[%s193 + $0x78] sm:$0xf]
      %v233 = vld [vmem:[%s193 + $0x7c] sm:$0xf]
      %v234 = vld [vmem:[%s193 + $0x80] sm:$0xf]
      %v235 = vld [vmem:[%s193 + $0x84] sm:$0xf]
      %v236 = vld [vmem:[%s193 + $0x88] sm:$0xf]
      %v237 = vld [vmem:[%s193 + $0x8c] sm:$0xf]
      %v238 = vld [vmem:[%s193 + $0x90] sm:$0xf]
      %v239 = vld [vmem:[%s193 + $0x94] sm:$0xf]
      %v240 = vld [vmem:[%s193 + $0x98] sm:$0xf]
      %v241 = vld [vmem:[%s193 + $0x9c] sm:$0xf]
      %v242 = vld [vmem:[%s193 + $0xa0] sm:$0xf]
      %v243 = vld [vmem:[%s193 + $0xa4] sm:$0xf]
      %v244 = vld [vmem:[%s193 + $0xa8] sm:$0xf]
      %v245 = vld [vmem:[%s193 + $0xac] sm:$0xf]
      %v246 = vld [vmem:[%s193 + $0xb0] sm:$0xf]
      %v247 = vld [vmem:[%s193 + $0xb4] sm:$0xf]
      %v248 = vld [vmem:[%s193 + $0xb8] sm:$0xf]
      %v249 = vld [vmem:[%s193 + $0xbc] sm:$0xf]
      %v250 = vld [vmem:[%s193 + $0xc0] sm:$0xf]
      %v251 = vld [vmem:[%s193 + $0xc4] sm:$0xf]
      %v252 = vld [vmem:[%s193 + $0xc8] sm:$0xf]
      %v253 = vld [vmem:[%s193 + $0xcc] sm:$0xf]
      %v254 = vld [vmem:[%s193 + $0xd0] sm:$0xf]
      %v255 = vld [vmem:[%s193 + $0xd4] sm:$0xf]
      %v256 = vld [vmem:[%s193 + $0xd8] sm:$0xf]
      %v257 = vld [vmem:[%s193 + $0xdc] sm:$0xf]
      %v258 = vld [vmem:[%s193 + $0xe0] sm:$0xf]
      %v259 = vld [vmem:[%s193 + $0xe4] sm:$0xf]
      %v260 = vld [vmem:[%s193 + $0xe8] sm:$0xf]
      %v261 = vld [vmem:[%s193 + $0xec] sm:$0xf]
      %v262 = vld [vmem:[%s193 + $0xf0] sm:$0xf]
      %v263 = vld [vmem:[%s193 + $0xf4] sm:$0xf]
      %v264 = vld [vmem:[%s193 + $0xf8] sm:$0xf]
      %v265 = vld [vmem:[%s193 + $0xfc] sm:$0xf]
      %v266 = vld [vmem:[%s1] sm:$0xf]
      %v267 = vld [vmem:[%s1 + $0x4] sm:$0xf]
      %v268 = vld [vmem:[%s1 + $0x8] sm:$0xf]
      %v269 = vld [vmem:[%s1 + $0xc] sm:$0x1]
      %v334 = vunpack.c.l.b16 %v202
      %v335 = vunpack.c.l.b16 %v203
      %v336 = vunpack.c.l.b16 %v204
      %v337 = vunpack.c.l.b16 %v205
      %v338 = vunpack.c.l.b16 %v206
      %v339 = vunpack.c.l.b16 %v207
      %v340 = vunpack.c.l.b16 %v208
      %v341 = vunpack.c.l.b16 %v209
      %v342 = vunpack.c.l.b16 %v210
      %v343 = vunpack.c.l.b16 %v211
      %v344 = vunpack.c.l.b16 %v212
      %v345 = vunpack.c.l.b16 %v213
      %v346 = vunpack.c.l.b16 %v214
      %v347 = vunpack.c.l.b16 %v215
      %v348 = vunpack.c.l.b16 %v216
      %v349 = vunpack.c.l.b16 %v217
      %v350 = vunpack.c.l.b16 %v218
      %v351 = vunpack.c.l.b16 %v219
      %v352 = vunpack.c.l.b16 %v220
      %v353 = vunpack.c.l.b16 %v221
      %v354 = vunpack.c.l.b16 %v222
      %v355 = vunpack.c.l.b16 %v223
      %v356 = vunpack.c.l.b16 %v224
      %v357 = vunpack.c.l.b16 %v225
      %v358 = vunpack.c.l.b16 %v226
      %v359 = vunpack.c.l.b16 %v227
      %v360 = vunpack.c.l.b16 %v228
      %v361 = vunpack.c.l.b16 %v229
      %v362 = vunpack.c.l.b16 %v230
      %v363 = vunpack.c.l.b16 %v231
      %v364 = vunpack.c.l.b16 %v232
      %v365 = vunpack.c.l.b16 %v233
      %v366 = vunpack.c.l.b16 %v234
      %v367 = vunpack.c.l.b16 %v235
      %v368 = vunpack.c.l.b16 %v236
      %v369 = vunpack.c.l.b16 %v237
      %v370 = vunpack.c.l.b16 %v238
      %v371 = vunpack.c.l.b16 %v239
      %v372 = vunpack.c.l.b16 %v240
      %v373 = vunpack.c.l.b16 %v241
      %v374 = vunpack.c.l.b16 %v242
      %v375 = vunpack.c.l.b16 %v243
      %v376 = vunpack.c.l.b16 %v244
      %v377 = vunpack.c.l.b16 %v245
      %v378 = vunpack.c.l.b16 %v246
      %v379 = vunpack.c.l.b16 %v247
      %v380 = vunpack.c.l.b16 %v248
      %v381 = vunpack.c.l.b16 %v249
      %v382 = vunpack.c.l.b16 %v250
      %v383 = vunpack.c.l.b16 %v251
      %v384 = vunpack.c.l.b16 %v252
      %v385 = vunpack.c.l.b16 %v253
      %v386 = vunpack.c.l.b16 %v254
      %v387 = vunpack.c.l.b16 %v255
      %v388 = vunpack.c.l.b16 %v256
      %v389 = vunpack.c.l.b16 %v257
      %v390 = vunpack.c.l.b16 %v258
      %v391 = vunpack.c.l.b16 %v259
      %v392 = vunpack.c.l.b16 %v260
      %v393 = vunpack.c.l.b16 %v261
      %v394 = vunpack.c.l.b16 %v262
      %v395 = vunpack.c.l.b16 %v263
      %v396 = vunpack.c.l.b16 %v264
      %v397 = vunpack.c.l.b16 %v265
      %v398 = vpack.c.b16 %v335, %v334
      %v399 = vpack.c.b16 %v337, %v336
      %v400 = vpack.c.b16 %v339, %v338
      %v401 = vpack.c.b16 %v341, %v340
      %v402 = vpack.c.b16 %v343, %v342
      %v403 = vpack.c.b16 %v345, %v344
      %v404 = vpack.c.b16 %v347, %v346
      %v405 = vpack.c.b16 %v349, %v348
      %v406 = vpack.c.b16 %v351, %v350
      %v407 = vpack.c.b16 %v353, %v352
      %v408 = vpack.c.b16 %v355, %v354
      %v409 = vpack.c.b16 %v357, %v356
      %v410 = vpack.c.b16 %v359, %v358
      %v411 = vpack.c.b16 %v361, %v360
      %v412 = vpack.c.b16 %v363, %v362
      %v413 = vpack.c.b16 %v365, %v364
      %v414 = vpack.c.b16 %v367, %v366
      %v415 = vpack.c.b16 %v369, %v368
      %v416 = vpack.c.b16 %v371, %v370
      %v417 = vpack.c.b16 %v373, %v372
      %v418 = vpack.c.b16 %v375, %v374
      %v419 = vpack.c.b16 %v377, %v376
      %v420 = vpack.c.b16 %v379, %v378
      %v421 = vpack.c.b16 %v381, %v380
      %v422 = vpack.c.b16 %v383, %v382
      %v423 = vpack.c.b16 %v385, %v384
      %v424 = vpack.c.b16 %v387, %v386
      %v425 = vpack.c.b16 %v389, %v388
      %v426 = vpack.c.b16 %v391, %v390
      %v427 = vpack.c.b16 %v393, %v392
      %v428 = vpack.c.b16 %v395, %v394
      %v429 = vpack.c.b16 %v397, %v396
      %v434 = vunpack.c.l.b16 %v266
      %v435 = vunpack.c.l.b16 %v267
      %v436 = vunpack.c.l.b16 %v268
      %v437 = vunpack.c.l.b16 %v269
      %v438 = vpack.c.b16 %v435, %v434
      %v439 = vpack.c.b16 %v437, %v436
      %vm441 = vcmask 203776
      %v443 = vsel %vm441, %v398, 0
      %v446 = vsel %vm441, %v399, 0
      %v449 = vsel %vm441, %v400, 0
      %v452 = vsel %vm441, %v401, 0
      %v455 = vsel %vm441, %v402, 0
      %v458 = vsel %vm441, %v403, 0
      %v461 = vsel %vm441, %v404, 0
      %v464 = vsel %vm441, %v405, 0
      %v467 = vsel %vm441, %v406, 0
      %v470 = vsel %vm441, %v407, 0
      %v473 = vsel %vm441, %v408, 0
      %v476 = vsel %vm441, %v409, 0
      %v479 = vsel %vm441, %v410, 0
      %v482 = vsel %vm441, %v411, 0
      %v485 = vsel %vm441, %v412, 0
      %v488 = vsel %vm441, %v413, 0
      %v491 = vsel %vm441, %v414, 0
      %v494 = vsel %vm441, %v415, 0
      %v497 = vsel %vm441, %v416, 0
      %v500 = vsel %vm441, %v417, 0
      %v503 = vsel %vm441, %v418, 0
      %v506 = vsel %vm441, %v419, 0
      %v509 = vsel %vm441, %v420, 0
      %v512 = vsel %vm441, %v421, 0
      %v515 = vsel %vm441, %v422, 0
      %v518 = vsel %vm441, %v423, 0
      %v521 = vsel %vm441, %v424, 0
      %v524 = vsel %vm441, %v425, 0
      %v527 = vsel %vm441, %v426, 0
      %v530 = vsel %vm441, %v427, 0
      %v533 = vsel %vm441, %v428, 0
      %v536 = vsel %vm441, %v429, 0
      %vm538 = vcmask 1043456
      %vm539 = vcmask 1044480
      %v540 = vsel %vm538, 4294967295, 65535
      %v541 = vsel %vm539, %v540, 0
      %v543 = vand.u32 %v439, %v541
      %545 = vmatprep.subr.bf16.mxu0 0
      %546 = vmatpush1.bf16.msra.mxu0 %v438
      %547 = vmatprep.subr.bf16.mxu0 0
      %548 = vmatpush1.bf16.msra.mxu0 %v543
      %549 = vmatprep.subr.bf16.mxu0 0
      %550 = vmatpush1.bf16.msra.mxu0 0
      %551 = vmatprep.subr.bf16.mxu0 0
      %552 = vmatpush1.bf16.msra.mxu0 0
      %553 = vmatprep.subr.bf16.mxu0 0
      %554 = vmatpush1.bf16.msra.mxu0 0
      %555 = vmatprep.subr.bf16.mxu0 0
      %556 = vmatpush1.bf16.msra.mxu0 0
      %557 = vmatprep.subr.bf16.mxu0 0
      %558 = vmatpush1.bf16.msra.mxu0 0
      %559 = vmatprep.subr.bf16.mxu0 0
      %560 = vmatpush1.bf16.msra.mxu0 0
      %561 = vmatprep.subr.bf16.mxu0 0
      %562 = vmatpush1.bf16.msra.mxu0 0
      %563 = vmatprep.subr.bf16.mxu0 0
      %564 = vmatpush1.bf16.msra.mxu0 0
      %565 = vmatprep.subr.bf16.mxu0 0
      %566 = vmatpush1.bf16.msra.mxu0 0
      %567 = vmatprep.subr.bf16.mxu0 0
      %568 = vmatpush1.bf16.msra.mxu0 0
      %569 = vmatprep.subr.bf16.mxu0 0
      %570 = vmatpush1.bf16.msra.mxu0 0
      %571 = vmatprep.subr.bf16.mxu0 0
      %572 = vmatpush1.bf16.msra.mxu0 0
      %573 = vmatprep.subr.bf16.mxu0 0
      %574 = vmatpush1.bf16.msra.mxu0 0
      %575 = vmatprep.subr.bf16.mxu0 0
      %576 = vmatpush1.bf16.msra.mxu0 0
      %577 = vmatprep.mubr.bf16.mxu0 0
      %578 = vmatmul.mubr.bf16.gmra.mrb[0].mxu0 %v443
      %v579 = vpop.f32.mrb[0].mxu0
      %v580 = vadd.f32 0.0, %v579
      %v581 = vpop.f32.mrb[0].mxu0
      %v582 = vpop.f32.mrb[0].mxu0
      %v583 = vadd.f32 0.0, %v582
      %v584 = vpop.f32.mrb[0].mxu0
      %585 = vmatprep.mubr.bf16.mxu0 0
      %586 = vmatmul.mubr.bf16.gmra.mrb[0].mxu0 %v446
      %v587 = vpop.f32.mrb[0].mxu0
      %v588 = vadd.f32 0.0, %v587
      %v589 = vpop.f32.mrb[0].mxu0
      %v590 = vpop.f32.mrb[0].mxu0
      %v591 = vadd.f32 0.0, %v590
      %v592 = vpop.f32.mrb[0].mxu0
      %593 = vmatprep.mubr.bf16.mxu0 0
      %594 = vmatmul.mubr.bf16.gmra.mrb[0].mxu0 %v449
      %v595 = vpop.f32.mrb[0].mxu0
      %v596 = vadd.f32 0.0, %v595
      %v597 = vpop.f32.mrb[0].mxu0
      %v598 = vpop.f32.mrb[0].mxu0
      %v599 = vadd.f32 0.0, %v598
      %v600 = vpop.f32.mrb[0].mxu0
      %601 = vmatprep.mubr.bf16.mxu0 0
      %602 = vmatmul.mubr.bf16.gmra.mrb[0].mxu0 %v452
      %v603 = vpop.f32.mrb[0].mxu0
      %v604 = vadd.f32 0.0, %v603
      %v605 = vpop.f32.mrb[0].mxu0
      %v606 = vpop.f32.mrb[0].mxu0
      %v607 = vadd.f32 0.0, %v606
      %v608 = vpop.f32.mrb[0].mxu0
      %609 = vmatprep.mubr.bf16.mxu0 0
      %610 = vmatmul.mubr.bf16.gmra.mrb[0].mxu0 %v455
      %v611 = vpop.f32.mrb[0].mxu0
      %v612 = vadd.f32 0.0, %v611
      %v613 = vpop.f32.mrb[0].mxu0
      %v614 = vpop.f32.mrb[0].mxu0
      %v615 = vadd.f32 0.0, %v614
      %v616 = vpop.f32.mrb[0].mxu0
      %617 = vmatprep.mubr.bf16.mxu0 0
      %618 = vmatmul.mubr.bf16.gmra.mrb[0].mxu0 %v458
      %v619 = vpop.f32.mrb[0].mxu0
      %v620 = vadd.f32 0.0, %v619
      %v621 = vpop.f32.mrb[0].mxu0
      %v622 = vpop.f32.mrb[0].mxu0
      %v623 = vadd.f32 0.0, %v622
      %v624 = vpop.f32.mrb[0].mxu0
      %625 = vmatprep.mubr.bf16.mxu0 0
      %626 = vmatmul.mubr.bf16.gmra.mrb[0].mxu0 %v461
      %v627 = vpop.f32.mrb[0].mxu0
      %v628 = vadd.f32 0.0, %v627
      %v629 = vpop.f32.mrb[0].mxu0
      %v630 = vpop.f32.mrb[0].mxu0
      %v631 = vadd.f32 0.0, %v630
      %v632 = vpop.f32.mrb[0].mxu0
      %633 = vmatprep.mubr.bf16.mxu0 0
      %634 = vmatmul.mubr.bf16.gmra.mrb[0].mxu0 %v464
      %v635 = vpop.f32.mrb[0].mxu0
      %v636 = vadd.f32 0.0, %v635
      %v637 = vpop.f32.mrb[0].mxu0
      %v638 = vpop.f32.mrb[0].mxu0
      %v639 = vadd.f32 0.0, %v638
      %v640 = vpop.f32.mrb[0].mxu0
      %641 = vmatprep.mubr.bf16.mxu0 0
      %642 = vmatmul.mubr.bf16.gmra.mrb[0].mxu0 %v467
      %v643 = vpop.f32.mrb[0].mxu0
      %v644 = vadd.f32 0.0, %v643
      %v645 = vpop.f32.mrb[0].mxu0
      %v646 = vpop.f32.mrb[0].mxu0
      %v647 = vadd.f32 0.0, %v646
      %v648 = vpop.f32.mrb[0].mxu0
      %649 = vmatprep.mubr.bf16.mxu0 0
      %650 = vmatmul.mubr.bf16.gmra.mrb[0].mxu0 %v470
      %v651 = vpop.f32.mrb[0].mxu0
      %v652 = vadd.f32 0.0, %v651
      %v653 = vpop.f32.mrb[0].mxu0
      %v654 = vpop.f32.mrb[0].mxu0
      %v655 = vadd.f32 0.0, %v654
      %v656 = vpop.f32.mrb[0].mxu0
      %657 = vmatprep.mubr.bf16.mxu0 0
      %658 = vmatmul.mubr.bf16.gmra.mrb[0].mxu0 %v473
      %v659 = vpop.f32.mrb[0].mxu0
      %v660 = vadd.f32 0.0, %v659
      %v661 = vpop.f32.mrb[0].mxu0
      %v662 = vpop.f32.mrb[0].mxu0
      %v663 = vadd.f32 0.0, %v662
      %v664 = vpop.f32.mrb[0].mxu0
      %665 = vmatprep.mubr.bf16.mxu0 0
      %666 = vmatmul.mubr.bf16.gmra.mrb[0].mxu0 %v476
      %v667 = vpop.f32.mrb[0].mxu0
      %v668 = vadd.f32 0.0, %v667
      %v669 = vpop.f32.mrb[0].mxu0
      %v670 = vpop.f32.mrb[0].mxu0
      %v671 = vadd.f32 0.0, %v670
      %v672 = vpop.f32.mrb[0].mxu0
      %673 = vmatprep.mubr.bf16.mxu0 0
      %674 = vmatmul.mubr.bf16.gmra.mrb[0].mxu0 %v479
      %v675 = vpop.f32.mrb[0].mxu0
      %v676 = vadd.f32 0.0, %v675
      %v677 = vpop.f32.mrb[0].mxu0
      %v678 = vpop.f32.mrb[0].mxu0
      %v679 = vadd.f32 0.0, %v678
      %v680 = vpop.f32.mrb[0].mxu0
      %681 = vmatprep.mubr.bf16.mxu0 0
      %682 = vmatmul.mubr.bf16.gmra.mrb[0].mxu0 %v482
      %v683 = vpop.f32.mrb[0].mxu0
      %v684 = vadd.f32 0.0, %v683
      %v685 = vpop.f32.mrb[0].mxu0
      %v686 = vpop.f32.mrb[0].mxu0
      %v687 = vadd.f32 0.0, %v686
      %v688 = vpop.f32.mrb[0].mxu0
      %689 = vmatprep.mubr.bf16.mxu0 0
      %690 = vmatmul.mubr.bf16.gmra.mrb[0].mxu0 %v485
      %v691 = vpop.f32.mrb[0].mxu0
      %v692 = vadd.f32 0.0, %v691
      %v693 = vpop.f32.mrb[0].mxu0
      %v694 = vpop.f32.mrb[0].mxu0
      %v695 = vadd.f32 0.0, %v694
      %v696 = vpop.f32.mrb[0].mxu0
      %697 = vmatprep.mubr.bf16.mxu0 0
      %698 = vmatmul.mubr.bf16.gmra.mrb[0].mxu0 %v488
      %v699 = vpop.f32.mrb[0].mxu0
      %v700 = vadd.f32 0.0, %v699
      %v701 = vpop.f32.mrb[0].mxu0
      %v702 = vpop.f32.mrb[0].mxu0
      %v703 = vadd.f32 0.0, %v702
      %v704 = vpop.f32.mrb[0].mxu0
      %705 = vmatprep.mubr.bf16.mxu0 0
      %706 = vmatmul.mubr.bf16.gmra.mrb[0].mxu0 %v491
      %v707 = vpop.f32.mrb[0].mxu0
      %v708 = vadd.f32 0.0, %v707
      %v709 = vpop.f32.mrb[0].mxu0
      %v710 = vpop.f32.mrb[0].mxu0
      %v711 = vadd.f32 0.0, %v710
      %v712 = vpop.f32.mrb[0].mxu0
      %713 = vmatprep.mubr.bf16.mxu0 0
      %714 = vmatmul.mubr.bf16.gmra.mrb[0].mxu0 %v494
      %v715 = vpop.f32.mrb[0].mxu0
      %v716 = vadd.f32 0.0, %v715
      %v717 = vpop.f32.mrb[0].mxu0
      %v718 = vpop.f32.mrb[0].mxu0
      %v719 = vadd.f32 0.0, %v718
      %v720 = vpop.f32.mrb[0].mxu0
      %721 = vmatprep.mubr.bf16.mxu0 0
      %722 = vmatmul.mubr.bf16.gmra.mrb[0].mxu0 %v497
      %v723 = vpop.f32.mrb[0].mxu0
      %v724 = vadd.f32 0.0, %v723
      %v725 = vpop.f32.mrb[0].mxu0
      %v726 = vpop.f32.mrb[0].mxu0
      %v727 = vadd.f32 0.0, %v726
      %v728 = vpop.f32.mrb[0].mxu0
      %729 = vmatprep.mubr.bf16.mxu0 0
      %730 = vmatmul.mubr.bf16.gmra.mrb[0].mxu0 %v500
      %v731 = vpop.f32.mrb[0].mxu0
      %v732 = vadd.f32 0.0, %v731
      %v733 = vpop.f32.mrb[0].mxu0
      %v734 = vpop.f32.mrb[0].mxu0
      %v735 = vadd.f32 0.0, %v734
      %v736 = vpop.f32.mrb[0].mxu0
      %737 = vmatprep.mubr.bf16.mxu0 0
      %738 = vmatmul.mubr.bf16.gmra.mrb[0].mxu0 %v503
      %v739 = vpop.f32.mrb[0].mxu0
      %v740 = vadd.f32 0.0, %v739
      %v741 = vpop.f32.mrb[0].mxu0
      %v742 = vpop.f32.mrb[0].mxu0
      %v743 = vadd.f32 0.0, %v742
      %v744 = vpop.f32.mrb[0].mxu0
      %745 = vmatprep.mubr.bf16.mxu0 0
      %746 = vmatmul.mubr.bf16.gmra.mrb[0].mxu0 %v506
      %v747 = vpop.f32.mrb[0].mxu0
      %v748 = vadd.f32 0.0, %v747
      %v749 = vpop.f32.mrb[0].mxu0
      %v750 = vpop.f32.mrb[0].mxu0
      %v751 = vadd.f32 0.0, %v750
      %v752 = vpop.f32.mrb[0].mxu0
      %753 = vmatprep.mubr.bf16.mxu0 0
      %754 = vmatmul.mubr.bf16.gmra.mrb[0].mxu0 %v509
      %v755 = vpop.f32.mrb[0].mxu0
      %v756 = vadd.f32 0.0, %v755
      %v757 = vpop.f32.mrb[0].mxu0
      %v758 = vpop.f32.mrb[0].mxu0
      %v759 = vadd.f32 0.0, %v758
      %v760 = vpop.f32.mrb[0].mxu0
      %761 = vmatprep.mubr.bf16.mxu0 0
      %762 = vmatmul.mubr.bf16.gmra.mrb[0].mxu0 %v512
      %v763 = vpop.f32.mrb[0].mxu0
      %v764 = vadd.f32 0.0, %v763
      %v765 = vpop.f32.mrb[0].mxu0
      %v766 = vpop.f32.mrb[0].mxu0
      %v767 = vadd.f32 0.0, %v766
      %v768 = vpop.f32.mrb[0].mxu0
      %769 = vmatprep.mubr.bf16.mxu0 0
      %770 = vmatmul.mubr.bf16.gmra.mrb[0].mxu0 %v515
      %v771 = vpop.f32.mrb[0].mxu0
      %v772 = vadd.f32 0.0, %v771
      %v773 = vpop.f32.mrb[0].mxu0
      %v774 = vpop.f32.mrb[0].mxu0
      %v775 = vadd.f32 0.0, %v774
      %v776 = vpop.f32.mrb[0].mxu0
      %777 = vmatprep.mubr.bf16.mxu0 0
      %778 = vmatmul.mubr.bf16.gmra.mrb[0].mxu0 %v518
      %v779 = vpop.f32.mrb[0].mxu0
      %v780 = vadd.f32 0.0, %v779
      %v781 = vpop.f32.mrb[0].mxu0
      %v782 = vpop.f32.mrb[0].mxu0
      %v783 = vadd.f32 0.0, %v782
      %v784 = vpop.f32.mrb[0].mxu0
      %785 = vmatprep.mubr.bf16.mxu0 0
      %786 = vmatmul.mubr.bf16.gmra.mrb[0].mxu0 %v521
      %v787 = vpop.f32.mrb[0].mxu0
      %v788 = vadd.f32 0.0, %v787
      %v789 = vpop.f32.mrb[0].mxu0
      %v790 = vpop.f32.mrb[0].mxu0
      %v791 = vadd.f32 0.0, %v790
      %v792 = vpop.f32.mrb[0].mxu0
      %793 = vmatprep.mubr.bf16.mxu0 0
      %794 = vmatmul.mubr.bf16.gmra.mrb[0].mxu0 %v524
      %v795 = vpop.f32.mrb[0].mxu0
      %v796 = vadd.f32 0.0, %v795
      %v797 = vpop.f32.mrb[0].mxu0
      %v798 = vpop.f32.mrb[0].mxu0
      %v799 = vadd.f32 0.0, %v798
      %v800 = vpop.f32.mrb[0].mxu0
      %801 = vmatprep.mubr.bf16.mxu0 0
      %802 = vmatmul.mubr.bf16.gmra.mrb[0].mxu0 %v527
      %v803 = vpop.f32.mrb[0].mxu0
      %v804 = vadd.f32 0.0, %v803
      %v805 = vpop.f32.mrb[0].mxu0
      %v806 = vpop.f32.mrb[0].mxu0
      %v807 = vadd.f32 0.0, %v806
      %v808 = vpop.f32.mrb[0].mxu0
      %809 = vmatprep.mubr.bf16.mxu0 0
      %810 = vmatmul.mubr.bf16.gmra.mrb[0].mxu0 %v530
      %v811 = vpop.f32.mrb[0].mxu0
      %v812 = vadd.f32 0.0, %v811
      %v813 = vpop.f32.mrb[0].mxu0
      %v814 = vpop.f32.mrb[0].mxu0
      %v815 = vadd.f32 0.0, %v814
      %v816 = vpop.f32.mrb[0].mxu0
      %817 = vmatprep.mubr.bf16.mxu0 0
      %818 = vmatmul.mubr.bf16.gmra.mrb[0].mxu0 %v533
      %v819 = vpop.f32.mrb[0].mxu0
      %v820 = vadd.f32 0.0, %v819
      %v821 = vpop.f32.mrb[0].mxu0
      %v822 = vpop.f32.mrb[0].mxu0
      %v823 = vadd.f32 0.0, %v822
      %v824 = vpop.f32.mrb[0].mxu0
      %825 = vmatprep.mubr.bf16.mxu0 0
      %826 = vmatmul.mubr.bf16.gmra.mrb[0].mxu0 %v536
      %v827 = vpop.f32.mrb[0].mxu0
      %v828 = vadd.f32 0.0, %v827
      %v829 = vpop.f32.mrb[0].mxu0
      %v830 = vpop.f32.mrb[0].mxu0
      %v831 = vadd.f32 0.0, %v830
      %v832 = vpop.f32.mrb[0].mxu0
      %833 = vdwg.mxu0
      %v834 = vld [vmem:[%s2] sm:$0x1]
      %v836 = vlaneseq
      %v837 = vshrl.u32 %v836, 7
      %v838 = vsub.s32 0, %v837
      %v839 = vrot.slane %v834, %v838
      %v841 = vmul.f32 %v580, %v839
      %v842 = vmul.f32 %v583, %v839
      %v843 = vmul.f32 %v588, %v839
      %v844 = vmul.f32 %v591, %v839
      %v845 = vmul.f32 %v596, %v839
      %v846 = vmul.f32 %v599, %v839
      %v847 = vmul.f32 %v604, %v839
      %v848 = vmul.f32 %v607, %v839
      %v849 = vmul.f32 %v612, %v839
      %v850 = vmul.f32 %v615, %v839
      %v851 = vmul.f32 %v620, %v839
      %v852 = vmul.f32 %v623, %v839
      %v853 = vmul.f32 %v628, %v839
      %v854 = vmul.f32 %v631, %v839
      %v855 = vmul.f32 %v636, %v839
      %v856 = vmul.f32 %v639, %v839
      %v857 = vmul.f32 %v644, %v839
      %v858 = vmul.f32 %v647, %v839
      %v859 = vmul.f32 %v652, %v839
      %v860 = vmul.f32 %v655, %v839
      %v861 = vmul.f32 %v660, %v839
      %v862 = vmul.f32 %v663, %v839
      %v863 = vmul.f32 %v668, %v839
      %v864 = vmul.f32 %v671, %v839
      %v865 = vmul.f32 %v676, %v839
      %v866 = vmul.f32 %v679, %v839
      %v867 = vmul.f32 %v684, %v839
      %v868 = vmul.f32 %v687, %v839
      %v869 = vmul.f32 %v692, %v839
      %v870 = vmul.f32 %v695, %v839
      %v871 = vmul.f32 %v700, %v839
      %v872 = vmul.f32 %v703, %v839
      %v873 = vmul.f32 %v708, %v839
      %v874 = vmul.f32 %v711, %v839
      %v875 = vmul.f32 %v716, %v839
      %v876 = vmul.f32 %v719, %v839
      %v877 = vmul.f32 %v724, %v839
      %v878 = vmul.f32 %v727, %v839
      %v879 = vmul.f32 %v732, %v839
      %v880 = vmul.f32 %v735, %v839
      %v881 = vmul.f32 %v740, %v839
      %v882 = vmul.f32 %v743, %v839
      %v883 = vmul.f32 %v748, %v839
      %v884 = vmul.f32 %v751, %v839
      %v885 = vmul.f32 %v756, %v839
      %v886 = vmul.f32 %v759, %v839
      %v887 = vmul.f32 %v764, %v839
      %v888 = vmul.f32 %v767, %v839
      %v889 = vmul.f32 %v772, %v839
      %v890 = vmul.f32 %v775, %v839
      %v891 = vmul.f32 %v780, %v839
      %v892 = vmul.f32 %v783, %v839
      %v893 = vmul.f32 %v788, %v839
      %v894 = vmul.f32 %v791, %v839
      %v895 = vmul.f32 %v796, %v839
      %v896 = vmul.f32 %v799, %v839
      %v897 = vmul.f32 %v804, %v839
      %v898 = vmul.f32 %v807, %v839
      %v899 = vmul.f32 %v812, %v839
      %v900 = vmul.f32 %v815, %v839
      %v901 = vmul.f32 %v820, %v839
      %v902 = vmul.f32 %v823, %v839
      %v903 = vmul.f32 %v828, %v839
      %v904 = vmul.f32 %v831, %v839
      %v905 = vld [vmem:[%s3] sm:$0x1]
      %v907 = vlaneseq
      %v908 = vshrl.u32 %v907, 7
      %v909 = vsub.s32 0, %v908
      %v910 = vrot.slane %v905, %v909
      %v912 = vadd.f32 %v841, %v910
      %v913 = vadd.f32 %v842, %v910
      %v914 = vadd.f32 %v843, %v910
      %v915 = vadd.f32 %v844, %v910
      %v916 = vadd.f32 %v845, %v910
      %v917 = vadd.f32 %v846, %v910
      %v918 = vadd.f32 %v847, %v910
      %v919 = vadd.f32 %v848, %v910
      %v920 = vadd.f32 %v849, %v910
      %v921 = vadd.f32 %v850, %v910
      %v922 = vadd.f32 %v851, %v910
      %v923 = vadd.f32 %v852, %v910
      %v924 = vadd.f32 %v853, %v910
      %v925 = vadd.f32 %v854, %v910
      %v926 = vadd.f32 %v855, %v910
      %v927 = vadd.f32 %v856, %v910
      %v928 = vadd.f32 %v857, %v910
      %v929 = vadd.f32 %v858, %v910
      %v930 = vadd.f32 %v859, %v910
      %v931 = vadd.f32 %v860, %v910
      %v932 = vadd.f32 %v861, %v910
      %v933 = vadd.f32 %v862, %v910
      %v934 = vadd.f32 %v863, %v910
      %v935 = vadd.f32 %v864, %v910
      %v936 = vadd.f32 %v865, %v910
      %v937 = vadd.f32 %v866, %v910
      %v938 = vadd.f32 %v867, %v910
      %v939 = vadd.f32 %v868, %v910
      %v940 = vadd.f32 %v869, %v910
      %v941 = vadd.f32 %v870, %v910
      %v942 = vadd.f32 %v871, %v910
      %v943 = vadd.f32 %v872, %v910
      %v944 = vadd.f32 %v873, %v910
      %v945 = vadd.f32 %v874, %v910
      %v946 = vadd.f32 %v875, %v910
      %v947 = vadd.f32 %v876, %v910
      %v948 = vadd.f32 %v877, %v910
      %v949 = vadd.f32 %v878, %v910
      %v950 = vadd.f32 %v879, %v910
      %v951 = vadd.f32 %v880, %v910
      %v952 = vadd.f32 %v881, %v910
      %v953 = vadd.f32 %v882, %v910
      %v954 = vadd.f32 %v883, %v910
      %v955 = vadd.f32 %v884, %v910
      %v956 = vadd.f32 %v885, %v910
      %v957 = vadd.f32 %v886, %v910
      %v958 = vadd.f32 %v887, %v910
      %v959 = vadd.f32 %v888, %v910
      %v960 = vadd.f32 %v889, %v910
      %v961 = vadd.f32 %v890, %v910
      %v962 = vadd.f32 %v891, %v910
      %v963 = vadd.f32 %v892, %v910
      %v964 = vadd.f32 %v893, %v910
      %v965 = vadd.f32 %v894, %v910
      %v966 = vadd.f32 %v895, %v910
      %v967 = vadd.f32 %v896, %v910
      %v968 = vadd.f32 %v897, %v910
      %v969 = vadd.f32 %v898, %v910
      %v970 = vadd.f32 %v899, %v910
      %v971 = vadd.f32 %v900, %v910
      %v972 = vadd.f32 %v901, %v910
      %v973 = vadd.f32 %v902, %v910
      %v974 = vadd.f32 %v903, %v910
      %v975 = vadd.f32 %v904, %v910
      %vm976 = vcmask 523264
      %977 = vst.msk [vmem:[%s199] sm:$0xff] %vm976, %v912
      %978 = vst.msk [vmem:[%s199 + $0x8] sm:$0xff] %vm976, %v913
      %979 = vst.msk [vmem:[%s199 + $0x10] sm:$0xff] %vm976, %v914
      %980 = vst.msk [vmem:[%s199 + $0x18] sm:$0xff] %vm976, %v915
      %981 = vst.msk [vmem:[%s199 + $0x20] sm:$0xff] %vm976, %v916
      %982 = vst.msk [vmem:[%s199 + $0x28] sm:$0xff] %vm976, %v917
      %983 = vst.msk [vmem:[%s199 + $0x30] sm:$0xff] %vm976, %v918
      %984 = vst.msk [vmem:[%s199 + $0x38] sm:$0xff] %vm976, %v919
      %985 = vst.msk [vmem:[%s199 + $0x40] sm:$0xff] %vm976, %v920
      %986 = vst.msk [vmem:[%s199 + $0x48] sm:$0xff] %vm976, %v921
      %987 = vst.msk [vmem:[%s199 + $0x50] sm:$0xff] %vm976, %v922
      %988 = vst.msk [vmem:[%s199 + $0x58] sm:$0xff] %vm976, %v923
      %989 = vst.msk [vmem:[%s199 + $0x60] sm:$0xff] %vm976, %v924
      %990 = vst.msk [vmem:[%s199 + $0x68] sm:$0xff] %vm976, %v925
      %991 = vst.msk [vmem:[%s199 + $0x70] sm:$0xff] %vm976, %v926
      %992 = vst.msk [vmem:[%s199 + $0x78] sm:$0xff] %vm976, %v927
      %993 = vst.msk [vmem:[%s199 + $0x80] sm:$0xff] %vm976, %v928
      %994 = vst.msk [vmem:[%s199 + $0x88] sm:$0xff] %vm976, %v929
      %995 = vst.msk [vmem:[%s199 + $0x90] sm:$0xff] %vm976, %v930
      %996 = vst.msk [vmem:[%s199 + $0x98] sm:$0xff] %vm976, %v931
      %997 = vst.msk [vmem:[%s199 + $0xa0] sm:$0xff] %vm976, %v932
      %998 = vst.msk [vmem:[%s199 + $0xa8] sm:$0xff] %vm976, %v933
      %999 = vst.msk [vmem:[%s199 + $0xb0] sm:$0xff] %vm976, %v934
      %1000 = vst.msk [vmem:[%s199 + $0xb8] sm:$0xff] %vm976, %v935
      %1001 = vst.msk [vmem:[%s199 + $0xc0] sm:$0xff] %vm976, %v936
      %1002 = vst.msk [vmem:[%s199 + $0xc8] sm:$0xff] %vm976, %v937
      %1003 = vst.msk [vmem:[%s199 + $0xd0] sm:$0xff] %vm976, %v938
      %1004 = vst.msk [vmem:[%s199 + $0xd8] sm:$0xff] %vm976, %v939
      %1005 = vst.msk [vmem:[%s199 + $0xe0] sm:$0xff] %vm976, %v940
      %1006 = vst.msk [vmem:[%s199 + $0xe8] sm:$0xff] %vm976, %v941
      %1007 = vst.msk [vmem:[%s199 + $0xf0] sm:$0xff] %vm976, %v942
      %1008 = vst.msk [vmem:[%s199 + $0xf8] sm:$0xff] %vm976, %v943
      %1009 = vst.msk [vmem:[%s199 + $0x100] sm:$0xff] %vm976, %v944
      %1010 = vst.msk [vmem:[%s199 + $0x108] sm:$0xff] %vm976, %v945
      %1011 = vst.msk [vmem:[%s199 + $0x110] sm:$0xff] %vm976, %v946
      %1012 = vst.msk [vmem:[%s199 + $0x118] sm:$0xff] %vm976, %v947
      %1013 = vst.msk [vmem:[%s199 + $0x120] sm:$0xff] %vm976, %v948
      %1014 = vst.msk [vmem:[%s199 + $0x128] sm:$0xff] %vm976, %v949
      %1015 = vst.msk [vmem:[%s199 + $0x130] sm:$0xff] %vm976, %v950
      %1016 = vst.msk [vmem:[%s199 + $0x138] sm:$0xff] %vm976, %v951
      %1017 = vst.msk [vmem:[%s199 + $0x140] sm:$0xff] %vm976, %v952
      %1018 = vst.msk [vmem:[%s199 + $0x148] sm:$0xff] %vm976, %v953
      %1019 = vst.msk [vmem:[%s199 + $0x150] sm:$0xff] %vm976, %v954
      %1020 = vst.msk [vmem:[%s199 + $0x158] sm:$0xff] %vm976, %v955
      %1021 = vst.msk [vmem:[%s199 + $0x160] sm:$0xff] %vm976, %v956
      %1022 = vst.msk [vmem:[%s199 + $0x168] sm:$0xff] %vm976, %v957
      %1023 = vst.msk [vmem:[%s199 + $0x170] sm:$0xff] %vm976, %v958
      %1024 = vst.msk [vmem:[%s199 + $0x178] sm:$0xff] %vm976, %v959
      %1025 = vst.msk [vmem:[%s199 + $0x180] sm:$0xff] %vm976, %v960
      %1026 = vst.msk [vmem:[%s199 + $0x188] sm:$0xff] %vm976, %v961
      %1027 = vst.msk [vmem:[%s199 + $0x190] sm:$0xff] %vm976, %v962
      %1028 = vst.msk [vmem:[%s199 + $0x198] sm:$0xff] %vm976, %v963
      %1029 = vst.msk [vmem:[%s199 + $0x1a0] sm:$0xff] %vm976, %v964
      %1030 = vst.msk [vmem:[%s199 + $0x1a8] sm:$0xff] %vm976, %v965
      %1031 = vst.msk [vmem:[%s199 + $0x1b0] sm:$0xff] %vm976, %v966
      %1032 = vst.msk [vmem:[%s199 + $0x1b8] sm:$0xff] %vm976, %v967
      %1033 = vst.msk [vmem:[%s199 + $0x1c0] sm:$0xff] %vm976, %v968
      %1034 = vst.msk [vmem:[%s199 + $0x1c8] sm:$0xff] %vm976, %v969
      %1035 = vst.msk [vmem:[%s199 + $0x1d0] sm:$0xff] %vm976, %v970
      %1036 = vst.msk [vmem:[%s199 + $0x1d8] sm:$0xff] %vm976, %v971
      %1037 = vst.msk [vmem:[%s199 + $0x1e0] sm:$0xff] %vm976, %v972
      %1038 = vst.msk [vmem:[%s199 + $0x1e8] sm:$0xff] %vm976, %v973
      %1039 = vst.msk [vmem:[%s199 + $0x1f0] sm:$0xff] %vm976, %v974
      %1040 = vst.msk [vmem:[%s199 + $0x1f8] sm:$0xff] %vm976, %v975
      %s1041 = smul.u32 64, %s15
      %p1042 = scmp.lt.s32.totalorder %s1041, 191
      %s1043 = scalar_select %p1042, %s1041, 191
      %s1044 = smul.addr %s1043, 8
      %s1045 = scalar_lea.vmem %s4, %s1044
      // Predicated region
      $region37: #{dda_forward.5} parent=35 // pred_check
        %p1046 = pneg %p122
      $region38: #{dda_forward.5} parent=35 // pred_check_branch
        %1048 = sbr.rel (%p1046) target = $region40
      $region39: #{dda_forward.5} parent=35 // pred_region
        %s1049 = smul.u32 64, %s15
      $region40: #{dda_forward.5} parent=35 // pred_fallthru
        _
    $region36: #{dda_forward.5} parent=5 // pred_fallthru
      _
    %p1050 = scmp.le.s32.totalorder 2, %s10
    // Predicated region
    $region41: #{dda_forward.5} parent=5 // pred_check
      %p1051 = pneg %p1050
    $region42: #{dda_forward.5} parent=5 // pred_check_branch
      %1053 = sbr.rel (%p1051) target = $region44
    $region43: #{dda_forward.5} parent=5 // pred_region
      %s1054 = ssub.s32 %s10, 2
      // Predicated region
      $region45: #{dda_forward.5} parent=43 // pred_check
        %p1055 = pneg %p128
      $region46: #{dda_forward.5} parent=43 // pred_check_branch
        %1057 = sbr.rel (%p1055) target = $region48
      $region47: #{dda_forward.5} parent=43 // pred_region
        %s1058 = smul.u32 64, %s16
        %p1059 = scmp.lt.s32.totalorder %s1058, 191
        %s1060 = scalar_select %p1059, %s1058, 191
        %s1061 = smul.addr %s1060, 8
        %s1062 = scalar_lea.vmem %s4, %s1061
      $region48: #{dda_forward.5} parent=43 // pred_fallthru
        _
    $region44: #{dda_forward.5} parent=5 // pred_fallthru
      _
  $region6: #{dda_forward.5} parent=0 // loop_footer
    %s14 = sadd.s32 1, %s10
  $region7: #{dda_forward.5} parent=0 // loop_footer_branch
    %9 = sbr.rel target = $region3
  $region8: #{dda_forward.5} parent=0 // loop_exit
    _

// kernel: dda_forward.8
$region0: #{dda_forward.8}
  #allocation0 [shape = 'u32[]', space=smem, size = 0x4, offset = 0x4, fixed_abs, tag = 'smem constant byte address 0x4 - core index']
  #allocation1 [shape = 'u32[144,128]{1,0:T(1,128)}', space=vmem, size = 0x12000, scoped, tag = 'internal scratch']
  %s0 = inlined_call_operand.vmem [shape: f32[4,8,200], index: 0, kind: input, shape index: {}]
  %s1 = inlined_call_operand.vmem [shape: f32[8,200], index: 1, kind: output, shape index: {}]
  %s2 = sld [smem:[#allocation0]]
  $region14: #{dda_forward.8} parent=0
    _
  %s4 = ssub.s32 1, %s2
  %s5 = scalar_select 0, %s4, %s2
  // Predicated region
  $region2: #{dda_forward.8} parent=0 // pred_check
    _
  $region3: #{dda_forward.8} parent=0 // pred_check_branch
    %7 = sbr.rel (0) target = $region5
  $region4: #{dda_forward.8} parent=0 // pred_region
    _
  $region5: #{dda_forward.8} parent=0 // pred_fallthru
    _
  %v8 = vld [vmem:[%s0] sm:$0xff]
  %v9 = vld [vmem:[%s0 + $0x8] sm:$0xff]
  %s10 = scalar_lea.vmem %s0, 16
  %v11 = vld [vmem:[%s10] sm:$0xff]
  %v12 = vld [vmem:[%s10 + $0x8] sm:$0xff]
  %v13 = vmax.f32 %v8, %v11
  %v14 = vmax.f32 %v9, %v12
  %s15 = scalar_lea.vmem %s0, 32
  %v16 = vld [vmem:[%s15] sm:$0xff]
  %v17 = vld [vmem:[%s15 + $0x8] sm:$0xff]
  %s18 = scalar_lea.vmem %s0, 48
  %v19 = vld [vmem:[%s18] sm:$0xff]
  %v20 = vld [vmem:[%s18 + $0x8] sm:$0xff]
  %v21 = vmax.f32 %v16, %v19
  %v22 = vmax.f32 %v17, %v20
  %v23 = vmax.f32 %v13, %v21
  %v24 = vmax.f32 %v14, %v22
  %v25 = vmax.f32 %v23, 0.0
  %v26 = vmax.f32 %v24, 0.0
  %27 = vst [vmem:[%s1] sm:$0xff] %v25
  %vm28 = vcmask 588800
  %29 = vst.msk [vmem:[%s1 + $0x8] sm:$0xff] %vm28, %v26
  // Predicated region
  $region6: #{dda_forward.8} parent=0 // pred_check
    _
  $region7: #{dda_forward.8} parent=0 // pred_check_branch
    %31 = sbr.rel (0) target = $region9
  $region8: #{dda_forward.8} parent=0 // pred_region
    _
  $region9: #{dda_forward.8} parent=0 // pred_fallthru
    _
  // Predicated region
  $region10: #{dda_forward.8} parent=0 // pred_check
    _
  $region11: #{dda_forward.8} parent=0 // pred_check_branch
    %33 = sbr.rel (0) target = $region13
  $region12: #{dda_forward.8} parent=0 // pred_region
    _
  $region13: #{dda_forward.8} parent=0 // pred_fallthru
    _

// kernel: dda_forward.7
$region0: #{dda_forward.7}
  #allocation0 [shape = 'u32[]', space=smem, size = 0x4, offset = 0x4, fixed_abs, tag = 'smem constant byte address 0x4 - core index']
  #allocation1 [shape = 'u32[144,128]{1,0:T(1,128)}', space=vmem, size = 0x12000, scoped, tag = 'internal scratch']
  %s0 = inlined_call_operand.vmem [shape: bf16[128,1600], index: 0, kind: input, shape index: {}]
  %s1 = inlined_call_operand.vmem [shape: bf16[1600,50], index: 1, kind: input, shape index: {}]
  %s2 = inlined_call_operand.vmem [shape: f32[1,50], index: 2, kind: input, shape index: {}]
  %s3 = inlined_call_operand.vmem [shape: f32[1,50], index: 3, kind: input, shape index: {}]
  %s4 = inlined_call_operand.vmem [shape: f32[128,50], index: 4, kind: output, shape index: {}]
  %s5 = sld [smem:[#allocation0]]
  $region26: #{dda_forward.7} parent=0
    _
  %s7 = ssub.s32 1, %s5
  %s8 = scalar_select 0, %s7, %s5
  // Predicated region
  $region2: #{dda_forward.7} parent=0 // pred_check
    _
  $region3: #{dda_forward.7} parent=0 // pred_check_branch
    %10 = sbr.rel (0) target = $region5
  $region4: #{dda_forward.7} parent=0 // pred_region
    _
  $region5: #{dda_forward.7} parent=0 // pred_fallthru
    _
  // Predicated region
  $region6: #{dda_forward.7} parent=0 // pred_check
    _
  $region7: #{dda_forward.7} parent=0 // pred_check_branch
    %12 = sbr.rel (0) target = $region9
  $region8: #{dda_forward.7} parent=0 // pred_region
    _
  $region9: #{dda_forward.7} parent=0 // pred_fallthru
    _
  // Predicated region
  $region10: #{dda_forward.7} parent=0 // pred_check
    _
  $region11: #{dda_forward.7} parent=0 // pred_check_branch
    %14 = sbr.rel (0) target = $region13
  $region12: #{dda_forward.7} parent=0 // pred_region
    _
  $region13: #{dda_forward.7} parent=0 // pred_fallthru
    _
  // Predicated region
  $region14: #{dda_forward.7} parent=0 // pred_check
    _
  $region15: #{dda_forward.7} parent=0 // pred_check_branch
    %16 = sbr.rel (0) target = $region17
  $region16: #{dda_forward.7} parent=0 // pred_region
    _
  $region17: #{dda_forward.7} parent=0 // pred_fallthru
    _
  %v18 = vld [vmem:[%s0] sm:$0xff]
  %v19 = vld [vmem:[%s0 + $0x8] sm:$0xff]
  %v20 = vld [vmem:[%s0 + $0x10] sm:$0xff]
  %v21 = vld [vmem:[%s0 + $0x18] sm:$0xff]
  %v22 = vld [vmem:[%s0 + $0x20] sm:$0xff]
  %v23 = vld [vmem:[%s0 + $0x28] sm:$0xff]
  %v24 = vld [vmem:[%s0 + $0x30] sm:$0xf]
  %v25 = vld [vmem:[%s0 + $0x34] sm:$0xff]
  %v26 = vld [vmem:[%s0 + $0x3c] sm:$0xff]
  %v27 = vld [vmem:[%s0 + $0x44] sm:$0xff]
  %v28 = vld [vmem:[%s0 + $0x4c] sm:$0xff]
  %v29 = vld [vmem:[%s0 + $0x54] sm:$0xff]
  %v30 = vld [vmem:[%s0 + $0x5c] sm:$0xff]
  %v31 = vld [vmem:[%s0 + $0x64] sm:$0xf]
  %v32 = vld [vmem:[%s0 + $0x68] sm:$0xff]
  %v33 = vld [vmem:[%s0 + $0x70] sm:$0xff]
  %v34 = vld [vmem:[%s0 + $0x78] sm:$0xff]
  %v35 = vld [vmem:[%s0 + $0x80] sm:$0xff]
  %v36 = vld [vmem:[%s0 + $0x88] sm:$0xff]
  %v37 = vld [vmem:[%s0 + $0x90] sm:$0xff]
  %v38 = vld [vmem:[%s0 + $0x98] sm:$0xf]
  %v39 = vld [vmem:[%s0 + $0x9c] sm:$0xff]
  %v40 = vld [vmem:[%s0 + $0xa4] sm:$0xff]
  %v41 = vld [vmem:[%s0 + $0xac] sm:$0xff]
  %v42 = vld [vmem:[%s0 + $0xb4] sm:$0xff]
  %v43 = vld [vmem:[%s0 + $0xbc] sm:$0xff]
  %v44 = vld [vmem:[%s0 + $0xc4] sm:$0xff]
  %v45 = vld [vmem:[%s0 + $0xcc] sm:$0xf]
  %v46 = vld [vmem:[%s0 + $0xd0] sm:$0xff]
  %v47 = vld [vmem:[%s0 + $0xd8] sm:$0xff]
  %v48 = vld [vmem:[%s0 + $0xe0] sm:$0xff]
  %v49 = vld [vmem:[%s0 + $0xe8] sm:$0xff]
  %v50 = vld [vmem:[%s0 + $0xf0] sm:$0xff]
  %v51 = vld [vmem:[%s0 + $0xf8] sm:$0xff]
  %v52 = vld [vmem:[%s0 + $0x100] sm:$0xf]
  %v53 = vld [vmem:[%s0 + $0x104] sm:$0xff]
  %v54 = vld [vmem:[%s0 + $0x10c] sm:$0xff]
  %v55 = vld [vmem:[%s0 + $0x114] sm:$0xff]
  %v56 = vld [vmem:[%s0 + $0x11c] sm:$0xff]
  %v57 = vld [vmem:[%s0 + $0x124] sm:$0xff]
  %v58 = vld [vmem:[%s0 + $0x12c] sm:$0xff]
  %v59 = vld [vmem:[%s0 + $0x134] sm:$0xf]
  %v60 = vld [vmem:[%s0 + $0x138] sm:$0xff]
  %v61 = vld [vmem:[%s0 + $0x140] sm:$0xff]
  %v62 = vld [vmem:[%s0 + $0x148] sm:$0xff]
  %v63 = vld [vmem:[%s0 + $0x150] sm:$0xff]
  %v64 = vld [vmem:[%s0 + $0x158] sm:$0xff]
  %v65 = vld [vmem:[%s0 + $0x160] sm:$0xff]
  %v66 = vld [vmem:[%s0 + $0x168] sm:$0xf]
  %v67 = vld [vmem:[%s0 + $0x16c] sm:$0xff]
  %v68 = vld [vmem:[%s0 + $0x174] sm:$0xff]
  %v69 = vld [vmem:[%s0 + $0x17c] sm:$0xff]
  %v70 = vld [vmem:[%s0 + $0x184] sm:$0xff]
  %v71 = vld [vmem:[%s0 + $0x18c] sm:$0xff]
  %v72 = vld [vmem:[%s0 + $0x194] sm:$0xff]
  %v73 = vld [vmem:[%s0 + $0x19c] sm:$0xf]
  %v74 = vld [vmem:[%s0 + $0x1a0] sm:$0xff]
  %v75 = vld [vmem:[%s0 + $0x1a8] sm:$0xff]
  %v76 = vld [vmem:[%s0 + $0x1b0] sm:$0xff]
  %v77 = vld [vmem:[%s0 + $0x1b8] sm:$0xff]
  %v78 = vld [vmem:[%s0 + $0x1c0] sm:$0xff]
  %v79 = vld [vmem:[%s0 + $0x1c8] sm:$0xff]
  %v80 = vld [vmem:[%s0 + $0x1d0] sm:$0xf]
  %v81 = vld [vmem:[%s0 + $0x1d4] sm:$0xff]
  %v82 = vld [vmem:[%s0 + $0x1dc] sm:$0xff]
  %v83 = vld [vmem:[%s0 + $0x1e4] sm:$0xff]
  %v84 = vld [vmem:[%s0 + $0x1ec] sm:$0xff]
  %v85 = vld [vmem:[%s0 + $0x1f4] sm:$0xff]
  %v86 = vld [vmem:[%s0 + $0x1fc] sm:$0xff]
  %v87 = vld [vmem:[%s0 + $0x204] sm:$0xf]
  %v88 = vld [vmem:[%s0 + $0x208] sm:$0xff]
  %v89 = vld [vmem:[%s0 + $0x210] sm:$0xff]
  %v90 = vld [vmem:[%s0 + $0x218] sm:$0xff]
  %v91 = vld [vmem:[%s0 + $0x220] sm:$0xff]
  %v92 = vld [vmem:[%s0 + $0x228] sm:$0xff]
  %v93 = vld [vmem:[%s0 + $0x230] sm:$0xff]
  %v94 = vld [vmem:[%s0 + $0x238] sm:$0xf]
  %v95 = vld [vmem:[%s0 + $0x23c] sm:$0xff]
  %v96 = vld [vmem:[%s0 + $0x244] sm:$0xff]
  %v97 = vld [vmem:[%s0 + $0x24c] sm:$0xff]
  %v98 = vld [vmem:[%s0 + $0x254] sm:$0xff]
  %v99 = vld [vmem:[%s0 + $0x25c] sm:$0xff]
  %v100 = vld [vmem:[%s0 + $0x264] sm:$0xff]
  %v101 = vld [vmem:[%s0 + $0x26c] sm:$0xf]
  %v102 = vld [vmem:[%s0 + $0x270] sm:$0xff]
  %v103 = vld [vmem:[%s0 + $0x278] sm:$0xff]
  %v104 = vld [vmem:[%s0 + $0x280] sm:$0xff]
  %v105 = vld [vmem:[%s0 + $0x288] sm:$0xff]
  %v106 = vld [vmem:[%s0 + $0x290] sm:$0xff]
  %v107 = vld [vmem:[%s0 + $0x298] sm:$0xff]
  %v108 = vld [vmem:[%s0 + $0x2a0] sm:$0xf]
  %v109 = vld [vmem:[%s0 + $0x2a4] sm:$0xff]
  %v110 = vld [vmem:[%s0 + $0x2ac] sm:$0xff]
  %v111 = vld [vmem:[%s0 + $0x2b4] sm:$0xff]
  %v112 = vld [vmem:[%s0 + $0x2bc] sm:$0xff]
  %v113 = vld [vmem:[%s0 + $0x2c4] sm:$0xff]
  %v114 = vld [vmem:[%s0 + $0x2cc] sm:$0xff]
  %v115 = vld [vmem:[%s0 + $0x2d4] sm:$0xf]
  %v116 = vld [vmem:[%s0 + $0x2d8] sm:$0xff]
  %v117 = vld [vmem:[%s0 + $0x2e0] sm:$0xff]
  %v118 = vld [vmem:[%s0 + $0x2e8] sm:$0xff]
  %v119 = vld [vmem:[%s0 + $0x2f0] sm:$0xff]
  %v120 = vld [vmem:[%s0 + $0x2f8] sm:$0xff]
  %v121 = vld [vmem:[%s0 + $0x300] sm:$0xff]
  %v122 = vld [vmem:[%s0 + $0x308] sm:$0xf]
  %v123 = vld [vmem:[%s0 + $0x30c] sm:$0xff]
  %v124 = vld [vmem:[%s0 + $0x314] sm:$0xff]
  %v125 = vld [vmem:[%s0 + $0x31c] sm:$0xff]
  %v126 = vld [vmem:[%s0 + $0x324] sm:$0xff]
  %v127 = vld [vmem:[%s0 + $0x32c] sm:$0xff]
  %v128 = vld [vmem:[%s0 + $0x334] sm:$0xff]
  %v129 = vld [vmem:[%s0 + $0x33c] sm:$0xf]
  %v130 = vld [vmem:[%s1] sm:$0xf]
  %v131 = vld [vmem:[%s1 + $0x4] sm:$0xf]
  %v132 = vld [vmem:[%s1 + $0x8] sm:$0xf]
  %v133 = vld [vmem:[%s1 + $0xc] sm:$0xf]
  %v134 = vld [vmem:[%s1 + $0x10] sm:$0xf]
  %v135 = vld [vmem:[%s1 + $0x14] sm:$0xf]
  %v136 = vld [vmem:[%s1 + $0x18] sm:$0xf]
  %v137 = vld [vmem:[%s1 + $0x1c] sm:$0xf]
  %v138 = vld [vmem:[%s1 + $0x20] sm:$0xf]
  %v139 = vld [vmem:[%s1 + $0x24] sm:$0xf]
  %v140 = vld [vmem:[%s1 + $0x28] sm:$0xf]
  %v141 = vld [vmem:[%s1 + $0x2c] sm:$0xf]
  %v142 = vld [vmem:[%s1 + $0x30] sm:$0xf]
  %v143 = vld [vmem:[%s1 + $0x34] sm:$0xf]
  %v144 = vld [vmem:[%s1 + $0x38] sm:$0xf]
  %v145 = vld [vmem:[%s1 + $0x3c] sm:$0xf]
  %v146 = vld [vmem:[%s1 + $0x40] sm:$0xf]
  %v147 = vld [vmem:[%s1 + $0x44] sm:$0xf]
  %v148 = vld [vmem:[%s1 + $0x48] sm:$0xf]
  %v149 = vld [vmem:[%s1 + $0x4c] sm:$0xf]
  %v150 = vld [vmem:[%s1 + $0x50] sm:$0xf]
  %v151 = vld [vmem:[%s1 + $0x54] sm:$0xf]
  %v152 = vld [vmem:[%s1 + $0x58] sm:$0xf]
  %v153 = vld [vmem:[%s1 + $0x5c] sm:$0xf]
  %v154 = vld [vmem:[%s1 + $0x60] sm:$0xf]
  %v155 = vld [vmem:[%s1 + $0x64] sm:$0xf]
  %v156 = vld [vmem:[%s1 + $0x68] sm:$0xf]
  %v157 = vld [vmem:[%s1 + $0x6c] sm:$0xf]
  %v158 = vld [vmem:[%s1 + $0x70] sm:$0xf]
  %v159 = vld [vmem:[%s1 + $0x74] sm:$0xf]
  %v160 = vld [vmem:[%s1 + $0x78] sm:$0xf]
  %v161 = vld [vmem:[%s1 + $0x7c] sm:$0xf]
  %v162 = vld [vmem:[%s1 + $0x80] sm:$0xf]
  %v163 = vld [vmem:[%s1 + $0x84] sm:$0xf]
  %v164 = vld [vmem:[%s1 + $0x88] sm:$0xf]
  %v165 = vld [vmem:[%s1 + $0x8c] sm:$0xf]
  %v166 = vld [vmem:[%s1 + $0x90] sm:$0xf]
  %v167 = vld [vmem:[%s1 + $0x94] sm:$0xf]
  %v168 = vld [vmem:[%s1 + $0x98] sm:$0xf]
  %v169 = vld [vmem:[%s1 + $0x9c] sm:$0xf]
  %v170 = vld [vmem:[%s1 + $0xa0] sm:$0xf]
  %v171 = vld [vmem:[%s1 + $0xa4] sm:$0xf]
  %v172 = vld [vmem:[%s1 + $0xa8] sm:$0xf]
  %v173 = vld [vmem:[%s1 + $0xac] sm:$0xf]
  %v174 = vld [vmem:[%s1 + $0xb0] sm:$0xf]
  %v175 = vld [vmem:[%s1 + $0xb4] sm:$0xf]
  %v176 = vld [vmem:[%s1 + $0xb8] sm:$0xf]
  %v177 = vld [vmem:[%s1 + $0xbc] sm:$0xf]
  %v178 = vld [vmem:[%s1 + $0xc0] sm:$0xf]
  %v179 = vld [vmem:[%s1 + $0xc4] sm:$0xf]
  %v180 = vld [vmem:[%s1 + $0xc8] sm:$0xf]
  %v181 = vld [vmem:[%s1 + $0xcc] sm:$0xf]
  %v182 = vld [vmem:[%s1 + $0xd0] sm:$0xf]
  %v183 = vld [vmem:[%s1 + $0xd4] sm:$0xf]
  %v184 = vld [vmem:[%s1 + $0xd8] sm:$0xf]
  %v185 = vld [vmem:[%s1 + $0xdc] sm:$0xf]
  %v186 = vld [vmem:[%s1 + $0xe0] sm:$0xf]
  %v187 = vld [vmem:[%s1 + $0xe4] sm:$0xf]
  %v188 = vld [vmem:[%s1 + $0xe8] sm:$0xf]
  %v189 = vld [vmem:[%s1 + $0xec] sm:$0xf]
  %v190 = vld [vmem:[%s1 + $0xf0] sm:$0xf]
  %v191 = vld [vmem:[%s1 + $0xf4] sm:$0xf]
  %v192 = vld [vmem:[%s1 + $0xf8] sm:$0xf]
  %v193 = vld [vmem:[%s1 + $0xfc] sm:$0xf]
  %v194 = vld [vmem:[%s1 + $0x100] sm:$0xf]
  %v195 = vld [vmem:[%s1 + $0x104] sm:$0xf]
  %v196 = vld [vmem:[%s1 + $0x108] sm:$0xf]
  %v197 = vld [vmem:[%s1 + $0x10c] sm:$0xf]
  %v198 = vld [vmem:[%s1 + $0x110] sm:$0xf]
  %v199 = vld [vmem:[%s1 + $0x114] sm:$0xf]
  %v200 = vld [vmem:[%s1 + $0x118] sm:$0xf]
  %v201 = vld [vmem:[%s1 + $0x11c] sm:$0xf]
  %v202 = vld [vmem:[%s1 + $0x120] sm:$0xf]
  %v203 = vld [vmem:[%s1 + $0x124] sm:$0xf]
  %v204 = vld [vmem:[%s1 + $0x128] sm:$0xf]
  %v205 = vld [vmem:[%s1 + $0x12c] sm:$0xf]
  %v206 = vld [vmem:[%s1 + $0x130] sm:$0xf]
  %v207 = vld [vmem:[%s1 + $0x134] sm:$0xf]
  %v208 = vld [vmem:[%s1 + $0x138] sm:$0xf]
  %v209 = vld [vmem:[%s1 + $0x13c] sm:$0xf]
  %v210 = vld [vmem:[%s1 + $0x140] sm:$0xf]
  %v211 = vld [vmem:[%s1 + $0x144] sm:$0xf]
  %v212 = vld [vmem:[%s1 + $0x148] sm:$0xf]
  %v213 = vld [vmem:[%s1 + $0x14c] sm:$0xf]
  %v214 = vld [vmem:[%s1 + $0x150] sm:$0xf]
  %v215 = vld [vmem:[%s1 + $0x154] sm:$0xf]
  %v216 = vld [vmem:[%s1 + $0x158] sm:$0xf]
  %v217 = vld [vmem:[%s1 + $0x15c] sm:$0xf]
  %v218 = vld [vmem:[%s1 + $0x160] sm:$0xf]
  %v219 = vld [vmem:[%s1 + $0x164] sm:$0xf]
  %v220 = vld [vmem:[%s1 + $0x168] sm:$0xf]
  %v221 = vld [vmem:[%s1 + $0x16c] sm:$0xf]
  %v222 = vld [vmem:[%s1 + $0x170] sm:$0xf]
  %v223 = vld [vmem:[%s1 + $0x174] sm:$0xf]
  %v224 = vld [vmem:[%s1 + $0x178] sm:$0xf]
  %v225 = vld [vmem:[%s1 + $0x17c] sm:$0xf]
  %v226 = vld [vmem:[%s1 + $0x180] sm:$0xf]
  %v227 = vld [vmem:[%s1 + $0x184] sm:$0xf]
  %v228 = vld [vmem:[%s1 + $0x188] sm:$0xf]
  %v229 = vld [vmem:[%s1 + $0x18c] sm:$0xf]
  %v230 = vld [vmem:[%s1 + $0x190] sm:$0xf]
  %v231 = vld [vmem:[%s1 + $0x194] sm:$0xf]
  %v232 = vld [vmem:[%s1 + $0x198] sm:$0xf]
  %v233 = vld [vmem:[%s1 + $0x19c] sm:$0xf]
  %v234 = vld [vmem:[%s1 + $0x1a0] sm:$0xf]
  %v235 = vld [vmem:[%s1 + $0x1a4] sm:$0xf]
  %v236 = vld [vmem:[%s1 + $0x1a8] sm:$0xf]
  %v237 = vld [vmem:[%s1 + $0x1ac] sm:$0xf]
  %v238 = vld [vmem:[%s1 + $0x1b0] sm:$0xf]
  %v239 = vld [vmem:[%s1 + $0x1b4] sm:$0xf]
  %v240 = vld [vmem:[%s1 + $0x1b8] sm:$0xf]
  %v241 = vld [vmem:[%s1 + $0x1bc] sm:$0xf]
  %v242 = vld [vmem:[%s1 + $0x1c0] sm:$0xf]
  %v243 = vld [vmem:[%s1 + $0x1c4] sm:$0xf]
  %v244 = vld [vmem:[%s1 + $0x1c8] sm:$0xf]
  %v245 = vld [vmem:[%s1 + $0x1cc] sm:$0xf]
  %v246 = vld [vmem:[%s1 + $0x1d0] sm:$0xf]
  %v247 = vld [vmem:[%s1 + $0x1d4] sm:$0xf]
  %v248 = vld [vmem:[%s1 + $0x1d8] sm:$0xf]
  %v249 = vld [vmem:[%s1 + $0x1dc] sm:$0xf]
  %v250 = vld [vmem:[%s1 + $0x1e0] sm:$0xf]
  %v251 = vld [vmem:[%s1 + $0x1e4] sm:$0xf]
  %v252 = vld [vmem:[%s1 + $0x1e8] sm:$0xf]
  %v253 = vld [vmem:[%s1 + $0x1ec] sm:$0xf]
  %v254 = vld [vmem:[%s1 + $0x1f0] sm:$0xf]
  %v255 = vld [vmem:[%s1 + $0x1f4] sm:$0xf]
  %v256 = vld [vmem:[%s1 + $0x1f8] sm:$0xf]
  %v257 = vld [vmem:[%s1 + $0x1fc] sm:$0xf]
  %v258 = vld [vmem:[%s1 + $0x200] sm:$0xf]
  %v259 = vld [vmem:[%s1 + $0x204] sm:$0xf]
  %v260 = vld [vmem:[%s1 + $0x208] sm:$0xf]
  %v261 = vld [vmem:[%s1 + $0x20c] sm:$0xf]
  %v262 = vld [vmem:[%s1 + $0x210] sm:$0xf]
  %v263 = vld [vmem:[%s1 + $0x214] sm:$0xf]
  %v264 = vld [vmem:[%s1 + $0x218] sm:$0xf]
  %v265 = vld [vmem:[%s1 + $0x21c] sm:$0xf]
  %v266 = vld [vmem:[%s1 + $0x220] sm:$0xf]
  %v267 = vld [vmem:[%s1 + $0x224] sm:$0xf]
  %v268 = vld [vmem:[%s1 + $0x228] sm:$0xf]
  %v269 = vld [vmem:[%s1 + $0x22c] sm:$0xf]
  %v270 = vld [vmem:[%s1 + $0x230] sm:$0xf]
  %v271 = vld [vmem:[%s1 + $0x234] sm:$0xf]
  %v272 = vld [vmem:[%s1 + $0x238] sm:$0xf]
  %v273 = vld [vmem:[%s1 + $0x23c] sm:$0xf]
  %v274 = vld [vmem:[%s1 + $0x240] sm:$0xf]
  %v275 = vld [vmem:[%s1 + $0x244] sm:$0xf]
  %v276 = vld [vmem:[%s1 + $0x248] sm:$0xf]
  %v277 = vld [vmem:[%s1 + $0x24c] sm:$0xf]
  %v278 = vld [vmem:[%s1 + $0x250] sm:$0xf]
  %v279 = vld [vmem:[%s1 + $0x254] sm:$0xf]
  %v280 = vld [vmem:[%s1 + $0x258] sm:$0xf]
  %v281 = vld [vmem:[%s1 + $0x25c] sm:$0xf]
  %v282 = vld [vmem:[%s1 + $0x260] sm:$0xf]
  %v283 = vld [vmem:[%s1 + $0x264] sm:$0xf]
  %v284 = vld [vmem:[%s1 + $0x268] sm:$0xf]
  %v285 = vld [vmem:[%s1 + $0x26c] sm:$0xf]
  %v286 = vld [vmem:[%s1 + $0x270] sm:$0xf]
  %v287 = vld [vmem:[%s1 + $0x274] sm:$0xf]
  %v288 = vld [vmem:[%s1 + $0x278] sm:$0xf]
  %v289 = vld [vmem:[%s1 + $0x27c] sm:$0xf]
  %v290 = vld [vmem:[%s1 + $0x280] sm:$0xf]
  %v291 = vld [vmem:[%s1 + $0x284] sm:$0xf]
  %v292 = vld [vmem:[%s1 + $0x288] sm:$0xf]
  %v293 = vld [vmem:[%s1 + $0x28c] sm:$0xf]
  %v294 = vld [vmem:[%s1 + $0x290] sm:$0xf]
  %v295 = vld [vmem:[%s1 + $0x294] sm:$0xf]
  %v296 = vld [vmem:[%s1 + $0x298] sm:$0xf]
  %v297 = vld [vmem:[%s1 + $0x29c] sm:$0xf]
  %v298 = vld [vmem:[%s1 + $0x2a0] sm:$0xf]
  %v299 = vld [vmem:[%s1 + $0x2a4] sm:$0xf]
  %v300 = vld [vmem:[%s1 + $0x2a8] sm:$0xf]
  %v301 = vld [vmem:[%s1 + $0x2ac] sm:$0xf]
  %v302 = vld [vmem:[%s1 + $0x2b0] sm:$0xf]
  %v303 = vld [vmem:[%s1 + $0x2b4] sm:$0xf]
  %v304 = vld [vmem:[%s1 + $0x2b8] sm:$0xf]
  %v305 = vld [vmem:[%s1 + $0x2bc] sm:$0xf]
  %v306 = vld [vmem:[%s1 + $0x2c0] sm:$0xf]
  %v307 = vld [vmem:[%s1 + $0x2c4] sm:$0xf]
  %v308 = vld [vmem:[%s1 + $0x2c8] sm:$0xf]
  %v309 = vld [vmem:[%s1 + $0x2cc] sm:$0xf]
  %v310 = vld [vmem:[%s1 + $0x2d0] sm:$0xf]
  %v311 = vld [vmem:[%s1 + $0x2d4] sm:$0xf]
  %v312 = vld [vmem:[%s1 + $0x2d8] sm:$0xf]
  %v313 = vld [vmem:[%s1 + $0x2dc] sm:$0xf]
  %v314 = vld [vmem:[%s1 + $0x2e0] sm:$0xf]
  %v315 = vld [vmem:[%s1 + $0x2e4] sm:$0xf]
  %v316 = vld [vmem:[%s1 + $0x2e8] sm:$0xf]
  %v317 = vld [vmem:[%s1 + $0x2ec] sm:$0xf]
  %v318 = vld [vmem:[%s1 + $0x2f0] sm:$0xf]
  %v319 = vld [vmem:[%s1 + $0x2f4] sm:$0xf]
  %v320 = vld [vmem:[%s1 + $0x2f8] sm:$0xf]
  %v321 = vld [vmem:[%s1 + $0x2fc] sm:$0xf]
  %v322 = vld [vmem:[%s1 + $0x300] sm:$0xf]
  %v323 = vld [vmem:[%s1 + $0x304] sm:$0xf]
  %v324 = vld [vmem:[%s1 + $0x308] sm:$0xf]
  %v325 = vld [vmem:[%s1 + $0x30c] sm:$0xf]
  %v326 = vld [vmem:[%s1 + $0x310] sm:$0xf]
  %v327 = vld [vmem:[%s1 + $0x314] sm:$0xf]
  %v328 = vld [vmem:[%s1 + $0x318] sm:$0xf]
  %v329 = vld [vmem:[%s1 + $0x31c] sm:$0xf]
  %v442 = vunpack.c.l.b16 %v18
  %v443 = vunpack.c.h.b16 %v18
  %v444 = vunpack.c.l.b16 %v19
  %v445 = vunpack.c.h.b16 %v19
  %v446 = vunpack.c.l.b16 %v20
  %v447 = vunpack.c.h.b16 %v20
  %v448 = vunpack.c.l.b16 %v21
  %v449 = vunpack.c.h.b16 %v21
  %v450 = vunpack.c.l.b16 %v22
  %v451 = vunpack.c.h.b16 %v22
  %v452 = vunpack.c.l.b16 %v23
  %v453 = vunpack.c.h.b16 %v23
  %v454 = vunpack.c.l.b16 %v24
  %v455 = vunpack.c.l.b16 %v25
  %v456 = vunpack.c.h.b16 %v25
  %v457 = vunpack.c.l.b16 %v26
  %v458 = vunpack.c.h.b16 %v26
  %v459 = vunpack.c.l.b16 %v27
  %v460 = vunpack.c.h.b16 %v27
  %v461 = vunpack.c.l.b16 %v28
  %v462 = vunpack.c.h.b16 %v28
  %v463 = vunpack.c.l.b16 %v29
  %v464 = vunpack.c.h.b16 %v29
  %v465 = vunpack.c.l.b16 %v30
  %v466 = vunpack.c.h.b16 %v30
  %v467 = vunpack.c.l.b16 %v31
  %v468 = vunpack.c.l.b16 %v32
  %v469 = vunpack.c.h.b16 %v32
  %v470 = vunpack.c.l.b16 %v33
  %v471 = vunpack.c.h.b16 %v33
  %v472 = vunpack.c.l.b16 %v34
  %v473 = vunpack.c.h.b16 %v34
  %v474 = vunpack.c.l.b16 %v35
  %v475 = vunpack.c.h.b16 %v35
  %v476 = vunpack.c.l.b16 %v36
  %v477 = vunpack.c.h.b16 %v36
  %v478 = vunpack.c.l.b16 %v37
  %v479 = vunpack.c.h.b16 %v37
  %v480 = vunpack.c.l.b16 %v38
  %v481 = vunpack.c.l.b16 %v39
  %v482 = vunpack.c.h.b16 %v39
  %v483 = vunpack.c.l.b16 %v40
  %v484 = vunpack.c.h.b16 %v40
  %v485 = vunpack.c.l.b16 %v41
  %v486 = vunpack.c.h.b16 %v41
  %v487 = vunpack.c.l.b16 %v42
  %v488 = vunpack.c.h.b16 %v42
  %v489 = vunpack.c.l.b16 %v43
  %v490 = vunpack.c.h.b16 %v43
  %v491 = vunpack.c.l.b16 %v44
  %v492 = vunpack.c.h.b16 %v44
  %v493 = vunpack.c.l.b16 %v45
  %v494 = vunpack.c.l.b16 %v46
  %v495 = vunpack.c.h.b16 %v46
  %v496 = vunpack.c.l.b16 %v47
  %v497 = vunpack.c.h.b16 %v47
  %v498 = vunpack.c.l.b16 %v48
  %v499 = vunpack.c.h.b16 %v48
  %v500 = vunpack.c.l.b16 %v49
  %v501 = vunpack.c.h.b16 %v49
  %v502 = vunpack.c.l.b16 %v50
  %v503 = vunpack.c.h.b16 %v50
  %v504 = vunpack.c.l.b16 %v51
  %v505 = vunpack.c.h.b16 %v51
  %v506 = vunpack.c.l.b16 %v52
  %v507 = vunpack.c.l.b16 %v53
  %v508 = vunpack.c.h.b16 %v53
  %v509 = vunpack.c.l.b16 %v54
  %v510 = vunpack.c.h.b16 %v54
  %v511 = vunpack.c.l.b16 %v55
  %v512 = vunpack.c.h.b16 %v55
  %v513 = vunpack.c.l.b16 %v56
  %v514 = vunpack.c.h.b16 %v56
  %v515 = vunpack.c.l.b16 %v57
  %v516 = vunpack.c.h.b16 %v57
  %v517 = vunpack.c.l.b16 %v58
  %v518 = vunpack.c.h.b16 %v58
  %v519 = vunpack.c.l.b16 %v59
  %v520 = vunpack.c.l.b16 %v60
  %v521 = vunpack.c.h.b16 %v60
  %v522 = vunpack.c.l.b16 %v61
  %v523 = vunpack.c.h.b16 %v61
  %v524 = vunpack.c.l.b16 %v62
  %v525 = vunpack.c.h.b16 %v62
  %v526 = vunpack.c.l.b16 %v63
  %v527 = vunpack.c.h.b16 %v63
  %v528 = vunpack.c.l.b16 %v64
  %v529 = vunpack.c.h.b16 %v64
  %v530 = vunpack.c.l.b16 %v65
  %v531 = vunpack.c.h.b16 %v65
  %v532 = vunpack.c.l.b16 %v66
  %v533 = vunpack.c.l.b16 %v67
  %v534 = vunpack.c.h.b16 %v67
  %v535 = vunpack.c.l.b16 %v68
  %v536 = vunpack.c.h.b16 %v68
  %v537 = vunpack.c.l.b16 %v69
  %v538 = vunpack.c.h.b16 %v69
  %v539 = vunpack.c.l.b16 %v70
  %v540 = vunpack.c.h.b16 %v70
  %v541 = vunpack.c.l.b16 %v71
  %v542 = vunpack.c.h.b16 %v71
  %v543 = vunpack.c.l.b16 %v72
  %v544 = vunpack.c.h.b16 %v72
  %v545 = vunpack.c.l.b16 %v73
  %v546 = vunpack.c.l.b16 %v74
  %v547 = vunpack.c.h.b16 %v74
  %v548 = vunpack.c.l.b16 %v75
  %v549 = vunpack.c.h.b16 %v75
  %v550 = vunpack.c.l.b16 %v76
  %v551 = vunpack.c.h.b16 %v76
  %v552 = vunpack.c.l.b16 %v77
  %v553 = vunpack.c.h.b16 %v77
  %v554 = vunpack.c.l.b16 %v78
  %v555 = vunpack.c.h.b16 %v78
  %v556 = vunpack.c.l.b16 %v79
  %v557 = vunpack.c.h.b16 %v79
  %v558 = vunpack.c.l.b16 %v80
  %v559 = vunpack.c.l.b16 %v81
  %v560 = vunpack.c.h.b16 %v81
  %v561 = vunpack.c.l.b16 %v82
  %v562 = vunpack.c.h.b16 %v82
  %v563 = vunpack.c.l.b16 %v83
  %v564 = vunpack.c.h.b16 %v83
  %v565 = vunpack.c.l.b16 %v84
  %v566 = vunpack.c.h.b16 %v84
  %v567 = vunpack.c.l.b16 %v85
  %v568 = vunpack.c.h.b16 %v85
  %v569 = vunpack.c.l.b16 %v86
  %v570 = vunpack.c.h.b16 %v86
  %v571 = vunpack.c.l.b16 %v87
  %v572 = vunpack.c.l.b16 %v88
  %v573 = vunpack.c.h.b16 %v88
  %v574 = vunpack.c.l.b16 %v89
  %v575 = vunpack.c.h.b16 %v89
  %v576 = vunpack.c.l.b16 %v90
  %v577 = vunpack.c.h.b16 %v90
  %v578 = vunpack.c.l.b16 %v91
  %v579 = vunpack.c.h.b16 %v91
  %v580 = vunpack.c.l.b16 %v92
  %v581 = vunpack.c.h.b16 %v92
  %v582 = vunpack.c.l.b16 %v93
  %v583 = vunpack.c.h.b16 %v93
  %v584 = vunpack.c.l.b16 %v94
  %v585 = vunpack.c.l.b16 %v95
  %v586 = vunpack.c.h.b16 %v95
  %v587 = vunpack.c.l.b16 %v96
  %v588 = vunpack.c.h.b16 %v96
  %v589 = vunpack.c.l.b16 %v97
  %v590 = vunpack.c.h.b16 %v97
  %v591 = vunpack.c.l.b16 %v98
  %v592 = vunpack.c.h.b16 %v98
  %v593 = vunpack.c.l.b16 %v99
  %v594 = vunpack.c.h.b16 %v99
  %v595 = vunpack.c.l.b16 %v100
  %v596 = vunpack.c.h.b16 %v100
  %v597 = vunpack.c.l.b16 %v101
  %v598 = vunpack.c.l.b16 %v102
  %v599 = vunpack.c.h.b16 %v102
  %v600 = vunpack.c.l.b16 %v103
  %v601 = vunpack.c.h.b16 %v103
  %v602 = vunpack.c.l.b16 %v104
  %v603 = vunpack.c.h.b16 %v104
  %v604 = vunpack.c.l.b16 %v105
  %v605 = vunpack.c.h.b16 %v105
  %v606 = vunpack.c.l.b16 %v106
  %v607 = vunpack.c.h.b16 %v106
  %v608 = vunpack.c.l.b16 %v107
  %v609 = vunpack.c.h.b16 %v107
  %v610 = vunpack.c.l.b16 %v108
  %v611 = vunpack.c.l.b16 %v109
  %v612 = vunpack.c.h.b16 %v109
  %v613 = vunpack.c.l.b16 %v110
  %v614 = vunpack.c.h.b16 %v110
  %v615 = vunpack.c.l.b16 %v111
  %v616 = vunpack.c.h.b16 %v111
  %v617 = vunpack.c.l.b16 %v112
  %v618 = vunpack.c.h.b16 %v112
  %v619 = vunpack.c.l.b16 %v113
  %v620 = vunpack.c.h.b16 %v113
  %v621 = vunpack.c.l.b16 %v114
  %v622 = vunpack.c.h.b16 %v114
  %v623 = vunpack.c.l.b16 %v115
  %v624 = vunpack.c.l.b16 %v116
  %v625 = vunpack.c.h.b16 %v116
  %v626 = vunpack.c.l.b16 %v117
  %v627 = vunpack.c.h.b16 %v117
  %v628 = vunpack.c.l.b16 %v118
  %v629 = vunpack.c.h.b16 %v118
  %v630 = vunpack.c.l.b16 %v119
  %v631 = vunpack.c.h.b16 %v119
  %v632 = vunpack.c.l.b16 %v120
  %v633 = vunpack.c.h.b16 %v120
  %v634 = vunpack.c.l.b16 %v121
  %v635 = vunpack.c.h.b16 %v121
  %v636 = vunpack.c.l.b16 %v122
  %v637 = vunpack.c.l.b16 %v123
  %v638 = vunpack.c.h.b16 %v123
  %v639 = vunpack.c.l.b16 %v124
  %v640 = vunpack.c.h.b16 %v124
  %v641 = vunpack.c.l.b16 %v125
  %v642 = vunpack.c.h.b16 %v125
  %v643 = vunpack.c.l.b16 %v126
  %v644 = vunpack.c.h.b16 %v126
  %v645 = vunpack.c.l.b16 %v127
  %v646 = vunpack.c.h.b16 %v127
  %v647 = vunpack.c.l.b16 %v128
  %v648 = vunpack.c.h.b16 %v128
  %v649 = vunpack.c.l.b16 %v129
  %v650 = vpack.c.b16 %v455, %v442
  %v651 = vpack.c.b16 %v456, %v443
  %v652 = vpack.c.b16 %v457, %v444
  %v653 = vpack.c.b16 %v458, %v445
  %v654 = vpack.c.b16 %v459, %v446
  %v655 = vpack.c.b16 %v460, %v447
  %v656 = vpack.c.b16 %v461, %v448
  %v657 = vpack.c.b16 %v462, %v449
  %v658 = vpack.c.b16 %v463, %v450
  %v659 = vpack.c.b16 %v464, %v451
  %v660 = vpack.c.b16 %v465, %v452
  %v661 = vpack.c.b16 %v466, %v453
  %v662 = vpack.c.b16 %v467, %v454
  %v663 = vpack.c.b16 %v481, %v468
  %v664 = vpack.c.b16 %v482, %v469
  %v665 = vpack.c.b16 %v483, %v470
  %v666 = vpack.c.b16 %v484, %v471
  %v667 = vpack.c.b16 %v485, %v472
  %v668 = vpack.c.b16 %v486, %v473
  %v669 = vpack.c.b16 %v487, %v474
  %v670 = vpack.c.b16 %v488, %v475
  %v671 = vpack.c.b16 %v489, %v476
  %v672 = vpack.c.b16 %v490, %v477
  %v673 = vpack.c.b16 %v491, %v478
  %v674 = vpack.c.b16 %v492, %v479
  %v675 = vpack.c.b16 %v493, %v480
  %v676 = vpack.c.b16 %v507, %v494
  %v677 = vpack.c.b16 %v508, %v495
  %v678 = vpack.c.b16 %v509, %v496
  %v679 = vpack.c.b16 %v510, %v497
  %v680 = vpack.c.b16 %v511, %v498
  %v681 = vpack.c.b16 %v512, %v499
  %v682 = vpack.c.b16 %v513, %v500
  %v683 = vpack.c.b16 %v514, %v501
  %v684 = vpack.c.b16 %v515, %v502
  %v685 = vpack.c.b16 %v516, %v503
  %v686 = vpack.c.b16 %v517, %v504
  %v687 = vpack.c.b16 %v518, %v505
  %v688 = vpack.c.b16 %v519, %v506
  %v689 = vpack.c.b16 %v533, %v520
  %v690 = vpack.c.b16 %v534, %v521
  %v691 = vpack.c.b16 %v535, %v522
  %v692 = vpack.c.b16 %v536, %v523
  %v693 = vpack.c.b16 %v537, %v524
  %v694 = vpack.c.b16 %v538, %v525
  %v695 = vpack.c.b16 %v539, %v526
  %v696 = vpack.c.b16 %v540, %v527
  %v697 = vpack.c.b16 %v541, %v528
  %v698 = vpack.c.b16 %v542, %v529
  %v699 = vpack.c.b16 %v543, %v530
  %v700 = vpack.c.b16 %v544, %v531
  %v701 = vpack.c.b16 %v545, %v532
  %v702 = vpack.c.b16 %v559, %v546
  %v703 = vpack.c.b16 %v560, %v547
  %v704 = vpack.c.b16 %v561, %v548
  %v705 = vpack.c.b16 %v562, %v549
  %v706 = vpack.c.b16 %v563, %v550
  %v707 = vpack.c.b16 %v564, %v551
  %v708 = vpack.c.b16 %v565, %v552
  %v709 = vpack.c.b16 %v566, %v553
  %v710 = vpack.c.b16 %v567, %v554
  %v711 = vpack.c.b16 %v568, %v555
  %v712 = vpack.c.b16 %v569, %v556
  %v713 = vpack.c.b16 %v570, %v557
  %v714 = vpack.c.b16 %v571, %v558
  %v715 = vpack.c.b16 %v585, %v572
  %v716 = vpack.c.b16 %v586, %v573
  %v717 = vpack.c.b16 %v587, %v574
  %v718 = vpack.c.b16 %v588, %v575
  %v719 = vpack.c.b16 %v589, %v576
  %v720 = vpack.c.b16 %v590, %v577
  %v721 = vpack.c.b16 %v591, %v578
  %v722 = vpack.c.b16 %v592, %v579
  %v723 = vpack.c.b16 %v593, %v580
  %v724 = vpack.c.b16 %v594, %v581
  %v725 = vpack.c.b16 %v595, %v582
  %v726 = vpack.c.b16 %v596, %v583
  %v727 = vpack.c.b16 %v597, %v584
  %v728 = vpack.c.b16 %v611, %v598
  %v729 = vpack.c.b16 %v612, %v599
  %v730 = vpack.c.b16 %v613, %v600
  %v731 = vpack.c.b16 %v614, %v601
  %v732 = vpack.c.b16 %v615, %v602
  %v733 = vpack.c.b16 %v616, %v603
  %v734 = vpack.c.b16 %v617, %v604
  %v735 = vpack.c.b16 %v618, %v605
  %v736 = vpack.c.b16 %v619, %v606
  %v737 = vpack.c.b16 %v620, %v607
  %v738 = vpack.c.b16 %v621, %v608
  %v739 = vpack.c.b16 %v622, %v609
  %v740 = vpack.c.b16 %v623, %v610
  %v741 = vpack.c.b16 %v637, %v624
  %v742 = vpack.c.b16 %v638, %v625
  %v743 = vpack.c.b16 %v639, %v626
  %v744 = vpack.c.b16 %v640, %v627
  %v745 = vpack.c.b16 %v641, %v628
  %v746 = vpack.c.b16 %v642, %v629
  %v747 = vpack.c.b16 %v643, %v630
  %v748 = vpack.c.b16 %v644, %v631
  %v749 = vpack.c.b16 %v645, %v632
  %v750 = vpack.c.b16 %v646, %v633
  %v751 = vpack.c.b16 %v647, %v634
  %v752 = vpack.c.b16 %v648, %v635
  %v753 = vpack.c.b16 %v649, %v636
  %v1050 = vunpack.c.l.b16 %v130
  %v1051 = vunpack.c.l.b16 %v131
  %v1052 = vunpack.c.l.b16 %v132
  %v1053 = vunpack.c.l.b16 %v133
  %v1054 = vunpack.c.l.b16 %v134
  %v1055 = vunpack.c.l.b16 %v135
  %v1056 = vunpack.c.l.b16 %v136
  %v1057 = vunpack.c.l.b16 %v137
  %v1058 = vunpack.c.l.b16 %v138
  %v1059 = vunpack.c.l.b16 %v139
  %v1060 = vunpack.c.l.b16 %v140
  %v1061 = vunpack.c.l.b16 %v141
  %v1062 = vunpack.c.l.b16 %v142
  %v1063 = vunpack.c.l.b16 %v143
  %v1064 = vunpack.c.l.b16 %v144
  %v1065 = vunpack.c.l.b16 %v145
  %v1066 = vunpack.c.l.b16 %v146
  %v1067 = vunpack.c.l.b16 %v147
  %v1068 = vunpack.c.l.b16 %v148
  %v1069 = vunpack.c.l.b16 %v149
  %v1070 = vunpack.c.l.b16 %v150
  %v1071 = vunpack.c.l.b16 %v151
  %v1072 = vunpack.c.l.b16 %v152
  %v1073 = vunpack.c.l.b16 %v153
  %v1074 = vunpack.c.l.b16 %v154
  %v1075 = vunpack.c.l.b16 %v155
  %v1076 = vunpack.c.l.b16 %v156
  %v1077 = vunpack.c.l.b16 %v157
  %v1078 = vunpack.c.l.b16 %v158
  %v1079 = vunpack.c.l.b16 %v159
  %v1080 = vunpack.c.l.b16 %v160
  %v1081 = vunpack.c.l.b16 %v161
  %v1082 = vunpack.c.l.b16 %v162
  %v1083 = vunpack.c.l.b16 %v163
  %v1084 = vunpack.c.l.b16 %v164
  %v1085 = vunpack.c.l.b16 %v165
  %v1086 = vunpack.c.l.b16 %v166
  %v1087 = vunpack.c.l.b16 %v167
  %v1088 = vunpack.c.l.b16 %v168
  %v1089 = vunpack.c.l.b16 %v169
  %v1090 = vunpack.c.l.b16 %v170
  %v1091 = vunpack.c.l.b16 %v171
  %v1092 = vunpack.c.l.b16 %v172
  %v1093 = vunpack.c.l.b16 %v173
  %v1094 = vunpack.c.l.b16 %v174
  %v1095 = vunpack.c.l.b16 %v175
  %v1096 = vunpack.c.l.b16 %v176
  %v1097 = vunpack.c.l.b16 %v177
  %v1098 = vunpack.c.l.b16 %v178
  %v1099 = vunpack.c.l.b16 %v179
  %v1100 = vunpack.c.l.b16 %v180
  %v1101 = vunpack.c.l.b16 %v181
  %v1102 = vunpack.c.l.b16 %v182
  %v1103 = vunpack.c.l.b16 %v183
  %v1104 = vunpack.c.l.b16 %v184
  %v1105 = vunpack.c.l.b16 %v185
  %v1106 = vunpack.c.l.b16 %v186
  %v1107 = vunpack.c.l.b16 %v187
  %v1108 = vunpack.c.l.b16 %v188
  %v1109 = vunpack.c.l.b16 %v189
  %v1110 = vunpack.c.l.b16 %v190
  %v1111 = vunpack.c.l.b16 %v191
  %v1112 = vunpack.c.l.b16 %v192
  %v1113 = vunpack.c.l.b16 %v193
  %v1114 = vunpack.c.l.b16 %v194
  %v1115 = vunpack.c.l.b16 %v195
  %v1116 = vunpack.c.l.b16 %v196
  %v1117 = vunpack.c.l.b16 %v197
  %v1118 = vunpack.c.l.b16 %v198
  %v1119 = vunpack.c.l.b16 %v199
  %v1120 = vunpack.c.l.b16 %v200
  %v1121 = vunpack.c.l.b16 %v201
  %v1122 = vunpack.c.l.b16 %v202
  %v1123 = vunpack.c.l.b16 %v203
  %v1124 = vunpack.c.l.b16 %v204
  %v1125 = vunpack.c.l.b16 %v205
  %v1126 = vunpack.c.l.b16 %v206
  %v1127 = vunpack.c.l.b16 %v207
  %v1128 = vunpack.c.l.b16 %v208
  %v1129 = vunpack.c.l.b16 %v209
  %v1130 = vunpack.c.l.b16 %v210
  %v1131 = vunpack.c.l.b16 %v211
  %v1132 = vunpack.c.l.b16 %v212
  %v1133 = vunpack.c.l.b16 %v213
  %v1134 = vunpack.c.l.b16 %v214
  %v1135 = vunpack.c.l.b16 %v215
  %v1136 = vunpack.c.l.b16 %v216
  %v1137 = vunpack.c.l.b16 %v217
  %v1138 = vunpack.c.l.b16 %v218
  %v1139 = vunpack.c.l.b16 %v219
  %v1140 = vunpack.c.l.b16 %v220
  %v1141 = vunpack.c.l.b16 %v221
  %v1142 = vunpack.c.l.b16 %v222
  %v1143 = vunpack.c.l.b16 %v223
  %v1144 = vunpack.c.l.b16 %v224
  %v1145 = vunpack.c.l.b16 %v225
  %v1146 = vunpack.c.l.b16 %v226
  %v1147 = vunpack.c.l.b16 %v227
  %v1148 = vunpack.c.l.b16 %v228
  %v1149 = vunpack.c.l.b16 %v229
  %v1150 = vunpack.c.l.b16 %v230
  %v1151 = vunpack.c.l.b16 %v231
  %v1152 = vunpack.c.l.b16 %v232
  %v1153 = vunpack.c.l.b16 %v233
  %v1154 = vunpack.c.l.b16 %v234
  %v1155 = vunpack.c.l.b16 %v235
  %v1156 = vunpack.c.l.b16 %v236
  %v1157 = vunpack.c.l.b16 %v237
  %v1158 = vunpack.c.l.b16 %v238
  %v1159 = vunpack.c.l.b16 %v239
  %v1160 = vunpack.c.l.b16 %v240
  %v1161 = vunpack.c.l.b16 %v241
  %v1162 = vunpack.c.l.b16 %v242
  %v1163 = vunpack.c.l.b16 %v243
  %v1164 = vunpack.c.l.b16 %v244
  %v1165 = vunpack.c.l.b16 %v245
  %v1166 = vunpack.c.l.b16 %v246
  %v1167 = vunpack.c.l.b16 %v247
  %v1168 = vunpack.c.l.b16 %v248
  %v1169 = vunpack.c.l.b16 %v249
  %v1170 = vunpack.c.l.b16 %v250
  %v1171 = vunpack.c.l.b16 %v251
  %v1172 = vunpack.c.l.b16 %v252
  %v1173 = vunpack.c.l.b16 %v253
  %v1174 = vunpack.c.l.b16 %v254
  %v1175 = vunpack.c.l.b16 %v255
  %v1176 = vunpack.c.l.b16 %v256
  %v1177 = vunpack.c.l.b16 %v257
  %v1178 = vunpack.c.l.b16 %v258
  %v1179 = vunpack.c.l.b16 %v259
  %v1180 = vunpack.c.l.b16 %v260
  %v1181 = vunpack.c.l.b16 %v261
  %v1182 = vunpack.c.l.b16 %v262
  %v1183 = vunpack.c.l.b16 %v263
  %v1184 = vunpack.c.l.b16 %v264
  %v1185 = vunpack.c.l.b16 %v265
  %v1186 = vunpack.c.l.b16 %v266
  %v1187 = vunpack.c.l.b16 %v267
  %v1188 = vunpack.c.l.b16 %v268
  %v1189 = vunpack.c.l.b16 %v269
  %v1190 = vunpack.c.l.b16 %v270
  %v1191 = vunpack.c.l.b16 %v271
  %v1192 = vunpack.c.l.b16 %v272
  %v1193 = vunpack.c.l.b16 %v273
  %v1194 = vunpack.c.l.b16 %v274
  %v1195 = vunpack.c.l.b16 %v275
  %v1196 = vunpack.c.l.b16 %v276
  %v1197 = vunpack.c.l.b16 %v277
  %v1198 = vunpack.c.l.b16 %v278
  %v1199 = vunpack.c.l.b16 %v279
  %v1200 = vunpack.c.l.b16 %v280
  %v1201 = vunpack.c.l.b16 %v281
  %v1202 = vunpack.c.l.b16 %v282
  %v1203 = vunpack.c.l.b16 %v283
  %v1204 = vunpack.c.l.b16 %v284
  %v1205 = vunpack.c.l.b16 %v285
  %v1206 = vunpack.c.l.b16 %v286
  %v1207 = vunpack.c.l.b16 %v287
  %v1208 = vunpack.c.l.b16 %v288
  %v1209 = vunpack.c.l.b16 %v289
  %v1210 = vunpack.c.l.b16 %v290
  %v1211 = vunpack.c.l.b16 %v291
  %v1212 = vunpack.c.l.b16 %v292
  %v1213 = vunpack.c.l.b16 %v293
  %v1214 = vunpack.c.l.b16 %v294
  %v1215 = vunpack.c.l.b16 %v295
  %v1216 = vunpack.c.l.b16 %v296
  %v1217 = vunpack.c.l.b16 %v297
  %v1218 = vunpack.c.l.b16 %v298
  %v1219 = vunpack.c.l.b16 %v299
  %v1220 = vunpack.c.l.b16 %v300
  %v1221 = vunpack.c.l.b16 %v301
  %v1222 = vunpack.c.l.b16 %v302
  %v1223 = vunpack.c.l.b16 %v303
  %v1224 = vunpack.c.l.b16 %v304
  %v1225 = vunpack.c.l.b16 %v305
  %v1226 = vunpack.c.l.b16 %v306
  %v1227 = vunpack.c.l.b16 %v307
  %v1228 = vunpack.c.l.b16 %v308
  %v1229 = vunpack.c.l.b16 %v309
  %v1230 = vunpack.c.l.b16 %v310
  %v1231 = vunpack.c.l.b16 %v311
  %v1232 = vunpack.c.l.b16 %v312
  %v1233 = vunpack.c.l.b16 %v313
  %v1234 = vunpack.c.l.b16 %v314
  %v1235 = vunpack.c.l.b16 %v315
  %v1236 = vunpack.c.l.b16 %v316
  %v1237 = vunpack.c.l.b16 %v317
  %v1238 = vunpack.c.l.b16 %v318
  %v1239 = vunpack.c.l.b16 %v319
  %v1240 = vunpack.c.l.b16 %v320
  %v1241 = vunpack.c.l.b16 %v321
  %v1242 = vunpack.c.l.b16 %v322
  %v1243 = vunpack.c.l.b16 %v323
  %v1244 = vunpack.c.l.b16 %v324
  %v1245 = vunpack.c.l.b16 %v325
  %v1246 = vunpack.c.l.b16 %v326
  %v1247 = vunpack.c.l.b16 %v327
  %v1248 = vunpack.c.l.b16 %v328
  %v1249 = vunpack.c.l.b16 %v329
  %v1250 = vpack.c.b16 %v1051, %v1050
  %v1251 = vpack.c.b16 %v1053, %v1052
  %v1252 = vpack.c.b16 %v1055, %v1054
  %v1253 = vpack.c.b16 %v1057, %v1056
  %v1254 = vpack.c.b16 %v1059, %v1058
  %v1255 = vpack.c.b16 %v1061, %v1060
  %v1256 = vpack.c.b16 %v1063, %v1062
  %v1257 = vpack.c.b16 %v1065, %v1064
  %v1258 = vpack.c.b16 %v1067, %v1066
  %v1259 = vpack.c.b16 %v1069, %v1068
  %v1260 = vpack.c.b16 %v1071, %v1070
  %v1261 = vpack.c.b16 %v1073, %v1072
  %v1262 = vpack.c.b16 %v1075, %v1074
  %v1263 = vpack.c.b16 %v1077, %v1076
  %v1264 = vpack.c.b16 %v1079, %v1078
  %v1265 = vpack.c.b16 %v1081, %v1080
  %v1266 = vpack.c.b16 %v1083, %v1082
  %v1267 = vpack.c.b16 %v1085, %v1084
  %v1268 = vpack.c.b16 %v1087, %v1086
  %v1269 = vpack.c.b16 %v1089, %v1088
  %v1270 = vpack.c.b16 %v1091, %v1090
  %v1271 = vpack.c.b16 %v1093, %v1092
  %v1272 = vpack.c.b16 %v1095, %v1094
  %v1273 = vpack.c.b16 %v1097, %v1096
  %v1274 = vpack.c.b16 %v1099, %v1098
  %v1275 = vpack.c.b16 %v1101, %v1100
  %v1276 = vpack.c.b16 %v1103, %v1102
  %v1277 = vpack.c.b16 %v1105, %v1104
  %v1278 = vpack.c.b16 %v1107, %v1106
  %v1279 = vpack.c.b16 %v1109, %v1108
  %v1280 = vpack.c.b16 %v1111, %v1110
  %v1281 = vpack.c.b16 %v1113, %v1112
  %v1282 = vpack.c.b16 %v1115, %v1114
  %v1283 = vpack.c.b16 %v1117, %v1116
  %v1284 = vpack.c.b16 %v1119, %v1118
  %v1285 = vpack.c.b16 %v1121, %v1120
  %v1286 = vpack.c.b16 %v1123, %v1122
  %v1287 = vpack.c.b16 %v1125, %v1124
  %v1288 = vpack.c.b16 %v1127, %v1126
  %v1289 = vpack.c.b16 %v1129, %v1128
  %v1290 = vpack.c.b16 %v1131, %v1130
  %v1291 = vpack.c.b16 %v1133, %v1132
  %v1292 = vpack.c.b16 %v1135, %v1134
  %v1293 = vpack.c.b16 %v1137, %v1136
  %v1294 = vpack.c.b16 %v1139, %v1138
  %v1295 = vpack.c.b16 %v1141, %v1140
  %v1296 = vpack.c.b16 %v1143, %v1142
  %v1297 = vpack.c.b16 %v1145, %v1144
  %v1298 = vpack.c.b16 %v1147, %v1146
  %v1299 = vpack.c.b16 %v1149, %v1148
  %v1300 = vpack.c.b16 %v1151, %v1150
  %v1301 = vpack.c.b16 %v1153, %v1152
  %v1302 = vpack.c.b16 %v1155, %v1154
  %v1303 = vpack.c.b16 %v1157, %v1156
  %v1304 = vpack.c.b16 %v1159, %v1158
  %v1305 = vpack.c.b16 %v1161, %v1160
  %v1306 = vpack.c.b16 %v1163, %v1162
  %v1307 = vpack.c.b16 %v1165, %v1164
  %v1308 = vpack.c.b16 %v1167, %v1166
  %v1309 = vpack.c.b16 %v1169, %v1168
  %v1310 = vpack.c.b16 %v1171, %v1170
  %v1311 = vpack.c.b16 %v1173, %v1172
  %v1312 = vpack.c.b16 %v1175, %v1174
  %v1313 = vpack.c.b16 %v1177, %v1176
  %v1314 = vpack.c.b16 %v1179, %v1178
  %v1315 = vpack.c.b16 %v1181, %v1180
  %v1316 = vpack.c.b16 %v1183, %v1182
  %v1317 = vpack.c.b16 %v1185, %v1184
  %v1318 = vpack.c.b16 %v1187, %v1186
  %v1319 = vpack.c.b16 %v1189, %v1188
  %v1320 = vpack.c.b16 %v1191, %v1190
  %v1321 = vpack.c.b16 %v1193, %v1192
  %v1322 = vpack.c.b16 %v1195, %v1194
  %v1323 = vpack.c.b16 %v1197, %v1196
  %v1324 = vpack.c.b16 %v1199, %v1198
  %v1325 = vpack.c.b16 %v1201, %v1200
  %v1326 = vpack.c.b16 %v1203, %v1202
  %v1327 = vpack.c.b16 %v1205, %v1204
  %v1328 = vpack.c.b16 %v1207, %v1206
  %v1329 = vpack.c.b16 %v1209, %v1208
  %v1330 = vpack.c.b16 %v1211, %v1210
  %v1331 = vpack.c.b16 %v1213, %v1212
  %v1332 = vpack.c.b16 %v1215, %v1214
  %v1333 = vpack.c.b16 %v1217, %v1216
  %v1334 = vpack.c.b16 %v1219, %v1218
  %v1335 = vpack.c.b16 %v1221, %v1220
  %v1336 = vpack.c.b16 %v1223, %v1222
  %v1337 = vpack.c.b16 %v1225, %v1224
  %v1338 = vpack.c.b16 %v1227, %v1226
  %v1339 = vpack.c.b16 %v1229, %v1228
  %v1340 = vpack.c.b16 %v1231, %v1230
  %v1341 = vpack.c.b16 %v1233, %v1232
  %v1342 = vpack.c.b16 %v1235, %v1234
  %v1343 = vpack.c.b16 %v1237, %v1236
  %v1344 = vpack.c.b16 %v1239, %v1238
  %v1345 = vpack.c.b16 %v1241, %v1240
  %v1346 = vpack.c.b16 %v1243, %v1242
  %v1347 = vpack.c.b16 %v1245, %v1244
  %v1348 = vpack.c.b16 %v1247, %v1246
  %v1349 = vpack.c.b16 %v1249, %v1248
  %vm1450 = vcmask 523264
  %v1452 = vsel %vm1450, %v662, 0
  %v1455 = vsel %vm1450, %v675, 0
  %v1458 = vsel %vm1450, %v688, 0
  %v1461 = vsel %vm1450, %v701, 0
  %v1464 = vsel %vm1450, %v714, 0
  %v1467 = vsel %vm1450, %v727, 0
  %v1470 = vsel %vm1450, %v740, 0
  %v1473 = vsel %vm1450, %v753, 0
  %1475 = vmatprep.subr.bf16.mxu0 0
  %1476 = vmatpush1.bf16.msra.mxu0 %v1250
  %1477 = vmatprep.subr.bf16.mxu0 0
  %1478 = vmatpush1.bf16.msra.mxu0 %v1251
  %1479 = vmatprep.subr.bf16.mxu0 0
  %1480 = vmatpush1.bf16.msra.mxu0 %v1252
  %1481 = vmatprep.subr.bf16.mxu0 0
  %1482 = vmatpush1.bf16.msra.mxu0 %v1253
  %1483 = vmatprep.subr.bf16.mxu0 0
  %1484 = vmatpush1.bf16.msra.mxu0 %v1254
  %1485 = vmatprep.subr.bf16.mxu0 0
  %1486 = vmatpush1.bf16.msra.mxu0 %v1255
  %1487 = vmatprep.subr.bf16.mxu0 0
  %1488 = vmatpush1.bf16.msra.mxu0 %v1256
  %1489 = vmatprep.subr.bf16.mxu0 0
  %1490 = vmatpush1.bf16.msra.mxu0 %v1257
  %1491 = vmatprep.subr.bf16.mxu0 0
  %1492 = vmatpush1.bf16.msra.mxu0 %v1258
  %1493 = vmatprep.subr.bf16.mxu0 0
  %1494 = vmatpush1.bf16.msra.mxu0 %v1259
  %1495 = vmatprep.subr.bf16.mxu0 0
  %1496 = vmatpush1.bf16.msra.mxu0 %v1260
  %1497 = vmatprep.subr.bf16.mxu0 0
  %1498 = vmatpush1.bf16.msra.mxu0 %v1261
  %1499 = vmatprep.subr.bf16.mxu0 0
  %1500 = vmatpush1.bf16.msra.mxu0 %v1262
  %1501 = vmatprep.subr.bf16.mxu0 0
  %1502 = vmatpush1.bf16.msra.mxu0 %v1263
  %1503 = vmatprep.subr.bf16.mxu0 0
  %1504 = vmatpush1.bf16.msra.mxu0 %v1264
  %1505 = vmatprep.subr.bf16.mxu0 0
  %1506 = vmatpush1.bf16.msra.mxu0 %v1265
  %1507 = vmatprep.mubr.bf16.mxu0 %v651
  %1508 = vmatmul.mubr.bf16.gmra.mrb[0].mxu0 %v650
  %v1509 = vpop.f32.mrb[0].mxu0
  %v1510 = vadd.f32 0.0, %v1509
  %v1511 = vpop.f32.mrb[0].mxu0
  %v1512 = vpop.f32.mrb[0].mxu0
  %v1513 = vadd.f32 0.0, %v1512
  %v1514 = vpop.f32.mrb[0].mxu0
  %1515 = vmatprep.mubr.bf16.mxu0 %v664
  %1516 = vmatmul.mubr.bf16.gmra.mrb[0].mxu0 %v663
  %v1517 = vpop.f32.mrb[0].mxu0
  %v1518 = vadd.f32 0.0, %v1517
  %v1519 = vpop.f32.mrb[0].mxu0
  %v1520 = vpop.f32.mrb[0].mxu0
  %v1521 = vadd.f32 0.0, %v1520
  %v1522 = vpop.f32.mrb[0].mxu0
  %1523 = vmatprep.mubr.bf16.mxu0 %v677
  %1524 = vmatmul.mubr.bf16.gmra.mrb[0].mxu0 %v676
  %v1525 = vpop.f32.mrb[0].mxu0
  %v1526 = vadd.f32 0.0, %v1525
  %v1527 = vpop.f32.mrb[0].mxu0
  %v1528 = vpop.f32.mrb[0].mxu0
  %v1529 = vadd.f32 0.0, %v1528
  %v1530 = vpop.f32.mrb[0].mxu0
  %1531 = vmatprep.mubr.bf16.mxu0 %v690
  %1532 = vmatmul.mubr.bf16.gmra.mrb[0].mxu0 %v689
  %v1533 = vpop.f32.mrb[0].mxu0
  %v1534 = vadd.f32 0.0, %v1533
  %v1535 = vpop.f32.mrb[0].mxu0
  %v1536 = vpop.f32.mrb[0].mxu0
  %v1537 = vadd.f32 0.0, %v1536
  %v1538 = vpop.f32.mrb[0].mxu0
  %1539 = vmatprep.mubr.bf16.mxu0 %v703
  %1540 = vmatmul.mubr.bf16.gmra.mrb[0].mxu0 %v702
  %v1541 = vpop.f32.mrb[0].mxu0
  %v1542 = vadd.f32 0.0, %v1541
  %v1543 = vpop.f32.mrb[0].mxu0
  %v1544 = vpop.f32.mrb[0].mxu0
  %v1545 = vadd.f32 0.0, %v1544
  %v1546 = vpop.f32.mrb[0].mxu0
  %1547 = vmatprep.mubr.bf16.mxu0 %v716
  %1548 = vmatmul.mubr.bf16.gmra.mrb[0].mxu0 %v715
  %v1549 = vpop.f32.mrb[0].mxu0
  %v1550 = vadd.f32 0.0, %v1549
  %v1551 = vpop.f32.mrb[0].mxu0
  %v1552 = vpop.f32.mrb[0].mxu0
  %v1553 = vadd.f32 0.0, %v1552
  %v1554 = vpop.f32.mrb[0].mxu0
  %1555 = vmatprep.mubr.bf16.mxu0 %v729
  %1556 = vmatmul.mubr.bf16.gmra.mrb[0].mxu0 %v728
  %v1557 = vpop.f32.mrb[0].mxu0
  %v1558 = vadd.f32 0.0, %v1557
  %v1559 = vpop.f32.mrb[0].mxu0
  %v1560 = vpop.f32.mrb[0].mxu0
  %v1561 = vadd.f32 0.0, %v1560
  %v1562 = vpop.f32.mrb[0].mxu0
  %1563 = vmatprep.mubr.bf16.mxu0 %v742
  %1564 = vmatmul.mubr.bf16.gmra.mrb[0].mxu0 %v741
  %v1565 = vpop.f32.mrb[0].mxu0
  %v1566 = vadd.f32 0.0, %v1565
  %v1567 = vpop.f32.mrb[0].mxu0
  %v1568 = vpop.f32.mrb[0].mxu0
  %v1569 = vadd.f32 0.0, %v1568
  %v1570 = vpop.f32.mrb[0].mxu0
  %1571 = vdwg.mxu0
  %1572 = vmatprep.subr.bf16.mxu0 0
  %1573 = vmatpush1.bf16.msra.mxu0 %v1266
  %1574 = vmatprep.subr.bf16.mxu0 0
  %1575 = vmatpush1.bf16.msra.mxu0 %v1267
  %1576 = vmatprep.subr.bf16.mxu0 0
  %1577 = vmatpush1.bf16.msra.mxu0 %v1268
  %1578 = vmatprep.subr.bf16.mxu0 0
  %1579 = vmatpush1.bf16.msra.mxu0 %v1269
  %1580 = vmatprep.subr.bf16.mxu0 0
  %1581 = vmatpush1.bf16.msra.mxu0 %v1270
  %1582 = vmatprep.subr.bf16.mxu0 0
  %1583 = vmatpush1.bf16.msra.mxu0 %v1271
  %1584 = vmatprep.subr.bf16.mxu0 0
  %1585 = vmatpush1.bf16.msra.mxu0 %v1272
  %1586 = vmatprep.subr.bf16.mxu0 0
  %1587 = vmatpush1.bf16.msra.mxu0 %v1273
  %1588 = vmatprep.subr.bf16.mxu0 0
  %1589 = vmatpush1.bf16.msra.mxu0 %v1274
  %1590 = vmatprep.subr.bf16.mxu0 0
  %1591 = vmatpush1.bf16.msra.mxu0 %v1275
  %1592 = vmatprep.subr.bf16.mxu0 0
  %1593 = vmatpush1.bf16.msra.mxu0 %v1276
  %1594 = vmatprep.subr.bf16.mxu0 0
  %1595 = vmatpush1.bf16.msra.mxu0 %v1277
  %1596 = vmatprep.subr.bf16.mxu0 0
  %1597 = vmatpush1.bf16.msra.mxu0 %v1278
  %1598 = vmatprep.subr.bf16.mxu0 0
  %1599 = vmatpush1.bf16.msra.mxu0 %v1279
  %1600 = vmatprep.subr.bf16.mxu0 0
  %1601 = vmatpush1.bf16.msra.mxu0 %v1280
  %1602 = vmatprep.subr.bf16.mxu0 0
  %1603 = vmatpush1.bf16.msra.mxu0 %v1281
  %1604 = vmatprep.mubr.bf16.mxu0 %v653
  %1605 = vmatmul.mubr.bf16.gmra.mrb[0].mxu0 %v652
  %v1606 = vpop.f32.mrb[0].mxu0
  %v1607 = vadd.f32 %v1510, %v1606
  %v1608 = vpop.f32.mrb[0].mxu0
  %v1609 = vpop.f32.mrb[0].mxu0
  %v1610 = vadd.f32 %v1513, %v1609
  %v1611 = vpop.f32.mrb[0].mxu0
  %1612 = vmatprep.mubr.bf16.mxu0 %v666
  %1613 = vmatmul.mubr.bf16.gmra.mrb[0].mxu0 %v665
  %v1614 = vpop.f32.mrb[0].mxu0
  %v1615 = vadd.f32 %v1518, %v1614
  %v1616 = vpop.f32.mrb[0].mxu0
  %v1617 = vpop.f32.mrb[0].mxu0
  %v1618 = vadd.f32 %v1521, %v1617
  %v1619 = vpop.f32.mrb[0].mxu0
  %1620 = vmatprep.mubr.bf16.mxu0 %v679
  %1621 = vmatmul.mubr.bf16.gmra.mrb[0].mxu0 %v678
  %v1622 = vpop.f32.mrb[0].mxu0
  %v1623 = vadd.f32 %v1526, %v1622
  %v1624 = vpop.f32.mrb[0].mxu0
  %v1625 = vpop.f32.mrb[0].mxu0
  %v1626 = vadd.f32 %v1529, %v1625
  %v1627 = vpop.f32.mrb[0].mxu0
  %1628 = vmatprep.mubr.bf16.mxu0 %v692
  %1629 = vmatmul.mubr.bf16.gmra.mrb[0].mxu0 %v691
  %v1630 = vpop.f32.mrb[0].mxu0
  %v1631 = vadd.f32 %v1534, %v1630
  %v1632 = vpop.f32.mrb[0].mxu0
  %v1633 = vpop.f32.mrb[0].mxu0
  %v1634 = vadd.f32 %v1537, %v1633
  %v1635 = vpop.f32.mrb[0].mxu0
  %1636 = vmatprep.mubr.bf16.mxu0 %v705
  %1637 = vmatmul.mubr.bf16.gmra.mrb[0].mxu0 %v704
  %v1638 = vpop.f32.mrb[0].mxu0
  %v1639 = vadd.f32 %v1542, %v1638
  %v1640 = vpop.f32.mrb[0].mxu0
  %v1641 = vpop.f32.mrb[0].mxu0
  %v1642 = vadd.f32 %v1545, %v1641
  %v1643 = vpop.f32.mrb[0].mxu0
  %1644 = vmatprep.mubr.bf16.mxu0 %v718
  %1645 = vmatmul.mubr.bf16.gmra.mrb[0].mxu0 %v717
  %v1646 = vpop.f32.mrb[0].mxu0
  %v1647 = vadd.f32 %v1550, %v1646
  %v1648 = vpop.f32.mrb[0].mxu0
  %v1649 = vpop.f32.mrb[0].mxu0
  %v1650 = vadd.f32 %v1553, %v1649
  %v1651 = vpop.f32.mrb[0].mxu0
  %1652 = vmatprep.mubr.bf16.mxu0 %v731
  %1653 = vmatmul.mubr.bf16.gmra.mrb[0].mxu0 %v730
  %v1654 = vpop.f32.mrb[0].mxu0
  %v1655 = vadd.f32 %v1558, %v1654
  %v1656 = vpop.f32.mrb[0].mxu0
  %v1657 = vpop.f32.mrb[0].mxu0
  %v1658 = vadd.f32 %v1561, %v1657
  %v1659 = vpop.f32.mrb[0].mxu0
  %1660 = vmatprep.mubr.bf16.mxu0 %v744
  %1661 = vmatmul.mubr.bf16.gmra.mrb[0].mxu0 %v743
  %v1662 = vpop.f32.mrb[0].mxu0
  %v1663 = vadd.f32 %v1566, %v1662
  %v1664 = vpop.f32.mrb[0].mxu0
  %v1665 = vpop.f32.mrb[0].mxu0
  %v1666 = vadd.f32 %v1569, %v1665
  %v1667 = vpop.f32.mrb[0].mxu0
  %1668 = vdwg.mxu0
  %1669 = vmatprep.subr.bf16.mxu0 0
  %1670 = vmatpush1.bf16.msra.mxu0 %v1282
  %1671 = vmatprep.subr.bf16.mxu0 0
  %1672 = vmatpush1.bf16.msra.mxu0 %v1283
  %1673 = vmatprep.subr.bf16.mxu0 0
  %1674 = vmatpush1.bf16.msra.mxu0 %v1284
  %1675 = vmatprep.subr.bf16.mxu0 0
  %1676 = vmatpush1.bf16.msra.mxu0 %v1285
  %1677 = vmatprep.subr.bf16.mxu0 0
  %1678 = vmatpush1.bf16.msra.mxu0 %v1286
  %1679 = vmatprep.subr.bf16.mxu0 0
  %1680 = vmatpush1.bf16.msra.mxu0 %v1287
  %1681 = vmatprep.subr.bf16.mxu0 0
  %1682 = vmatpush1.bf16.msra.mxu0 %v1288
  %1683 = vmatprep.subr.bf16.mxu0 0
  %1684 = vmatpush1.bf16.msra.mxu0 %v1289
  %1685 = vmatprep.subr.bf16.mxu0 0
  %1686 = vmatpush1.bf16.msra.mxu0 %v1290
  %1687 = vmatprep.subr.bf16.mxu0 0
  %1688 = vmatpush1.bf16.msra.mxu0 %v1291
  %1689 = vmatprep.subr.bf16.mxu0 0
  %1690 = vmatpush1.bf16.msra.mxu0 %v1292
  %1691 = vmatprep.subr.bf16.mxu0 0
  %1692 = vmatpush1.bf16.msra.mxu0 %v1293
  %1693 = vmatprep.subr.bf16.mxu0 0
  %1694 = vmatpush1.bf16.msra.mxu0 %v1294
  %1695 = vmatprep.subr.bf16.mxu0 0
  %1696 = vmatpush1.bf16.msra.mxu0 %v1295
  %1697 = vmatprep.subr.bf16.mxu0 0
  %1698 = vmatpush1.bf16.msra.mxu0 %v1296
  %1699 = vmatprep.subr.bf16.mxu0 0
  %1700 = vmatpush1.bf16.msra.mxu0 %v1297
  %1701 = vmatprep.mubr.bf16.mxu0 %v655
  %1702 = vmatmul.mubr.bf16.gmra.mrb[0].mxu0 %v654
  %v1703 = vpop.f32.mrb[0].mxu0
  %v1704 = vadd.f32 %v1607, %v1703
  %v1705 = vpop.f32.mrb[0].mxu0
  %v1706 = vpop.f32.mrb[0].mxu0
  %v1707 = vadd.f32 %v1610, %v1706
  %v1708 = vpop.f32.mrb[0].mxu0
  %1709 = vmatprep.mubr.bf16.mxu0 %v668
  %1710 = vmatmul.mubr.bf16.gmra.mrb[0].mxu0 %v667
  %v1711 = vpop.f32.mrb[0].mxu0
  %v1712 = vadd.f32 %v1615, %v1711
  %v1713 = vpop.f32.mrb[0].mxu0
  %v1714 = vpop.f32.mrb[0].mxu0
  %v1715 = vadd.f32 %v1618, %v1714
  %v1716 = vpop.f32.mrb[0].mxu0
  %1717 = vmatprep.mubr.bf16.mxu0 %v681
  %1718 = vmatmul.mubr.bf16.gmra.mrb[0].mxu0 %v680
  %v1719 = vpop.f32.mrb[0].mxu0
  %v1720 = vadd.f32 %v1623, %v1719
  %v1721 = vpop.f32.mrb[0].mxu0
  %v1722 = vpop.f32.mrb[0].mxu0
  %v1723 = vadd.f32 %v1626, %v1722
  %v1724 = vpop.f32.mrb[0].mxu0
  %1725 = vmatprep.mubr.bf16.mxu0 %v694
  %1726 = vmatmul.mubr.bf16.gmra.mrb[0].mxu0 %v693
  %v1727 = vpop.f32.mrb[0].mxu0
  %v1728 = vadd.f32 %v1631, %v1727
  %v1729 = vpop.f32.mrb[0].mxu0
  %v1730 = vpop.f32.mrb[0].mxu0
  %v1731 = vadd.f32 %v1634, %v1730
  %v1732 = vpop.f32.mrb[0].mxu0
  %1733 = vmatprep.mubr.bf16.mxu0 %v707
  %1734 = vmatmul.mubr.bf16.gmra.mrb[0].mxu0 %v706
  %v1735 = vpop.f32.mrb[0].mxu0
  %v1736 = vadd.f32 %v1639, %v1735
  %v1737 = vpop.f32.mrb[0].mxu0
  %v1738 = vpop.f32.mrb[0].mxu0
  %v1739 = vadd.f32 %v1642, %v1738
  %v1740 = vpop.f32.mrb[0].mxu0
  %1741 = vmatprep.mubr.bf16.mxu0 %v720
  %1742 = vmatmul.mubr.bf16.gmra.mrb[0].mxu0 %v719
  %v1743 = vpop.f32.mrb[0].mxu0
  %v1744 = vadd.f32 %v1647, %v1743
  %v1745 = vpop.f32.mrb[0].mxu0
  %v1746 = vpop.f32.mrb[0].mxu0
  %v1747 = vadd.f32 %v1650, %v1746
  %v1748 = vpop.f32.mrb[0].mxu0
  %1749 = vmatprep.mubr.bf16.mxu0 %v733
  %1750 = vmatmul.mubr.bf16.gmra.mrb[0].mxu0 %v732
  %v1751 = vpop.f32.mrb[0].mxu0
  %v1752 = vadd.f32 %v1655, %v1751
  %v1753 = vpop.f32.mrb[0].mxu0
  %v1754 = vpop.f32.mrb[0].mxu0
  %v1755 = vadd.f32 %v1658, %v1754
  %v1756 = vpop.f32.mrb[0].mxu0
  %1757 = vmatprep.mubr.bf16.mxu0 %v746
  %1758 = vmatmul.mubr.bf16.gmra.mrb[0].mxu0 %v745
  %v1759 = vpop.f32.mrb[0].mxu0
  %v1760 = vadd.f32 %v1663, %v1759
  %v1761 = vpop.f32.mrb[0].mxu0
  %v1762 = vpop.f32.mrb[0].mxu0
  %v1763 = vadd.f32 %v1666, %v1762
  %v1764 = vpop.f32.mrb[0].mxu0
  %1765 = vdwg.mxu0
  %1766 = vmatprep.subr.bf16.mxu0 0
  %1767 = vmatpush1.bf16.msra.mxu0 %v1298
  %1768 = vmatprep.subr.bf16.mxu0 0
  %1769 = vmatpush1.bf16.msra.mxu0 %v1299
  %1770 = vmatprep.subr.bf16.mxu0 0
  %1771 = vmatpush1.bf16.msra.mxu0 %v1300
  %1772 = vmatprep.subr.bf16.mxu0 0
  %1773 = vmatpush1.bf16.msra.mxu0 %v1301
  %1774 = vmatprep.subr.bf16.mxu0 0
  %1775 = vmatpush1.bf16.msra.mxu0 %v1302
  %1776 = vmatprep.subr.bf16.mxu0 0
  %1777 = vmatpush1.bf16.msra.mxu0 %v1303
  %1778 = vmatprep.subr.bf16.mxu0 0
  %1779 = vmatpush1.bf16.msra.mxu0 %v1304
  %1780 = vmatprep.subr.bf16.mxu0 0
  %1781 = vmatpush1.bf16.msra.mxu0 %v1305
  %1782 = vmatprep.subr.bf16.mxu0 0
  %1783 = vmatpush1.bf16.msra.mxu0 %v1306
  %1784 = vmatprep.subr.bf16.mxu0 0
  %1785 = vmatpush1.bf16.msra.mxu0 %v1307
  %1786 = vmatprep.subr.bf16.mxu0 0
  %1787 = vmatpush1.bf16.msra.mxu0 %v1308
  %1788 = vmatprep.subr.bf16.mxu0 0
  %1789 = vmatpush1.bf16.msra.mxu0 %v1309
  %1790 = vmatprep.subr.bf16.mxu0 0
  %1791 = vmatpush1.bf16.msra.mxu0 %v1310
  %1792 = vmatprep.subr.bf16.mxu0 0
  %1793 = vmatpush1.bf16.msra.mxu0 %v1311
  %1794 = vmatprep.subr.bf16.mxu0 0
  %1795 = vmatpush1.bf16.msra.mxu0 %v1312
  %1796 = vmatprep.subr.bf16.mxu0 0
  %1797 = vmatpush1.bf16.msra.mxu0 %v1313
  %1798 = vmatprep.mubr.bf16.mxu0 %v657
  %1799 = vmatmul.mubr.bf16.gmra.mrb[0].mxu0 %v656
  %v1800 = vpop.f32.mrb[0].mxu0
  %v1801 = vadd.f32 %v1704, %v1800
  %v1802 = vpop.f32.mrb[0].mxu0
  %v1803 = vpop.f32.mrb[0].mxu0
  %v1804 = vadd.f32 %v1707, %v1803
  %v1805 = vpop.f32.mrb[0].mxu0
  %1806 = vmatprep.mubr.bf16.mxu0 %v670
  %1807 = vmatmul.mubr.bf16.gmra.mrb[0].mxu0 %v669
  %v1808 = vpop.f32.mrb[0].mxu0
  %v1809 = vadd.f32 %v1712, %v1808
  %v1810 = vpop.f32.mrb[0].mxu0
  %v1811 = vpop.f32.mrb[0].mxu0
  %v1812 = vadd.f32 %v1715, %v1811
  %v1813 = vpop.f32.mrb[0].mxu0
  %1814 = vmatprep.mubr.bf16.mxu0 %v683
  %1815 = vmatmul.mubr.bf16.gmra.mrb[0].mxu0 %v682
  %v1816 = vpop.f32.mrb[0].mxu0
  %v1817 = vadd.f32 %v1720, %v1816
  %v1818 = vpop.f32.mrb[0].mxu0
  %v1819 = vpop.f32.mrb[0].mxu0
  %v1820 = vadd.f32 %v1723, %v1819
  %v1821 = vpop.f32.mrb[0].mxu0
  %1822 = vmatprep.mubr.bf16.mxu0 %v696
  %1823 = vmatmul.mubr.bf16.gmra.mrb[0].mxu0 %v695
  %v1824 = vpop.f32.mrb[0].mxu0
  %v1825 = vadd.f32 %v1728, %v1824
  %v1826 = vpop.f32.mrb[0].mxu0
  %v1827 = vpop.f32.mrb[0].mxu0
  %v1828 = vadd.f32 %v1731, %v1827
  %v1829 = vpop.f32.mrb[0].mxu0
  %1830 = vmatprep.mubr.bf16.mxu0 %v709
  %1831 = vmatmul.mubr.bf16.gmra.mrb[0].mxu0 %v708
  %v1832 = vpop.f32.mrb[0].mxu0
  %v1833 = vadd.f32 %v1736, %v1832
  %v1834 = vpop.f32.mrb[0].mxu0
  %v1835 = vpop.f32.mrb[0].mxu0
  %v1836 = vadd.f32 %v1739, %v1835
  %v1837 = vpop.f32.mrb[0].mxu0
  %1838 = vmatprep.mubr.bf16.mxu0 %v722
  %1839 = vmatmul.mubr.bf16.gmra.mrb[0].mxu0 %v721
  %v1840 = vpop.f32.mrb[0].mxu0
  %v1841 = vadd.f32 %v1744, %v1840
  %v1842 = vpop.f32.mrb[0].mxu0
  %v1843 = vpop.f32.mrb[0].mxu0
  %v1844 = vadd.f32 %v1747, %v1843
  %v1845 = vpop.f32.mrb[0].mxu0
  %1846 = vmatprep.mubr.bf16.mxu0 %v735
  %1847 = vmatmul.mubr.bf16.gmra.mrb[0].mxu0 %v734
  %v1848 = vpop.f32.mrb[0].mxu0
  %v1849 = vadd.f32 %v1752, %v1848
  %v1850 = vpop.f32.mrb[0].mxu0
  %v1851 = vpop.f32.mrb[0].mxu0
  %v1852 = vadd.f32 %v1755, %v1851
  %v1853 = vpop.f32.mrb[0].mxu0
  %1854 = vmatprep.mubr.bf16.mxu0 %v748
  %1855 = vmatmul.mubr.bf16.gmra.mrb[0].mxu0 %v747
  %v1856 = vpop.f32.mrb[0].mxu0
  %v1857 = vadd.f32 %v1760, %v1856
  %v1858 = vpop.f32.mrb[0].mxu0
  %v1859 = vpop.f32.mrb[0].mxu0
  %v1860 = vadd.f32 %v1763, %v1859
  %v1861 = vpop.f32.mrb[0].mxu0
  %1862 = vdwg.mxu0
  %1863 = vmatprep.subr.bf16.mxu0 0
  %1864 = vmatpush1.bf16.msra.mxu0 %v1314
  %1865 = vmatprep.subr.bf16.mxu0 0
  %1866 = vmatpush1.bf16.msra.mxu0 %v1315
  %1867 = vmatprep.subr.bf16.mxu0 0
  %1868 = vmatpush1.bf16.msra.mxu0 %v1316
  %1869 = vmatprep.subr.bf16.mxu0 0
  %1870 = vmatpush1.bf16.msra.mxu0 %v1317
  %1871 = vmatprep.subr.bf16.mxu0 0
  %1872 = vmatpush1.bf16.msra.mxu0 %v1318
  %1873 = vmatprep.subr.bf16.mxu0 0
  %1874 = vmatpush1.bf16.msra.mxu0 %v1319
  %1875 = vmatprep.subr.bf16.mxu0 0
  %1876 = vmatpush1.bf16.msra.mxu0 %v1320
  %1877 = vmatprep.subr.bf16.mxu0 0
  %1878 = vmatpush1.bf16.msra.mxu0 %v1321
  %1879 = vmatprep.subr.bf16.mxu0 0
  %1880 = vmatpush1.bf16.msra.mxu0 %v1322
  %1881 = vmatprep.subr.bf16.mxu0 0
  %1882 = vmatpush1.bf16.msra.mxu0 %v1323
  %1883 = vmatprep.subr.bf16.mxu0 0
  %1884 = vmatpush1.bf16.msra.mxu0 %v1324
  %1885 = vmatprep.subr.bf16.mxu0 0
  %1886 = vmatpush1.bf16.msra.mxu0 %v1325
  %1887 = vmatprep.subr.bf16.mxu0 0
  %1888 = vmatpush1.bf16.msra.mxu0 %v1326
  %1889 = vmatprep.subr.bf16.mxu0 0
  %1890 = vmatpush1.bf16.msra.mxu0 %v1327
  %1891 = vmatprep.subr.bf16.mxu0 0
  %1892 = vmatpush1.bf16.msra.mxu0 %v1328
  %1893 = vmatprep.subr.bf16.mxu0 0
  %1894 = vmatpush1.bf16.msra.mxu0 %v1329
  %1895 = vmatprep.mubr.bf16.mxu0 %v659
  %1896 = vmatmul.mubr.bf16.gmra.mrb[0].mxu0 %v658
  %v1897 = vpop.f32.mrb[0].mxu0
  %v1898 = vadd.f32 %v1801, %v1897
  %v1899 = vpop.f32.mrb[0].mxu0
  %v1900 = vpop.f32.mrb[0].mxu0
  %v1901 = vadd.f32 %v1804, %v1900
  %v1902 = vpop.f32.mrb[0].mxu0
  %1903 = vmatprep.mubr.bf16.mxu0 %v672
  %1904 = vmatmul.mubr.bf16.gmra.mrb[0].mxu0 %v671
  %v1905 = vpop.f32.mrb[0].mxu0
  %v1906 = vadd.f32 %v1809, %v1905
  %v1907 = vpop.f32.mrb[0].mxu0
  %v1908 = vpop.f32.mrb[0].mxu0
  %v1909 = vadd.f32 %v1812, %v1908
  %v1910 = vpop.f32.mrb[0].mxu0
  %1911 = vmatprep.mubr.bf16.mxu0 %v685
  %1912 = vmatmul.mubr.bf16.gmra.mrb[0].mxu0 %v684
  %v1913 = vpop.f32.mrb[0].mxu0
  %v1914 = vadd.f32 %v1817, %v1913
  %v1915 = vpop.f32.mrb[0].mxu0
  %v1916 = vpop.f32.mrb[0].mxu0
  %v1917 = vadd.f32 %v1820, %v1916
  %v1918 = vpop.f32.mrb[0].mxu0
  %1919 = vmatprep.mubr.bf16.mxu0 %v698
  %1920 = vmatmul.mubr.bf16.gmra.mrb[0].mxu0 %v697
  %v1921 = vpop.f32.mrb[0].mxu0
  %v1922 = vadd.f32 %v1825, %v1921
  %v1923 = vpop.f32.mrb[0].mxu0
  %v1924 = vpop.f32.mrb[0].mxu0
  %v1925 = vadd.f32 %v1828, %v1924
  %v1926 = vpop.f32.mrb[0].mxu0
  %1927 = vmatprep.mubr.bf16.mxu0 %v711
  %1928 = vmatmul.mubr.bf16.gmra.mrb[0].mxu0 %v710
  %v1929 = vpop.f32.mrb[0].mxu0
  %v1930 = vadd.f32 %v1833, %v1929
  %v1931 = vpop.f32.mrb[0].mxu0
  %v1932 = vpop.f32.mrb[0].mxu0
  %v1933 = vadd.f32 %v1836, %v1932
  %v1934 = vpop.f32.mrb[0].mxu0
  %1935 = vmatprep.mubr.bf16.mxu0 %v724
  %1936 = vmatmul.mubr.bf16.gmra.mrb[0].mxu0 %v723
  %v1937 = vpop.f32.mrb[0].mxu0
  %v1938 = vadd.f32 %v1841, %v1937
  %v1939 = vpop.f32.mrb[0].mxu0
  %v1940 = vpop.f32.mrb[0].mxu0
  %v1941 = vadd.f32 %v1844, %v1940
  %v1942 = vpop.f32.mrb[0].mxu0
  %1943 = vmatprep.mubr.bf16.mxu0 %v737
  %1944 = vmatmul.mubr.bf16.gmra.mrb[0].mxu0 %v736
  %v1945 = vpop.f32.mrb[0].mxu0
  %v1946 = vadd.f32 %v1849, %v1945
  %v1947 = vpop.f32.mrb[0].mxu0
  %v1948 = vpop.f32.mrb[0].mxu0
  %v1949 = vadd.f32 %v1852, %v1948
  %v1950 = vpop.f32.mrb[0].mxu0
  %1951 = vmatprep.mubr.bf16.mxu0 %v750
  %1952 = vmatmul.mubr.bf16.gmra.mrb[0].mxu0 %v749
  %v1953 = vpop.f32.mrb[0].mxu0
  %v1954 = vadd.f32 %v1857, %v1953
  %v1955 = vpop.f32.mrb[0].mxu0
  %v1956 = vpop.f32.mrb[0].mxu0
  %v1957 = vadd.f32 %v1860, %v1956
  %v1958 = vpop.f32.mrb[0].mxu0
  %1959 = vdwg.mxu0
  %1960 = vmatprep.subr.bf16.mxu0 0
  %1961 = vmatpush1.bf16.msra.mxu0 %v1330
  %1962 = vmatprep.subr.bf16.mxu0 0
  %1963 = vmatpush1.bf16.msra.mxu0 %v1331
  %1964 = vmatprep.subr.bf16.mxu0 0
  %1965 = vmatpush1.bf16.msra.mxu0 %v1332
  %1966 = vmatprep.subr.bf16.mxu0 0
  %1967 = vmatpush1.bf16.msra.mxu0 %v1333
  %1968 = vmatprep.subr.bf16.mxu0 0
  %1969 = vmatpush1.bf16.msra.mxu0 %v1334
  %1970 = vmatprep.subr.bf16.mxu0 0
  %1971 = vmatpush1.bf16.msra.mxu0 %v1335
  %1972 = vmatprep.subr.bf16.mxu0 0
  %1973 = vmatpush1.bf16.msra.mxu0 %v1336
  %1974 = vmatprep.subr.bf16.mxu0 0
  %1975 = vmatpush1.bf16.msra.mxu0 %v1337
  %1976 = vmatprep.subr.bf16.mxu0 0
  %1977 = vmatpush1.bf16.msra.mxu0 %v1338
  %1978 = vmatprep.subr.bf16.mxu0 0
  %1979 = vmatpush1.bf16.msra.mxu0 %v1339
  %1980 = vmatprep.subr.bf16.mxu0 0
  %1981 = vmatpush1.bf16.msra.mxu0 %v1340
  %1982 = vmatprep.subr.bf16.mxu0 0
  %1983 = vmatpush1.bf16.msra.mxu0 %v1341
  %1984 = vmatprep.subr.bf16.mxu0 0
  %1985 = vmatpush1.bf16.msra.mxu0 %v1342
  %1986 = vmatprep.subr.bf16.mxu0 0
  %1987 = vmatpush1.bf16.msra.mxu0 %v1343
  %1988 = vmatprep.subr.bf16.mxu0 0
  %1989 = vmatpush1.bf16.msra.mxu0 %v1344
  %1990 = vmatprep.subr.bf16.mxu0 0
  %1991 = vmatpush1.bf16.msra.mxu0 %v1345
  %1992 = vmatprep.mubr.bf16.mxu0 %v661
  %1993 = vmatmul.mubr.bf16.gmra.mrb[0].mxu0 %v660
  %v1994 = vpop.f32.mrb[0].mxu0
  %v1995 = vadd.f32 %v1898, %v1994
  %v1996 = vpop.f32.mrb[0].mxu0
  %v1997 = vpop.f32.mrb[0].mxu0
  %v1998 = vadd.f32 %v1901, %v1997
  %v1999 = vpop.f32.mrb[0].mxu0
  %2000 = vmatprep.mubr.bf16.mxu0 %v674
  %2001 = vmatmul.mubr.bf16.gmra.mrb[0].mxu0 %v673
  %v2002 = vpop.f32.mrb[0].mxu0
  %v2003 = vadd.f32 %v1906, %v2002
  %v2004 = vpop.f32.mrb[0].mxu0
  %v2005 = vpop.f32.mrb[0].mxu0
  %v2006 = vadd.f32 %v1909, %v2005
  %v2007 = vpop.f32.mrb[0].mxu0
  %2008 = vmatprep.mubr.bf16.mxu0 %v687
  %2009 = vmatmul.mubr.bf16.gmra.mrb[0].mxu0 %v686
  %v2010 = vpop.f32.mrb[0].mxu0
  %v2011 = vadd.f32 %v1914, %v2010
  %v2012 = vpop.f32.mrb[0].mxu0
  %v2013 = vpop.f32.mrb[0].mxu0
  %v2014 = vadd.f32 %v1917, %v2013
  %v2015 = vpop.f32.mrb[0].mxu0
  %2016 = vmatprep.mubr.bf16.mxu0 %v700
  %2017 = vmatmul.mubr.bf16.gmra.mrb[0].mxu0 %v699
  %v2018 = vpop.f32.mrb[0].mxu0
  %v2019 = vadd.f32 %v1922, %v2018
  %v2020 = vpop.f32.mrb[0].mxu0
  %v2021 = vpop.f32.mrb[0].mxu0
  %v2022 = vadd.f32 %v1925, %v2021
  %v2023 = vpop.f32.mrb[0].mxu0
  %2024 = vmatprep.mubr.bf16.mxu0 %v713
  %2025 = vmatmul.mubr.bf16.gmra.mrb[0].mxu0 %v712
  %v2026 = vpop.f32.mrb[0].mxu0
  %v2027 = vadd.f32 %v1930, %v2026
  %v2028 = vpop.f32.mrb[0].mxu0
  %v2029 = vpop.f32.mrb[0].mxu0
  %v2030 = vadd.f32 %v1933, %v2029
  %v2031 = vpop.f32.mrb[0].mxu0
  %2032 = vmatprep.mubr.bf16.mxu0 %v726
  %2033 = vmatmul.mubr.bf16.gmra.mrb[0].mxu0 %v725
  %v2034 = vpop.f32.mrb[0].mxu0
  %v2035 = vadd.f32 %v1938, %v2034
  %v2036 = vpop.f32.mrb[0].mxu0
  %v2037 = vpop.f32.mrb[0].mxu0
  %v2038 = vadd.f32 %v1941, %v2037
  %v2039 = vpop.f32.mrb[0].mxu0
  %2040 = vmatprep.mubr.bf16.mxu0 %v739
  %2041 = vmatmul.mubr.bf16.gmra.mrb[0].mxu0 %v738
  %v2042 = vpop.f32.mrb[0].mxu0
  %v2043 = vadd.f32 %v1946, %v2042
  %v2044 = vpop.f32.mrb[0].mxu0
  %v2045 = vpop.f32.mrb[0].mxu0
  %v2046 = vadd.f32 %v1949, %v2045
  %v2047 = vpop.f32.mrb[0].mxu0
  %2048 = vmatprep.mubr.bf16.mxu0 %v752
  %2049 = vmatmul.mubr.bf16.gmra.mrb[0].mxu0 %v751
  %v2050 = vpop.f32.mrb[0].mxu0
  %v2051 = vadd.f32 %v1954, %v2050
  %v2052 = vpop.f32.mrb[0].mxu0
  %v2053 = vpop.f32.mrb[0].mxu0
  %v2054 = vadd.f32 %v1957, %v2053
  %v2055 = vpop.f32.mrb[0].mxu0
  %2056 = vdwg.mxu0
  %2057 = vmatprep.subr.bf16.mxu0 0
  %2058 = vmatpush1.bf16.msra.mxu0 %v1346
  %2059 = vmatprep.subr.bf16.mxu0 0
  %2060 = vmatpush1.bf16.msra.mxu0 %v1347
  %2061 = vmatprep.subr.bf16.mxu0 0
  %2062 = vmatpush1.bf16.msra.mxu0 %v1348
  %2063 = vmatprep.subr.bf16.mxu0 0
  %2064 = vmatpush1.bf16.msra.mxu0 %v1349
  %2065 = vmatprep.subr.bf16.mxu0 0
  %2066 = vmatpush1.bf16.msra.mxu0 0
  %2067 = vmatprep.subr.bf16.mxu0 0
  %2068 = vmatpush1.bf16.msra.mxu0 0
  %2069 = vmatprep.subr.bf16.mxu0 0
  %2070 = vmatpush1.bf16.msra.mxu0 0
  %2071 = vmatprep.subr.bf16.mxu0 0
  %2072 = vmatpush1.bf16.msra.mxu0 0
  %2073 = vmatprep.subr.bf16.mxu0 0
  %2074 = vmatpush1.bf16.msra.mxu0 0
  %2075 = vmatprep.subr.bf16.mxu0 0
  %2076 = vmatpush1.bf16.msra.mxu0 0
  %2077 = vmatprep.subr.bf16.mxu0 0
  %2078 = vmatpush1.bf16.msra.mxu0 0
  %2079 = vmatprep.subr.bf16.mxu0 0
  %2080 = vmatpush1.bf16.msra.mxu0 0
  %2081 = vmatprep.subr.bf16.mxu0 0
  %2082 = vmatpush1.bf16.msra.mxu0 0
  %2083 = vmatprep.subr.bf16.mxu0 0
  %2084 = vmatpush1.bf16.msra.mxu0 0
  %2085 = vmatprep.subr.bf16.mxu0 0
  %2086 = vmatpush1.bf16.msra.mxu0 0
  %2087 = vmatprep.subr.bf16.mxu0 0
  %2088 = vmatpush1.bf16.msra.mxu0 0
  %2089 = vmatprep.mubr.bf16.mxu0 0
  %2090 = vmatmul.mubr.bf16.gmra.mrb[0].mxu0 %v1452
  %v2091 = vpop.f32.mrb[0].mxu0
  %v2092 = vadd.f32 %v1995, %v2091
  %v2093 = vpop.f32.mrb[0].mxu0
  %v2094 = vpop.f32.mrb[0].mxu0
  %v2095 = vadd.f32 %v1998, %v2094
  %v2096 = vpop.f32.mrb[0].mxu0
  %2097 = vmatprep.mubr.bf16.mxu0 0
  %2098 = vmatmul.mubr.bf16.gmra.mrb[0].mxu0 %v1455
  %v2099 = vpop.f32.mrb[0].mxu0
  %v2100 = vadd.f32 %v2003, %v2099
  %v2101 = vpop.f32.mrb[0].mxu0
  %v2102 = vpop.f32.mrb[0].mxu0
  %v2103 = vadd.f32 %v2006, %v2102
  %v2104 = vpop.f32.mrb[0].mxu0
  %2105 = vmatprep.mubr.bf16.mxu0 0
  %2106 = vmatmul.mubr.bf16.gmra.mrb[0].mxu0 %v1458
  %v2107 = vpop.f32.mrb[0].mxu0
  %v2108 = vadd.f32 %v2011, %v2107
  %v2109 = vpop.f32.mrb[0].mxu0
  %v2110 = vpop.f32.mrb[0].mxu0
  %v2111 = vadd.f32 %v2014, %v2110
  %v2112 = vpop.f32.mrb[0].mxu0
  %2113 = vmatprep.mubr.bf16.mxu0 0
  %2114 = vmatmul.mubr.bf16.gmra.mrb[0].mxu0 %v1461
  %v2115 = vpop.f32.mrb[0].mxu0
  %v2116 = vadd.f32 %v2019, %v2115
  %v2117 = vpop.f32.mrb[0].mxu0
  %v2118 = vpop.f32.mrb[0].mxu0
  %v2119 = vadd.f32 %v2022, %v2118
  %v2120 = vpop.f32.mrb[0].mxu0
  %2121 = vmatprep.mubr.bf16.mxu0 0
  %2122 = vmatmul.mubr.bf16.gmra.mrb[0].mxu0 %v1464
  %v2123 = vpop.f32.mrb[0].mxu0
  %v2124 = vadd.f32 %v2027, %v2123
  %v2125 = vpop.f32.mrb[0].mxu0
  %v2126 = vpop.f32.mrb[0].mxu0
  %v2127 = vadd.f32 %v2030, %v2126
  %v2128 = vpop.f32.mrb[0].mxu0
  %2129 = vmatprep.mubr.bf16.mxu0 0
  %2130 = vmatmul.mubr.bf16.gmra.mrb[0].mxu0 %v1467
  %v2131 = vpop.f32.mrb[0].mxu0
  %v2132 = vadd.f32 %v2035, %v2131
  %v2133 = vpop.f32.mrb[0].mxu0
  %v2134 = vpop.f32.mrb[0].mxu0
  %v2135 = vadd.f32 %v2038, %v2134
  %v2136 = vpop.f32.mrb[0].mxu0
  %2137 = vmatprep.mubr.bf16.mxu0 0
  %2138 = vmatmul.mubr.bf16.gmra.mrb[0].mxu0 %v1470
  %v2139 = vpop.f32.mrb[0].mxu0
  %v2140 = vadd.f32 %v2043, %v2139
  %v2141 = vpop.f32.mrb[0].mxu0
  %v2142 = vpop.f32.mrb[0].mxu0
  %v2143 = vadd.f32 %v2046, %v2142
  %v2144 = vpop.f32.mrb[0].mxu0
  %2145 = vmatprep.mubr.bf16.mxu0 0
  %2146 = vmatmul.mubr.bf16.gmra.mrb[0].mxu0 %v1473
  %v2147 = vpop.f32.mrb[0].mxu0
  %v2148 = vadd.f32 %v2051, %v2147
  %v2149 = vpop.f32.mrb[0].mxu0
  %v2150 = vpop.f32.mrb[0].mxu0
  %v2151 = vadd.f32 %v2054, %v2150
  %v2152 = vpop.f32.mrb[0].mxu0
  %2153 = vdwg.mxu0
  %v2154 = vld [vmem:[%s2] sm:$0x1]
  %v2156 = vlaneseq
  %v2157 = vshrl.u32 %v2156, 7
  %v2158 = vsub.s32 0, %v2157
  %v2159 = vrot.slane %v2154, %v2158
  %v2161 = vmul.f32 %v2092, %v2159
  %v2162 = vmul.f32 %v2095, %v2159
  %v2163 = vmul.f32 %v2100, %v2159
  %v2164 = vmul.f32 %v2103, %v2159
  %v2165 = vmul.f32 %v2108, %v2159
  %v2166 = vmul.f32 %v2111, %v2159
  %v2167 = vmul.f32 %v2116, %v2159
  %v2168 = vmul.f32 %v2119, %v2159
  %v2169 = vmul.f32 %v2124, %v2159
  %v2170 = vmul.f32 %v2127, %v2159
  %v2171 = vmul.f32 %v2132, %v2159
  %v2172 = vmul.f32 %v2135, %v2159
  %v2173 = vmul.f32 %v2140, %v2159
  %v2174 = vmul.f32 %v2143, %v2159
  %v2175 = vmul.f32 %v2148, %v2159
  %v2176 = vmul.f32 %v2151, %v2159
  %v2177 = vld [vmem:[%s3] sm:$0x1]
  %v2179 = vlaneseq
  %v2180 = vshrl.u32 %v2179, 7
  %v2181 = vsub.s32 0, %v2180
  %v2182 = vrot.slane %v2177, %v2181
  %v2184 = vadd.f32 %v2161, %v2182
  %v2185 = vadd.f32 %v2162, %v2182
  %v2186 = vadd.f32 %v2163, %v2182
  %v2187 = vadd.f32 %v2164, %v2182
  %v2188 = vadd.f32 %v2165, %v2182
  %v2189 = vadd.f32 %v2166, %v2182
  %v2190 = vadd.f32 %v2167, %v2182
  %v2191 = vadd.f32 %v2168, %v2182
  %v2192 = vadd.f32 %v2169, %v2182
  %v2193 = vadd.f32 %v2170, %v2182
  %v2194 = vadd.f32 %v2171, %v2182
  %v2195 = vadd.f32 %v2172, %v2182
  %v2196 = vadd.f32 %v2173, %v2182
  %v2197 = vadd.f32 %v2174, %v2182
  %v2198 = vadd.f32 %v2175, %v2182
  %v2199 = vadd.f32 %v2176, %v2182
  %vm2200 = vcmask 408576
  %2201 = vst.msk [vmem:[%s4] sm:$0xff] %vm2200, %v2184
  %2202 = vst.msk [vmem:[%s4 + $0x8] sm:$0xff] %vm2200, %v2185
  %2203 = vst.msk [vmem:[%s4 + $0x10] sm:$0xff] %vm2200, %v2186
  %2204 = vst.msk [vmem:[%s4 + $0x18] sm:$0xff] %vm2200, %v2187
  %2205 = vst.msk [vmem:[%s4 + $0x20] sm:$0xff] %vm2200, %v2188
  %2206 = vst.msk [vmem:[%s4 + $0x28] sm:$0xff] %vm2200, %v2189
  %2207 = vst.msk [vmem:[%s4 + $0x30] sm:$0xff] %vm2200, %v2190
  %2208 = vst.msk [vmem:[%s4 + $0x38] sm:$0xff] %vm2200, %v2191
  %2209 = vst.msk [vmem:[%s4 + $0x40] sm:$0xff] %vm2200, %v2192
  %2210 = vst.msk [vmem:[%s4 + $0x48] sm:$0xff] %vm2200, %v2193
  %2211 = vst.msk [vmem:[%s4 + $0x50] sm:$0xff] %vm2200, %v2194
  %2212 = vst.msk [vmem:[%s4 + $0x58] sm:$0xff] %vm2200, %v2195
  %2213 = vst.msk [vmem:[%s4 + $0x60] sm:$0xff] %vm2200, %v2196
  %2214 = vst.msk [vmem:[%s4 + $0x68] sm:$0xff] %vm2200, %v2197
  %2215 = vst.msk [vmem:[%s4 + $0x70] sm:$0xff] %vm2200, %v2198
  %2216 = vst.msk [vmem:[%s4 + $0x78] sm:$0xff] %vm2200, %v2199
  // Predicated region
  $region18: #{dda_forward.7} parent=0 // pred_check
    _
  $region19: #{dda_forward.7} parent=0 // pred_check_branch
    %2218 = sbr.rel (0) target = $region21
  $region20: #{dda_forward.7} parent=0 // pred_region
    _
  $region21: #{dda_forward.7} parent=0 // pred_fallthru
    _
  // Predicated region
  $region22: #{dda_forward.7} parent=0 // pred_check
    _
  $region23: #{dda_forward.7} parent=0 // pred_check_branch
    %2220 = sbr.rel (0) target = $region25
  $region24: #{dda_forward.7} parent=0 // pred_region
    _
  $region25: #{dda_forward.7} parent=0 // pred_fallthru
    _

// kernel: dda_forward.9
$region0: #{dda_forward.9}
  #allocation0 [shape = 'u32[]', space=smem, size = 0x4, offset = 0x4, fixed_abs, tag = 'smem constant byte address 0x4 - core index']
  #allocation1 [shape = 'u32[144,128]{1,0:T(1,128)}', space=vmem, size = 0x12000, scoped, tag = 'internal scratch']
  %s0 = inlined_call_operand.vmem [shape: bf16[8,800], index: 0, kind: input, shape index: {}]
  %s1 = inlined_call_operand.vmem [shape: bf16[800,256], index: 1, kind: input, shape index: {}]
  %s2 = inlined_call_operand.vmem [shape: f32[1,256], index: 2, kind: input, shape index: {}]
  %s3 = inlined_call_operand.vmem [shape: f32[1,256], index: 3, kind: input, shape index: {}]
  %s4 = inlined_call_operand.vmem [shape: bf16[128,128], index: 4, kind: input, shape index: {}]
  %s5 = inlined_call_operand.vmem [shape: f32[1,128], index: 5, kind: input, shape index: {}]
  %s6 = inlined_call_operand.vmem [shape: f32[1,128], index: 6, kind: input, shape index: {}]
  %s7 = inlined_call_operand.vmem [shape: bf16[128,10], index: 7, kind: input, shape index: {}]
  %s8 = inlined_call_operand.vmem [shape: f32[1,10], index: 8, kind: input, shape index: {}]
  %s9 = inlined_call_operand.vmem [shape: bf16[128,2], index: 9, kind: input, shape index: {}]
  %s10 = inlined_call_operand.vmem [shape: f32[1,2], index: 10, kind: input, shape index: {}]
  %s11 = inlined_call_operand.vmem [shape: f32[8,10], index: 11, kind: output, shape index: {0}]
  %s12 = inlined_call_operand.vmem [shape: f32[8,2], index: 12, kind: output, shape index: {1}]
  %13 = xla_tuple %s11, %s12
  %s14 = sld [smem:[#allocation0]]
  $region62: #{dda_forward.9} parent=0
    _
  %s16 = ssub.s32 1, %s14
  %s17 = scalar_select 0, %s16, %s14
  // Predicated region
  $region2: #{dda_forward.9} parent=0 // pred_check
    _
  $region3: #{dda_forward.9} parent=0 // pred_check_branch
    %19 = sbr.rel (0) target = $region5
  $region4: #{dda_forward.9} parent=0 // pred_region
    _
  $region5: #{dda_forward.9} parent=0 // pred_fallthru
    _
  // Predicated region
  $region6: #{dda_forward.9} parent=0 // pred_check
    _
  $region7: #{dda_forward.9} parent=0 // pred_check_branch
    %21 = sbr.rel (0) target = $region9
  $region8: #{dda_forward.9} parent=0 // pred_region
    _
  $region9: #{dda_forward.9} parent=0 // pred_fallthru
    _
  // Predicated region
  $region10: #{dda_forward.9} parent=0 // pred_check
    _
  $region11: #{dda_forward.9} parent=0 // pred_check_branch
    %23 = sbr.rel (0) target = $region13
  $region12: #{dda_forward.9} parent=0 // pred_region
    _
  $region13: #{dda_forward.9} parent=0 // pred_fallthru
    _
  // Predicated region
  $region14: #{dda_forward.9} parent=0 // pred_check
    _
  $region15: #{dda_forward.9} parent=0 // pred_check_branch
    %25 = sbr.rel (0) target = $region17
  $region16: #{dda_forward.9} parent=0 // pred_region
    _
  $region17: #{dda_forward.9} parent=0 // pred_fallthru
    _
  // Predicated region
  $region18: #{dda_forward.9} parent=0 // pred_check
    _
  $region19: #{dda_forward.9} parent=0 // pred_check_branch
    %27 = sbr.rel (0) target = $region21
  $region20: #{dda_forward.9} parent=0 // pred_region
    _
  $region21: #{dda_forward.9} parent=0 // pred_fallthru
    _
  // Predicated region
  $region22: #{dda_forward.9} parent=0 // pred_check
    _
  $region23: #{dda_forward.9} parent=0 // pred_check_branch
    %29 = sbr.rel (0) target = $region25
  $region24: #{dda_forward.9} parent=0 // pred_region
    _
  $region25: #{dda_forward.9} parent=0 // pred_fallthru
    _
  // Predicated region
  $region26: #{dda_forward.9} parent=0 // pred_check
    _
  $region27: #{dda_forward.9} parent=0 // pred_check_branch
    %31 = sbr.rel (0) target = $region29
  $region28: #{dda_forward.9} parent=0 // pred_region
    _
  $region29: #{dda_forward.9} parent=0 // pred_fallthru
    _
  // Predicated region
  $region30: #{dda_forward.9} parent=0 // pred_check
    _
  $region31: #{dda_forward.9} parent=0 // pred_check_branch
    %33 = sbr.rel (0) target = $region33
  $region32: #{dda_forward.9} parent=0 // pred_region
    _
  $region33: #{dda_forward.9} parent=0 // pred_fallthru
    _
  // Predicated region
  $region34: #{dda_forward.9} parent=0 // pred_check
    _
  $region35: #{dda_forward.9} parent=0 // pred_check_branch
    %35 = sbr.rel (0) target = $region37
  $region36: #{dda_forward.9} parent=0 // pred_region
    _
  $region37: #{dda_forward.9} parent=0 // pred_fallthru
    _
  // Predicated region
  $region38: #{dda_forward.9} parent=0 // pred_check
    _
  $region39: #{dda_forward.9} parent=0 // pred_check_branch
    %37 = sbr.rel (0) target = $region41
  $region40: #{dda_forward.9} parent=0 // pred_region
    _
  $region41: #{dda_forward.9} parent=0 // pred_fallthru
    _
  // Predicated region
  $region42: #{dda_forward.9} parent=0 // pred_check
    _
  $region43: #{dda_forward.9} parent=0 // pred_check_branch
    %39 = sbr.rel (0) target = $region45
  $region44: #{dda_forward.9} parent=0 // pred_region
    _
  $region45: #{dda_forward.9} parent=0 // pred_fallthru
    _
  %v41 = vld [vmem:[%s0] sm:$0xff]
  %v42 = vld [vmem:[%s0 + $0x8] sm:$0xff]
  %v43 = vld [vmem:[%s0 + $0x10] sm:$0xff]
  %v44 = vld [vmem:[%s0 + $0x18] sm:$0xf]
  %v45 = vld [vmem:[%s1] sm:$0xff]
  %v46 = vld [vmem:[%s1 + $0x8] sm:$0xff]
  %v47 = vld [vmem:[%s1 + $0x10] sm:$0xff]
  %v48 = vld [vmem:[%s1 + $0x18] sm:$0xff]
  %v49 = vld [vmem:[%s1 + $0x20] sm:$0xff]
  %v50 = vld [vmem:[%s1 + $0x28] sm:$0xff]
  %v51 = vld [vmem:[%s1 + $0x30] sm:$0xff]
  %v52 = vld [vmem:[%s1 + $0x38] sm:$0xff]
  %v53 = vld [vmem:[%s1 + $0x40] sm:$0xff]
  %v54 = vld [vmem:[%s1 + $0x48] sm:$0xff]
  %v55 = vld [vmem:[%s1 + $0x50] sm:$0xff]
  %v56 = vld [vmem:[%s1 + $0x58] sm:$0xff]
  %v57 = vld [vmem:[%s1 + $0x60] sm:$0xff]
  %v58 = vld [vmem:[%s1 + $0x68] sm:$0xff]
  %v59 = vld [vmem:[%s1 + $0x70] sm:$0xff]
  %v60 = vld [vmem:[%s1 + $0x78] sm:$0xff]
  %v61 = vld [vmem:[%s1 + $0x80] sm:$0xff]
  %v62 = vld [vmem:[%s1 + $0x88] sm:$0xff]
  %v63 = vld [vmem:[%s1 + $0x90] sm:$0xff]
  %v64 = vld [vmem:[%s1 + $0x98] sm:$0xff]
  %v65 = vld [vmem:[%s1 + $0xa0] sm:$0xff]
  %v66 = vld [vmem:[%s1 + $0xa8] sm:$0xff]
  %v67 = vld [vmem:[%s1 + $0xb0] sm:$0xff]
  %v68 = vld [vmem:[%s1 + $0xb8] sm:$0xff]
  %v69 = vld [vmem:[%s1 + $0xc0] sm:$0xff]
  %v70 = vld [vmem:[%s1 + $0xc8] sm:$0xff]
  %v71 = vld [vmem:[%s1 + $0xd0] sm:$0xff]
  %v72 = vld [vmem:[%s1 + $0xd8] sm:$0xff]
  %v73 = vld [vmem:[%s1 + $0xe0] sm:$0xff]
  %v74 = vld [vmem:[%s1 + $0xe8] sm:$0xff]
  %v75 = vld [vmem:[%s1 + $0xf0] sm:$0xff]
  %v76 = vld [vmem:[%s1 + $0xf8] sm:$0xff]
  %v77 = vld [vmem:[%s1 + $0x100] sm:$0xff]
  %v78 = vld [vmem:[%s1 + $0x108] sm:$0xff]
  %v79 = vld [vmem:[%s1 + $0x110] sm:$0xff]
  %v80 = vld [vmem:[%s1 + $0x118] sm:$0xff]
  %v81 = vld [vmem:[%s1 + $0x120] sm:$0xff]
  %v82 = vld [vmem:[%s1 + $0x128] sm:$0xff]
  %v83 = vld [vmem:[%s1 + $0x130] sm:$0xff]
  %v84 = vld [vmem:[%s1 + $0x138] sm:$0xff]
  %v85 = vld [vmem:[%s1 + $0x140] sm:$0xff]
  %v86 = vld [vmem:[%s1 + $0x148] sm:$0xff]
  %v87 = vld [vmem:[%s1 + $0x150] sm:$0xff]
  %v88 = vld [vmem:[%s1 + $0x158] sm:$0xff]
  %v89 = vld [vmem:[%s1 + $0x160] sm:$0xff]
  %v90 = vld [vmem:[%s1 + $0x168] sm:$0xff]
  %v91 = vld [vmem:[%s1 + $0x170] sm:$0xff]
  %v92 = vld [vmem:[%s1 + $0x178] sm:$0xff]
  %v93 = vld [vmem:[%s1 + $0x180] sm:$0xff]
  %v94 = vld [vmem:[%s1 + $0x188] sm:$0xff]
  %v95 = vld [vmem:[%s1 + $0x190] sm:$0xff]
  %v96 = vld [vmem:[%s1 + $0x198] sm:$0xff]
  %v97 = vld [vmem:[%s1 + $0x1a0] sm:$0xff]
  %v98 = vld [vmem:[%s1 + $0x1a8] sm:$0xff]
  %v99 = vld [vmem:[%s1 + $0x1b0] sm:$0xff]
  %v100 = vld [vmem:[%s1 + $0x1b8] sm:$0xff]
  %v101 = vld [vmem:[%s1 + $0x1c0] sm:$0xff]
  %v102 = vld [vmem:[%s1 + $0x1c8] sm:$0xff]
  %v103 = vld [vmem:[%s1 + $0x1d0] sm:$0xff]
  %v104 = vld [vmem:[%s1 + $0x1d8] sm:$0xff]
  %v105 = vld [vmem:[%s1 + $0x1e0] sm:$0xff]
  %v106 = vld [vmem:[%s1 + $0x1e8] sm:$0xff]
  %v107 = vld [vmem:[%s1 + $0x1f0] sm:$0xff]
  %v108 = vld [vmem:[%s1 + $0x1f8] sm:$0xff]
  %v109 = vld [vmem:[%s1 + $0x200] sm:$0xff]
  %v110 = vld [vmem:[%s1 + $0x208] sm:$0xff]
  %v111 = vld [vmem:[%s1 + $0x210] sm:$0xff]
  %v112 = vld [vmem:[%s1 + $0x218] sm:$0xff]
  %v113 = vld [vmem:[%s1 + $0x220] sm:$0xff]
  %v114 = vld [vmem:[%s1 + $0x228] sm:$0xff]
  %v115 = vld [vmem:[%s1 + $0x230] sm:$0xff]
  %v116 = vld [vmem:[%s1 + $0x238] sm:$0xff]
  %v117 = vld [vmem:[%s1 + $0x240] sm:$0xff]
  %v118 = vld [vmem:[%s1 + $0x248] sm:$0xff]
  %v119 = vld [vmem:[%s1 + $0x250] sm:$0xff]
  %v120 = vld [vmem:[%s1 + $0x258] sm:$0xff]
  %v121 = vld [vmem:[%s1 + $0x260] sm:$0xff]
  %v122 = vld [vmem:[%s1 + $0x268] sm:$0xff]
  %v123 = vld [vmem:[%s1 + $0x270] sm:$0xff]
  %v124 = vld [vmem:[%s1 + $0x278] sm:$0xff]
  %v125 = vld [vmem:[%s1 + $0x280] sm:$0xff]
  %v126 = vld [vmem:[%s1 + $0x288] sm:$0xff]
  %v127 = vld [vmem:[%s1 + $0x290] sm:$0xff]
  %v128 = vld [vmem:[%s1 + $0x298] sm:$0xff]
  %v129 = vld [vmem:[%s1 + $0x2a0] sm:$0xff]
  %v130 = vld [vmem:[%s1 + $0x2a8] sm:$0xff]
  %v131 = vld [vmem:[%s1 + $0x2b0] sm:$0xff]
  %v132 = vld [vmem:[%s1 + $0x2b8] sm:$0xff]
  %v133 = vld [vmem:[%s1 + $0x2c0] sm:$0xff]
  %v134 = vld [vmem:[%s1 + $0x2c8] sm:$0xff]
  %v135 = vld [vmem:[%s1 + $0x2d0] sm:$0xff]
  %v136 = vld [vmem:[%s1 + $0x2d8] sm:$0xff]
  %v137 = vld [vmem:[%s1 + $0x2e0] sm:$0xff]
  %v138 = vld [vmem:[%s1 + $0x2e8] sm:$0xff]
  %v139 = vld [vmem:[%s1 + $0x2f0] sm:$0xff]
  %v140 = vld [vmem:[%s1 + $0x2f8] sm:$0xff]
  %v141 = vld [vmem:[%s1 + $0x300] sm:$0xff]
  %v142 = vld [vmem:[%s1 + $0x308] sm:$0xff]
  %v143 = vld [vmem:[%s1 + $0x310] sm:$0xff]
  %v144 = vld [vmem:[%s1 + $0x318] sm:$0xff]
  %v149 = vunpack.c.l.b16 %v41
  %v150 = vunpack.c.h.b16 %v41
  %v151 = vunpack.c.l.b16 %v42
  %v152 = vunpack.c.h.b16 %v42
  %v153 = vunpack.c.l.b16 %v43
  %v154 = vunpack.c.h.b16 %v43
  %v155 = vunpack.c.l.b16 %v44
  %v156 = vpack.c.b16 %v149, %v149
  %v157 = vpack.c.b16 %v150, %v150
  %v158 = vpack.c.b16 %v151, %v151
  %v159 = vpack.c.b16 %v152, %v152
  %v160 = vpack.c.b16 %v153, %v153
  %v161 = vpack.c.b16 %v154, %v154
  %v162 = vpack.c.b16 %v155, %v155
  %v269 = vunpack.c.l.b16 %v45
  %v270 = vunpack.c.h.b16 %v45
  %v271 = vunpack.c.l.b16 %v46
  %v272 = vunpack.c.h.b16 %v46
  %v273 = vunpack.c.l.b16 %v47
  %v274 = vunpack.c.h.b16 %v47
  %v275 = vunpack.c.l.b16 %v48
  %v276 = vunpack.c.h.b16 %v48
  %v277 = vunpack.c.l.b16 %v49
  %v278 = vunpack.c.h.b16 %v49
  %v279 = vunpack.c.l.b16 %v50
  %v280 = vunpack.c.h.b16 %v50
  %v281 = vunpack.c.l.b16 %v51
  %v282 = vunpack.c.h.b16 %v51
  %v283 = vunpack.c.l.b16 %v52
  %v284 = vunpack.c.h.b16 %v52
  %v285 = vunpack.c.l.b16 %v53
  %v286 = vunpack.c.h.b16 %v53
  %v287 = vunpack.c.l.b16 %v54
  %v288 = vunpack.c.h.b16 %v54
  %v289 = vunpack.c.l.b16 %v55
  %v290 = vunpack.c.h.b16 %v55
  %v291 = vunpack.c.l.b16 %v56
  %v292 = vunpack.c.h.b16 %v56
  %v293 = vunpack.c.l.b16 %v57
  %v294 = vunpack.c.h.b16 %v57
  %v295 = vunpack.c.l.b16 %v58
  %v296 = vunpack.c.h.b16 %v58
  %v297 = vunpack.c.l.b16 %v59
  %v298 = vunpack.c.h.b16 %v59
  %v299 = vunpack.c.l.b16 %v60
  %v300 = vunpack.c.h.b16 %v60
  %v301 = vunpack.c.l.b16 %v61
  %v302 = vunpack.c.h.b16 %v61
  %v303 = vunpack.c.l.b16 %v62
  %v304 = vunpack.c.h.b16 %v62
  %v305 = vunpack.c.l.b16 %v63
  %v306 = vunpack.c.h.b16 %v63
  %v307 = vunpack.c.l.b16 %v64
  %v308 = vunpack.c.h.b16 %v64
  %v309 = vunpack.c.l.b16 %v65
  %v310 = vunpack.c.h.b16 %v65
  %v311 = vunpack.c.l.b16 %v66
  %v312 = vunpack.c.h.b16 %v66
  %v313 = vunpack.c.l.b16 %v67
  %v314 = vunpack.c.h.b16 %v67
  %v315 = vunpack.c.l.b16 %v68
  %v316 = vunpack.c.h.b16 %v68
  %v317 = vunpack.c.l.b16 %v69
  %v318 = vunpack.c.h.b16 %v69
  %v319 = vunpack.c.l.b16 %v70
  %v320 = vunpack.c.h.b16 %v70
  %v321 = vunpack.c.l.b16 %v71
  %v322 = vunpack.c.h.b16 %v71
  %v323 = vunpack.c.l.b16 %v72
  %v324 = vunpack.c.h.b16 %v72
  %v325 = vunpack.c.l.b16 %v73
  %v326 = vunpack.c.h.b16 %v73
  %v327 = vunpack.c.l.b16 %v74
  %v328 = vunpack.c.h.b16 %v74
  %v329 = vunpack.c.l.b16 %v75
  %v330 = vunpack.c.h.b16 %v75
  %v331 = vunpack.c.l.b16 %v76
  %v332 = vunpack.c.h.b16 %v76
  %v333 = vunpack.c.l.b16 %v77
  %v334 = vunpack.c.h.b16 %v77
  %v335 = vunpack.c.l.b16 %v78
  %v336 = vunpack.c.h.b16 %v78
  %v337 = vunpack.c.l.b16 %v79
  %v338 = vunpack.c.h.b16 %v79
  %v339 = vunpack.c.l.b16 %v80
  %v340 = vunpack.c.h.b16 %v80
  %v341 = vunpack.c.l.b16 %v81
  %v342 = vunpack.c.h.b16 %v81
  %v343 = vunpack.c.l.b16 %v82
  %v344 = vunpack.c.h.b16 %v82
  %v345 = vunpack.c.l.b16 %v83
  %v346 = vunpack.c.h.b16 %v83
  %v347 = vunpack.c.l.b16 %v84
  %v348 = vunpack.c.h.b16 %v84
  %v349 = vunpack.c.l.b16 %v85
  %v350 = vunpack.c.h.b16 %v85
  %v351 = vunpack.c.l.b16 %v86
  %v352 = vunpack.c.h.b16 %v86
  %v353 = vunpack.c.l.b16 %v87
  %v354 = vunpack.c.h.b16 %v87
  %v355 = vunpack.c.l.b16 %v88
  %v356 = vunpack.c.h.b16 %v88
  %v357 = vunpack.c.l.b16 %v89
  %v358 = vunpack.c.h.b16 %v89
  %v359 = vunpack.c.l.b16 %v90
  %v360 = vunpack.c.h.b16 %v90
  %v361 = vunpack.c.l.b16 %v91
  %v362 = vunpack.c.h.b16 %v91
  %v363 = vunpack.c.l.b16 %v92
  %v364 = vunpack.c.h.b16 %v92
  %v365 = vunpack.c.l.b16 %v93
  %v366 = vunpack.c.h.b16 %v93
  %v367 = vunpack.c.l.b16 %v94
  %v368 = vunpack.c.h.b16 %v94
  %v369 = vunpack.c.l.b16 %v95
  %v370 = vunpack.c.h.b16 %v95
  %v371 = vunpack.c.l.b16 %v96
  %v372 = vunpack.c.h.b16 %v96
  %v373 = vunpack.c.l.b16 %v97
  %v374 = vunpack.c.h.b16 %v97
  %v375 = vunpack.c.l.b16 %v98
  %v376 = vunpack.c.h.b16 %v98
  %v377 = vunpack.c.l.b16 %v99
  %v378 = vunpack.c.h.b16 %v99
  %v379 = vunpack.c.l.b16 %v100
  %v380 = vunpack.c.h.b16 %v100
  %v381 = vunpack.c.l.b16 %v101
  %v382 = vunpack.c.h.b16 %v101
  %v383 = vunpack.c.l.b16 %v102
  %v384 = vunpack.c.h.b16 %v102
  %v385 = vunpack.c.l.b16 %v103
  %v386 = vunpack.c.h.b16 %v103
  %v387 = vunpack.c.l.b16 %v104
  %v388 = vunpack.c.h.b16 %v104
  %v389 = vunpack.c.l.b16 %v105
  %v390 = vunpack.c.h.b16 %v105
  %v391 = vunpack.c.l.b16 %v106
  %v392 = vunpack.c.h.b16 %v106
  %v393 = vunpack.c.l.b16 %v107
  %v394 = vunpack.c.h.b16 %v107
  %v395 = vunpack.c.l.b16 %v108
  %v396 = vunpack.c.h.b16 %v108
  %v397 = vunpack.c.l.b16 %v109
  %v398 = vunpack.c.h.b16 %v109
  %v399 = vunpack.c.l.b16 %v110
  %v400 = vunpack.c.h.b16 %v110
  %v401 = vunpack.c.l.b16 %v111
  %v402 = vunpack.c.h.b16 %v111
  %v403 = vunpack.c.l.b16 %v112
  %v404 = vunpack.c.h.b16 %v112
  %v405 = vunpack.c.l.b16 %v113
  %v406 = vunpack.c.h.b16 %v113
  %v407 = vunpack.c.l.b16 %v114
  %v408 = vunpack.c.h.b16 %v114
  %v409 = vunpack.c.l.b16 %v115
  %v410 = vunpack.c.h.b16 %v115
  %v411 = vunpack.c.l.b16 %v116
  %v412 = vunpack.c.h.b16 %v116
  %v413 = vunpack.c.l.b16 %v117
  %v414 = vunpack.c.h.b16 %v117
  %v415 = vunpack.c.l.b16 %v118
  %v416 = vunpack.c.h.b16 %v118
  %v417 = vunpack.c.l.b16 %v119
  %v418 = vunpack.c.h.b16 %v119
  %v419 = vunpack.c.l.b16 %v120
  %v420 = vunpack.c.h.b16 %v120
  %v421 = vunpack.c.l.b16 %v121
  %v422 = vunpack.c.h.b16 %v121
  %v423 = vunpack.c.l.b16 %v122
  %v424 = vunpack.c.h.b16 %v122
  %v425 = vunpack.c.l.b16 %v123
  %v426 = vunpack.c.h.b16 %v123
  %v427 = vunpack.c.l.b16 %v124
  %v428 = vunpack.c.h.b16 %v124
  %v429 = vunpack.c.l.b16 %v125
  %v430 = vunpack.c.h.b16 %v125
  %v431 = vunpack.c.l.b16 %v126
  %v432 = vunpack.c.h.b16 %v126
  %v433 = vunpack.c.l.b16 %v127
  %v434 = vunpack.c.h.b16 %v127
  %v435 = vunpack.c.l.b16 %v128
  %v436 = vunpack.c.h.b16 %v128
  %v437 = vunpack.c.l.b16 %v129
  %v438 = vunpack.c.h.b16 %v129
  %v439 = vunpack.c.l.b16 %v130
  %v440 = vunpack.c.h.b16 %v130
  %v441 = vunpack.c.l.b16 %v131
  %v442 = vunpack.c.h.b16 %v131
  %v443 = vunpack.c.l.b16 %v132
  %v444 = vunpack.c.h.b16 %v132
  %v445 = vunpack.c.l.b16 %v133
  %v446 = vunpack.c.h.b16 %v133
  %v447 = vunpack.c.l.b16 %v134
  %v448 = vunpack.c.h.b16 %v134
  %v449 = vunpack.c.l.b16 %v135
  %v450 = vunpack.c.h.b16 %v135
  %v451 = vunpack.c.l.b16 %v136
  %v452 = vunpack.c.h.b16 %v136
  %v453 = vunpack.c.l.b16 %v137
  %v454 = vunpack.c.h.b16 %v137
  %v455 = vunpack.c.l.b16 %v138
  %v456 = vunpack.c.h.b16 %v138
  %v457 = vunpack.c.l.b16 %v139
  %v458 = vunpack.c.h.b16 %v139
  %v459 = vunpack.c.l.b16 %v140
  %v460 = vunpack.c.h.b16 %v140
  %v461 = vunpack.c.l.b16 %v141
  %v462 = vunpack.c.h.b16 %v141
  %v463 = vunpack.c.l.b16 %v142
  %v464 = vunpack.c.h.b16 %v142
  %v465 = vunpack.c.l.b16 %v143
  %v466 = vunpack.c.h.b16 %v143
  %v467 = vunpack.c.l.b16 %v144
  %v468 = vunpack.c.h.b16 %v144
  %v469 = vpack.c.b16 %v271, %v269
  %v470 = vpack.c.b16 %v272, %v270
  %v471 = vpack.c.b16 %v275, %v273
  %v472 = vpack.c.b16 %v276, %v274
  %v473 = vpack.c.b16 %v279, %v277
  %v474 = vpack.c.b16 %v280, %v278
  %v475 = vpack.c.b16 %v283, %v281
  %v476 = vpack.c.b16 %v284, %v282
  %v477 = vpack.c.b16 %v287, %v285
  %v478 = vpack.c.b16 %v288, %v286
  %v479 = vpack.c.b16 %v291, %v289
  %v480 = vpack.c.b16 %v292, %v290
  %v481 = vpack.c.b16 %v295, %v293
  %v482 = vpack.c.b16 %v296, %v294
  %v483 = vpack.c.b16 %v299, %v297
  %v484 = vpack.c.b16 %v300, %v298
  %v485 = vpack.c.b16 %v303, %v301
  %v486 = vpack.c.b16 %v304, %v302
  %v487 = vpack.c.b16 %v307, %v305
  %v488 = vpack.c.b16 %v308, %v306
  %v489 = vpack.c.b16 %v311, %v309
  %v490 = vpack.c.b16 %v312, %v310
  %v491 = vpack.c.b16 %v315, %v313
  %v492 = vpack.c.b16 %v316, %v314
  %v493 = vpack.c.b16 %v319, %v317
  %v494 = vpack.c.b16 %v320, %v318
  %v495 = vpack.c.b16 %v323, %v321
  %v496 = vpack.c.b16 %v324, %v322
  %v497 = vpack.c.b16 %v327, %v325
  %v498 = vpack.c.b16 %v328, %v326
  %v499 = vpack.c.b16 %v331, %v329
  %v500 = vpack.c.b16 %v332, %v330
  %v501 = vpack.c.b16 %v335, %v333
  %v502 = vpack.c.b16 %v336, %v334
  %v503 = vpack.c.b16 %v339, %v337
  %v504 = vpack.c.b16 %v340, %v338
  %v505 = vpack.c.b16 %v343, %v341
  %v506 = vpack.c.b16 %v344, %v342
  %v507 = vpack.c.b16 %v347, %v345
  %v508 = vpack.c.b16 %v348, %v346
  %v509 = vpack.c.b16 %v351, %v349
  %v510 = vpack.c.b16 %v352, %v350
  %v511 = vpack.c.b16 %v355, %v353
  %v512 = vpack.c.b16 %v356, %v354
  %v513 = vpack.c.b16 %v359, %v357
  %v514 = vpack.c.b16 %v360, %v358
  %v515 = vpack.c.b16 %v363, %v361
  %v516 = vpack.c.b16 %v364, %v362
  %v517 = vpack.c.b16 %v367, %v365
  %v518 = vpack.c.b16 %v368, %v366
  %v519 = vpack.c.b16 %v371, %v369
  %v520 = vpack.c.b16 %v372, %v370
  %v521 = vpack.c.b16 %v375, %v373
  %v522 = vpack.c.b16 %v376, %v374
  %v523 = vpack.c.b16 %v379, %v377
  %v524 = vpack.c.b16 %v380, %v378
  %v525 = vpack.c.b16 %v383, %v381
  %v526 = vpack.c.b16 %v384, %v382
  %v527 = vpack.c.b16 %v387, %v385
  %v528 = vpack.c.b16 %v388, %v386
  %v529 = vpack.c.b16 %v391, %v389
  %v530 = vpack.c.b16 %v392, %v390
  %v531 = vpack.c.b16 %v395, %v393
  %v532 = vpack.c.b16 %v396, %v394
  %v533 = vpack.c.b16 %v399, %v397
  %v534 = vpack.c.b16 %v400, %v398
  %v535 = vpack.c.b16 %v403, %v401
  %v536 = vpack.c.b16 %v404, %v402
  %v537 = vpack.c.b16 %v407, %v405
  %v538 = vpack.c.b16 %v408, %v406
  %v539 = vpack.c.b16 %v411, %v409
  %v540 = vpack.c.b16 %v412, %v410
  %v541 = vpack.c.b16 %v415, %v413
  %v542 = vpack.c.b16 %v416, %v414
  %v543 = vpack.c.b16 %v419, %v417
  %v544 = vpack.c.b16 %v420, %v418
  %v545 = vpack.c.b16 %v423, %v421
  %v546 = vpack.c.b16 %v424, %v422
  %v547 = vpack.c.b16 %v427, %v425
  %v548 = vpack.c.b16 %v428, %v426
  %v549 = vpack.c.b16 %v431, %v429
  %v550 = vpack.c.b16 %v432, %v430
  %v551 = vpack.c.b16 %v435, %v433
  %v552 = vpack.c.b16 %v436, %v434
  %v553 = vpack.c.b16 %v439, %v437
  %v554 = vpack.c.b16 %v440, %v438
  %v555 = vpack.c.b16 %v443, %v441
  %v556 = vpack.c.b16 %v444, %v442
  %v557 = vpack.c.b16 %v447, %v445
  %v558 = vpack.c.b16 %v448, %v446
  %v559 = vpack.c.b16 %v451, %v449
  %v560 = vpack.c.b16 %v452, %v450
  %v561 = vpack.c.b16 %v455, %v453
  %v562 = vpack.c.b16 %v456, %v454
  %v563 = vpack.c.b16 %v459, %v457
  %v564 = vpack.c.b16 %v460, %v458
  %v565 = vpack.c.b16 %v463, %v461
  %v566 = vpack.c.b16 %v464, %v462
  %v567 = vpack.c.b16 %v467, %v465
  %v568 = vpack.c.b16 %v468, %v466
  %vm669 = vcmask 261120
  %v671 = vsel %vm669, %v162, 0
  %673 = vmatprep.subr.bf16.mxu0 %v470
  %674 = vmatpush1.bf16.msra.mxu0 %v469
  %675 = vmatprep.subr.bf16.mxu0 %v472
  %676 = vmatpush1.bf16.msra.mxu0 %v471
  %677 = vmatprep.subr.bf16.mxu0 %v474
  %678 = vmatpush1.bf16.msra.mxu0 %v473
  %679 = vmatprep.subr.bf16.mxu0 %v476
  %680 = vmatpush1.bf16.msra.mxu0 %v475
  %681 = vmatprep.subr.bf16.mxu0 %v478
  %682 = vmatpush1.bf16.msra.mxu0 %v477
  %683 = vmatprep.subr.bf16.mxu0 %v480
  %684 = vmatpush1.bf16.msra.mxu0 %v479
  %685 = vmatprep.subr.bf16.mxu0 %v482
  %686 = vmatpush1.bf16.msra.mxu0 %v481
  %687 = vmatprep.subr.bf16.mxu0 %v484
  %688 = vmatpush1.bf16.msra.mxu0 %v483
  %689 = vmatprep.subr.bf16.mxu0 %v486
  %690 = vmatpush1.bf16.msra.mxu0 %v485
  %691 = vmatprep.subr.bf16.mxu0 %v488
  %692 = vmatpush1.bf16.msra.mxu0 %v487
  %693 = vmatprep.subr.bf16.mxu0 %v490
  %694 = vmatpush1.bf16.msra.mxu0 %v489
  %695 = vmatprep.subr.bf16.mxu0 %v492
  %696 = vmatpush1.bf16.msra.mxu0 %v491
  %697 = vmatprep.subr.bf16.mxu0 %v494
  %698 = vmatpush1.bf16.msra.mxu0 %v493
  %699 = vmatprep.subr.bf16.mxu0 %v496
  %700 = vmatpush1.bf16.msra.mxu0 %v495
  %701 = vmatprep.subr.bf16.mxu0 %v498
  %702 = vmatpush1.bf16.msra.mxu0 %v497
  %703 = vmatprep.subr.bf16.mxu0 %v500
  %704 = vmatpush1.bf16.msra.mxu0 %v499
  %705 = vmatprep.mubr.bf16.mxu0 %v157
  %706 = vmatmul.mubr.bf16.gmra.mrb[0].mxu0 %v156
  %v707 = vpop.f32.mrb[0].mxu0
  %v708 = vadd.f32 0.0, %v707
  %v709 = vpop.f32.mrb[0].mxu0
  %v710 = vadd.f32 0.0, %v709
  %v711 = vpop.f32.mrb[0].mxu0
  %v712 = vpop.f32.mrb[0].mxu0
  %713 = vdwg.mxu0
  %714 = vmatprep.subr.bf16.mxu0 %v502
  %715 = vmatpush1.bf16.msra.mxu0 %v501
  %716 = vmatprep.subr.bf16.mxu0 %v504
  %717 = vmatpush1.bf16.msra.mxu0 %v503
  %718 = vmatprep.subr.bf16.mxu0 %v506
  %719 = vmatpush1.bf16.msra.mxu0 %v505
  %720 = vmatprep.subr.bf16.mxu0 %v508
  %721 = vmatpush1.bf16.msra.mxu0 %v507
  %722 = vmatprep.subr.bf16.mxu0 %v510
  %723 = vmatpush1.bf16.msra.mxu0 %v509
  %724 = vmatprep.subr.bf16.mxu0 %v512
  %725 = vmatpush1.bf16.msra.mxu0 %v511
  %726 = vmatprep.subr.bf16.mxu0 %v514
  %727 = vmatpush1.bf16.msra.mxu0 %v513
  %728 = vmatprep.subr.bf16.mxu0 %v516
  %729 = vmatpush1.bf16.msra.mxu0 %v515
  %730 = vmatprep.subr.bf16.mxu0 %v518
  %731 = vmatpush1.bf16.msra.mxu0 %v517
  %732 = vmatprep.subr.bf16.mxu0 %v520
  %733 = vmatpush1.bf16.msra.mxu0 %v519
  %734 = vmatprep.subr.bf16.mxu0 %v522
  %735 = vmatpush1.bf16.msra.mxu0 %v521
  %736 = vmatprep.subr.bf16.mxu0 %v524
  %737 = vmatpush1.bf16.msra.mxu0 %v523
  %738 = vmatprep.subr.bf16.mxu0 %v526
  %739 = vmatpush1.bf16.msra.mxu0 %v525
  %740 = vmatprep.subr.bf16.mxu0 %v528
  %741 = vmatpush1.bf16.msra.mxu0 %v527
  %742 = vmatprep.subr.bf16.mxu0 %v530
  %743 = vmatpush1.bf16.msra.mxu0 %v529
  %744 = vmatprep.subr.bf16.mxu0 %v532
  %745 = vmatpush1.bf16.msra.mxu0 %v531
  %746 = vmatprep.mubr.bf16.mxu0 %v159
  %747 = vmatmul.mubr.bf16.gmra.mrb[0].mxu0 %v158
  %v748 = vpop.f32.mrb[0].mxu0
  %v749 = vadd.f32 %v708, %v748
  %v750 = vpop.f32.mrb[0].mxu0
  %v751 = vadd.f32 %v710, %v750
  %v752 = vpop.f32.mrb[0].mxu0
  %v753 = vpop.f32.mrb[0].mxu0
  %754 = vdwg.mxu0
  %755 = vmatprep.subr.bf16.mxu0 %v534
  %756 = vmatpush1.bf16.msra.mxu0 %v533
  %757 = vmatprep.subr.bf16.mxu0 %v536
  %758 = vmatpush1.bf16.msra.mxu0 %v535
  %759 = vmatprep.subr.bf16.mxu0 %v538
  %760 = vmatpush1.bf16.msra.mxu0 %v537
  %761 = vmatprep.subr.bf16.mxu0 %v540
  %762 = vmatpush1.bf16.msra.mxu0 %v539
  %763 = vmatprep.subr.bf16.mxu0 %v542
  %764 = vmatpush1.bf16.msra.mxu0 %v541
  %765 = vmatprep.subr.bf16.mxu0 %v544
  %766 = vmatpush1.bf16.msra.mxu0 %v543
  %767 = vmatprep.subr.bf16.mxu0 %v546
  %768 = vmatpush1.bf16.msra.mxu0 %v545
  %769 = vmatprep.subr.bf16.mxu0 %v548
  %770 = vmatpush1.bf16.msra.mxu0 %v547
  %771 = vmatprep.subr.bf16.mxu0 %v550
  %772 = vmatpush1.bf16.msra.mxu0 %v549
  %773 = vmatprep.subr.bf16.mxu0 %v552
  %774 = vmatpush1.bf16.msra.mxu0 %v551
  %775 = vmatprep.subr.bf16.mxu0 %v554
  %776 = vmatpush1.bf16.msra.mxu0 %v553
  %777 = vmatprep.subr.bf16.mxu0 %v556
  %778 = vmatpush1.bf16.msra.mxu0 %v555
  %779 = vmatprep.subr.bf16.mxu0 %v558
  %780 = vmatpush1.bf16.msra.mxu0 %v557
  %781 = vmatprep.subr.bf16.mxu0 %v560
  %782 = vmatpush1.bf16.msra.mxu0 %v559
  %783 = vmatprep.subr.bf16.mxu0 %v562
  %784 = vmatpush1.bf16.msra.mxu0 %v561
  %785 = vmatprep.subr.bf16.mxu0 %v564
  %786 = vmatpush1.bf16.msra.mxu0 %v563
  %787 = vmatprep.mubr.bf16.mxu0 %v161
  %788 = vmatmul.mubr.bf16.gmra.mrb[0].mxu0 %v160
  %v789 = vpop.f32.mrb[0].mxu0
  %v790 = vadd.f32 %v749, %v789
  %v791 = vpop.f32.mrb[0].mxu0
  %v792 = vadd.f32 %v751, %v791
  %v793 = vpop.f32.mrb[0].mxu0
  %v794 = vpop.f32.mrb[0].mxu0
  %795 = vdwg.mxu0
  %796 = vmatprep.subr.bf16.mxu0 %v566
  %797 = vmatpush1.bf16.msra.mxu0 %v565
  %798 = vmatprep.subr.bf16.mxu0 %v568
  %799 = vmatpush1.bf16.msra.mxu0 %v567
  %800 = vmatprep.subr.bf16.mxu0 0
  %801 = vmatpush1.bf16.msra.mxu0 0
  %802 = vmatprep.subr.bf16.mxu0 0
  %803 = vmatpush1.bf16.msra.mxu0 0
  %804 = vmatprep.subr.bf16.mxu0 0
  %805 = vmatpush1.bf16.msra.mxu0 0
  %806 = vmatprep.subr.bf16.mxu0 0
  %807 = vmatpush1.bf16.msra.mxu0 0
  %808 = vmatprep.subr.bf16.mxu0 0
  %809 = vmatpush1.bf16.msra.mxu0 0
  %810 = vmatprep.subr.bf16.mxu0 0
  %811 = vmatpush1.bf16.msra.mxu0 0
  %812 = vmatprep.subr.bf16.mxu0 0
  %813 = vmatpush1.bf16.msra.mxu0 0
  %814 = vmatprep.subr.bf16.mxu0 0
  %815 = vmatpush1.bf16.msra.mxu0 0
  %816 = vmatprep.subr.bf16.mxu0 0
  %817 = vmatpush1.bf16.msra.mxu0 0
  %818 = vmatprep.subr.bf16.mxu0 0
  %819 = vmatpush1.bf16.msra.mxu0 0
  %820 = vmatprep.subr.bf16.mxu0 0
  %821 = vmatpush1.bf16.msra.mxu0 0
  %822 = vmatprep.subr.bf16.mxu0 0
  %823 = vmatpush1.bf16.msra.mxu0 0
  %824 = vmatprep.subr.bf16.mxu0 0
  %825 = vmatpush1.bf16.msra.mxu0 0
  %826 = vmatprep.subr.bf16.mxu0 0
  %827 = vmatpush1.bf16.msra.mxu0 0
  %828 = vmatprep.mubr.bf16.mxu0 0
  %829 = vmatmul.mubr.bf16.gmra.mrb[0].mxu0 %v671
  %v830 = vpop.f32.mrb[0].mxu0
  %v831 = vadd.f32 %v790, %v830
  %v832 = vpop.f32.mrb[0].mxu0
  %v833 = vadd.f32 %v792, %v832
  %v834 = vpop.f32.mrb[0].mxu0
  %v835 = vpop.f32.mrb[0].mxu0
  %836 = vdwg.mxu0
  %v837 = vld [vmem:[%s2] sm:$0x3]
  %v839 = vlaneseq
  %v840 = vshrl.u32 %v839, 7
  %v841 = vsub.s32 0, %v840
  %v842 = vrot.slane %v837, %v841
  %v843 = vlaneseq
  %v844 = vshrl.u32 %v843, 7
  %v845 = vsub.s32 1, %v844
  %v846 = vrot.slane %v837, %v845
  %v849 = vmul.f32 %v831, %v842
  %v850 = vmul.f32 %v833, %v846
  %v851 = vld [vmem:[%s3] sm:$0x3]
  %v853 = vlaneseq
  %v854 = vshrl.u32 %v853, 7
  %v855 = vsub.s32 0, %v854
  %v856 = vrot.slane %v851, %v855
  %v857 = vlaneseq
  %v858 = vshrl.u32 %v857, 7
  %v859 = vsub.s32 1, %v858
  %v860 = vrot.slane %v851, %v859
  %v863 = vadd.f32 %v849, %v856
  %v864 = vadd.f32 %v850, %v860
  %v865 = vmax.f32 %v863, 0.0
  %v866 = vmax.f32 %v864, 0.0
  %v867 = vpack.c.bf16 %v865, %v865
  %v868 = vpack.c.bf16 %v866, %v866
  %v869 = vld [vmem:[%s4] sm:$0xf]
  %v870 = vld [vmem:[%s4 + $0x4] sm:$0xf]
  %v871 = vld [vmem:[%s4 + $0x8] sm:$0xf]
  %v872 = vld [vmem:[%s4 + $0xc] sm:$0xf]
  %v873 = vld [vmem:[%s4 + $0x10] sm:$0xf]
  %v874 = vld [vmem:[%s4 + $0x14] sm:$0xf]
  %v875 = vld [vmem:[%s4 + $0x18] sm:$0xf]
  %v876 = vld [vmem:[%s4 + $0x1c] sm:$0xf]
  %v877 = vld [vmem:[%s4 + $0x20] sm:$0xf]
  %v878 = vld [vmem:[%s4 + $0x24] sm:$0xf]
  %v879 = vld [vmem:[%s4 + $0x28] sm:$0xf]
  %v880 = vld [vmem:[%s4 + $0x2c] sm:$0xf]
  %v881 = vld [vmem:[%s4 + $0x30] sm:$0xf]
  %v882 = vld [vmem:[%s4 + $0x34] sm:$0xf]
  %v883 = vld [vmem:[%s4 + $0x38] sm:$0xf]
  %v884 = vld [vmem:[%s4 + $0x3c] sm:$0xf]
  %v901 = vunpack.c.l.b16 %v869
  %v902 = vunpack.c.l.b16 %v870
  %v903 = vunpack.c.l.b16 %v871
  %v904 = vunpack.c.l.b16 %v872
  %v905 = vunpack.c.l.b16 %v873
  %v906 = vunpack.c.l.b16 %v874
  %v907 = vunpack.c.l.b16 %v875
  %v908 = vunpack.c.l.b16 %v876
  %v909 = vunpack.c.l.b16 %v877
  %v910 = vunpack.c.l.b16 %v878
  %v911 = vunpack.c.l.b16 %v879
  %v912 = vunpack.c.l.b16 %v880
  %v913 = vunpack.c.l.b16 %v881
  %v914 = vunpack.c.l.b16 %v882
  %v915 = vunpack.c.l.b16 %v883
  %v916 = vunpack.c.l.b16 %v884
  %v917 = vpack.c.b16 %v902, %v901
  %v918 = vpack.c.b16 %v904, %v903
  %v919 = vpack.c.b16 %v906, %v905
  %v920 = vpack.c.b16 %v908, %v907
  %v921 = vpack.c.b16 %v910, %v909
  %v922 = vpack.c.b16 %v912, %v911
  %v923 = vpack.c.b16 %v914, %v913
  %v924 = vpack.c.b16 %v916, %v915
  %933 = vmatprep.subr.bf16.mxu0 0
  %934 = vmatpush1.bf16.msra.mxu0 %v917
  %935 = vmatprep.subr.bf16.mxu0 0
  %936 = vmatpush1.bf16.msra.mxu0 %v918
  %937 = vmatprep.subr.bf16.mxu0 0
  %938 = vmatpush1.bf16.msra.mxu0 %v919
  %939 = vmatprep.subr.bf16.mxu0 0
  %940 = vmatpush1.bf16.msra.mxu0 %v920
  %941 = vmatprep.subr.bf16.mxu0 0
  %942 = vmatpush1.bf16.msra.mxu0 %v921
  %943 = vmatprep.subr.bf16.mxu0 0
  %944 = vmatpush1.bf16.msra.mxu0 %v922
  %945 = vmatprep.subr.bf16.mxu0 0
  %946 = vmatpush1.bf16.msra.mxu0 %v923
  %947 = vmatprep.subr.bf16.mxu0 0
  %948 = vmatpush1.bf16.msra.mxu0 %v924
  %949 = vmatprep.subr.bf16.mxu0 0
  %950 = vmatpush1.bf16.msra.mxu0 0
  %951 = vmatprep.subr.bf16.mxu0 0
  %952 = vmatpush1.bf16.msra.mxu0 0
  %953 = vmatprep.subr.bf16.mxu0 0
  %954 = vmatpush1.bf16.msra.mxu0 0
  %955 = vmatprep.subr.bf16.mxu0 0
  %956 = vmatpush1.bf16.msra.mxu0 0
  %957 = vmatprep.subr.bf16.mxu0 0
  %958 = vmatpush1.bf16.msra.mxu0 0
  %959 = vmatprep.subr.bf16.mxu0 0
  %960 = vmatpush1.bf16.msra.mxu0 0
  %961 = vmatprep.subr.bf16.mxu0 0
  %962 = vmatpush1.bf16.msra.mxu0 0
  %963 = vmatprep.subr.bf16.mxu0 0
  %964 = vmatpush1.bf16.msra.mxu0 0
  %965 = vmatprep.mubr.bf16.mxu0 0
  %966 = vmatmul.mubr.bf16.gmra.mrb[0].mxu0 %v867
  %v967 = vpop.f32.mrb[0].mxu0
  %v968 = vadd.f32 0.0, %v967
  %v969 = vpop.f32.mrb[0].mxu0
  %v970 = vpop.f32.mrb[0].mxu0
  %v971 = vpop.f32.mrb[0].mxu0
  %972 = vdwg.mxu0
  %v973 = vld [vmem:[%s5] sm:$0x1]
  %v975 = vlaneseq
  %v976 = vshrl.u32 %v975, 7
  %v977 = vsub.s32 0, %v976
  %v978 = vrot.slane %v973, %v977
  %v980 = vmul.f32 %v968, %v978
  %v981 = vld [vmem:[%s6] sm:$0x1]
  %v983 = vlaneseq
  %v984 = vshrl.u32 %v983, 7
  %v985 = vsub.s32 0, %v984
  %v986 = vrot.slane %v981, %v985
  %v988 = vadd.f32 %v980, %v986
  %v989 = vmax.f32 %v988, 0.0
  %v990 = vpack.c.bf16 %v989, %v989
  %v991 = vld [vmem:[%s7] sm:$0xf]
  %v992 = vld [vmem:[%s7 + $0x4] sm:$0xf]
  %v993 = vld [vmem:[%s7 + $0x8] sm:$0xf]
  %v994 = vld [vmem:[%s7 + $0xc] sm:$0xf]
  %v995 = vld [vmem:[%s7 + $0x10] sm:$0xf]
  %v996 = vld [vmem:[%s7 + $0x14] sm:$0xf]
  %v997 = vld [vmem:[%s7 + $0x18] sm:$0xf]
  %v998 = vld [vmem:[%s7 + $0x1c] sm:$0xf]
  %v999 = vld [vmem:[%s7 + $0x20] sm:$0xf]
  %v1000 = vld [vmem:[%s7 + $0x24] sm:$0xf]
  %v1001 = vld [vmem:[%s7 + $0x28] sm:$0xf]
  %v1002 = vld [vmem:[%s7 + $0x2c] sm:$0xf]
  %v1003 = vld [vmem:[%s7 + $0x30] sm:$0xf]
  %v1004 = vld [vmem:[%s7 + $0x34] sm:$0xf]
  %v1005 = vld [vmem:[%s7 + $0x38] sm:$0xf]
  %v1006 = vld [vmem:[%s7 + $0x3c] sm:$0xf]
  %v1007 = vld [vmem:[%s8] sm:$0x1]
  %v1009 = vlaneseq
  %v1010 = vshrl.u32 %v1009, 7
  %v1011 = vsub.s32 0, %v1010
  %v1012 = vrot.slane %v1007, %v1011
  %v1030 = vunpack.c.l.b16 %v991
  %v1031 = vunpack.c.l.b16 %v992
  %v1032 = vunpack.c.l.b16 %v993
  %v1033 = vunpack.c.l.b16 %v994
  %v1034 = vunpack.c.l.b16 %v995
  %v1035 = vunpack.c.l.b16 %v996
  %v1036 = vunpack.c.l.b16 %v997
  %v1037 = vunpack.c.l.b16 %v998
  %v1038 = vunpack.c.l.b16 %v999
  %v1039 = vunpack.c.l.b16 %v1000
  %v1040 = vunpack.c.l.b16 %v1001
  %v1041 = vunpack.c.l.b16 %v1002
  %v1042 = vunpack.c.l.b16 %v1003
  %v1043 = vunpack.c.l.b16 %v1004
  %v1044 = vunpack.c.l.b16 %v1005
  %v1045 = vunpack.c.l.b16 %v1006
  %v1046 = vpack.c.b16 %v1031, %v1030
  %v1047 = vpack.c.b16 %v1033, %v1032
  %v1048 = vpack.c.b16 %v1035, %v1034
  %v1049 = vpack.c.b16 %v1037, %v1036
  %v1050 = vpack.c.b16 %v1039, %v1038
  %v1051 = vpack.c.b16 %v1041, %v1040
  %v1052 = vpack.c.b16 %v1043, %v1042
  %v1053 = vpack.c.b16 %v1045, %v1044
  %1062 = vmatprep.subr.bf16.mxu0 0
  %1063 = vmatpush1.bf16.msra.mxu0 %v1046
  %1064 = vmatprep.subr.bf16.mxu0 0
  %1065 = vmatpush1.bf16.msra.mxu0 %v1047
  %1066 = vmatprep.subr.bf16.mxu0 0
  %1067 = vmatpush1.bf16.msra.mxu0 %v1048
  %1068 = vmatprep.subr.bf16.mxu0 0
  %1069 = vmatpush1.bf16.msra.mxu0 %v1049
  %1070 = vmatprep.subr.bf16.mxu0 0
  %1071 = vmatpush1.bf16.msra.mxu0 %v1050
  %1072 = vmatprep.subr.bf16.mxu0 0
  %1073 = vmatpush1.bf16.msra.mxu0 %v1051
  %1074 = vmatprep.subr.bf16.mxu0 0
  %1075 = vmatpush1.bf16.msra.mxu0 %v1052
  %1076 = vmatprep.subr.bf16.mxu0 0
  %1077 = vmatpush1.bf16.msra.mxu0 %v1053
  %1078 = vmatprep.subr.bf16.mxu0 0
  %1079 = vmatpush1.bf16.msra.mxu0 0
  %1080 = vmatprep.subr.bf16.mxu0 0
  %1081 = vmatpush1.bf16.msra.mxu0 0
  %1082 = vmatprep.subr.bf16.mxu0 0
  %1083 = vmatpush1.bf16.msra.mxu0 0
  %1084 = vmatprep.subr.bf16.mxu0 0
  %1085 = vmatpush1.bf16.msra.mxu0 0
  %1086 = vmatprep.subr.bf16.mxu0 0
  %1087 = vmatpush1.bf16.msra.mxu0 0
  %1088 = vmatprep.subr.bf16.mxu0 0
  %1089 = vmatpush1.bf16.msra.mxu0 0
  %1090 = vmatprep.subr.bf16.mxu0 0
  %1091 = vmatpush1.bf16.msra.mxu0 0
  %1092 = vmatprep.subr.bf16.mxu0 0
  %1093 = vmatpush1.bf16.msra.mxu0 0
  %1094 = vmatprep.mubr.bf16.mxu0 0
  %1095 = vmatmul.mubr.bf16.gmra.mrb[0].mxu0 %v990
  %v1096 = vpop.f32.mrb[0].mxu0
  %v1097 = vadd.f32 %v1012, %v1096
  %v1098 = vpop.f32.mrb[0].mxu0
  %v1099 = vpop.f32.mrb[0].mxu0
  %v1100 = vpop.f32.mrb[0].mxu0
  %1101 = vdwg.mxu0
  %v1102 = vld [vmem:[%s9] sm:$0xf]
  %v1103 = vld [vmem:[%s9 + $0x4] sm:$0xf]
  %v1104 = vld [vmem:[%s9 + $0x8] sm:$0xf]
  %v1105 = vld [vmem:[%s9 + $0xc] sm:$0xf]
  %v1106 = vld [vmem:[%s9 + $0x10] sm:$0xf]
  %v1107 = vld [vmem:[%s9 + $0x14] sm:$0xf]
  %v1108 = vld [vmem:[%s9 + $0x18] sm:$0xf]
  %v1109 = vld [vmem:[%s9 + $0x1c] sm:$0xf]
  %v1110 = vld [vmem:[%s9 + $0x20] sm:$0xf]
  %v1111 = vld [vmem:[%s9 + $0x24] sm:$0xf]
  %v1112 = vld [vmem:[%s9 + $0x28] sm:$0xf]
  %v1113 = vld [vmem:[%s9 + $0x2c] sm:$0xf]
  %v1114 = vld [vmem:[%s9 + $0x30] sm:$0xf]
  %v1115 = vld [vmem:[%s9 + $0x34] sm:$0xf]
  %v1116 = vld [vmem:[%s9 + $0x38] sm:$0xf]
  %v1117 = vld [vmem:[%s9 + $0x3c] sm:$0xf]
  %v1118 = vld [vmem:[%s10] sm:$0x1]
  %v1120 = vlaneseq
  %v1121 = vshrl.u32 %v1120, 7
  %v1122 = vsub.s32 0, %v1121
  %v1123 = vrot.slane %v1118, %v1122
  %v1141 = vunpack.c.l.b16 %v1102
  %v1142 = vunpack.c.l.b16 %v1103
  %v1143 = vunpack.c.l.b16 %v1104
  %v1144 = vunpack.c.l.b16 %v1105
  %v1145 = vunpack.c.l.b16 %v1106
  %v1146 = vunpack.c.l.b16 %v1107
  %v1147 = vunpack.c.l.b16 %v1108
  %v1148 = vunpack.c.l.b16 %v1109
  %v1149 = vunpack.c.l.b16 %v1110
  %v1150 = vunpack.c.l.b16 %v1111
  %v1151 = vunpack.c.l.b16 %v1112
  %v1152 = vunpack.c.l.b16 %v1113
  %v1153 = vunpack.c.l.b16 %v1114
  %v1154 = vunpack.c.l.b16 %v1115
  %v1155 = vunpack.c.l.b16 %v1116
  %v1156 = vunpack.c.l.b16 %v1117
  %v1157 = vpack.c.b16 %v1142, %v1141
  %v1158 = vpack.c.b16 %v1144, %v1143
  %v1159 = vpack.c.b16 %v1146, %v1145
  %v1160 = vpack.c.b16 %v1148, %v1147
  %v1161 = vpack.c.b16 %v1150, %v1149
  %v1162 = vpack.c.b16 %v1152, %v1151
  %v1163 = vpack.c.b16 %v1154, %v1153
  %v1164 = vpack.c.b16 %v1156, %v1155
  %1173 = vmatprep.subr.bf16.mxu0 0
  %1174 = vmatpush1.bf16.msra.mxu0 %v1157
  %1175 = vmatprep.subr.bf16.mxu0 0
  %1176 = vmatpush1.bf16.msra.mxu0 %v1158
  %1177 = vmatprep.subr.bf16.mxu0 0
  %1178 = vmatpush1.bf16.msra.mxu0 %v1159
  %1179 = vmatprep.subr.bf16.mxu0 0
  %1180 = vmatpush1.bf16.msra.mxu0 %v1160
  %1181 = vmatprep.subr.bf16.mxu0 0
  %1182 = vmatpush1.bf16.msra.mxu0 %v1161
  %1183 = vmatprep.subr.bf16.mxu0 0
  %1184 = vmatpush1.bf16.msra.mxu0 %v1162
  %1185 = vmatprep.subr.bf16.mxu0 0
  %1186 = vmatpush1.bf16.msra.mxu0 %v1163
  %1187 = vmatprep.subr.bf16.mxu0 0
  %1188 = vmatpush1.bf16.msra.mxu0 %v1164
  %1189 = vmatprep.subr.bf16.mxu0 0
  %1190 = vmatpush1.bf16.msra.mxu0 0
  %1191 = vmatprep.subr.bf16.mxu0 0
  %1192 = vmatpush1.bf16.msra.mxu0 0
  %1193 = vmatprep.subr.bf16.mxu0 0
  %1194 = vmatpush1.bf16.msra.mxu0 0
  %1195 = vmatprep.subr.bf16.mxu0 0
  %1196 = vmatpush1.bf16.msra.mxu0 0
  %1197 = vmatprep.subr.bf16.mxu0 0
  %1198 = vmatpush1.bf16.msra.mxu0 0
  %1199 = vmatprep.subr.bf16.mxu0 0
  %1200 = vmatpush1.bf16.msra.mxu0 0
  %1201 = vmatprep.subr.bf16.mxu0 0
  %1202 = vmatpush1.bf16.msra.mxu0 0
  %1203 = vmatprep.subr.bf16.mxu0 0
  %1204 = vmatpush1.bf16.msra.mxu0 0
  %1205 = vmatprep.mubr.bf16.mxu0 0
  %1206 = vmatmul.mubr.bf16.gmra.mrb[0].mxu0 %v868
  %v1207 = vpop.f32.mrb[0].mxu0
  %v1208 = vadd.f32 %v1123, %v1207
  %v1209 = vpop.f32.mrb[0].mxu0
  %v1210 = vpop.f32.mrb[0].mxu0
  %v1211 = vpop.f32.mrb[0].mxu0
  %1212 = vdwg.mxu0
  %vm1213 = vcmask 80896
  %v1214 = vsel %vm1213, %v1097, -inf
  %1215 = vmax.xlane.f32.xlu0 %v1214
  %v1216 = vpop.xlane.xlu0 %1215
  %v1217 = vsub.f32 %v1097, %v1216
  %v1218 = vmul.f32 %v1217, 1.442695
  %v1219 = vpow.pop %v1218
  %v1220 = vsel %vm1213, %v1219, 0.0
  %1221 = vadd.xlane.f32.xlu0 %v1220
  %v1222 = vpop.xlane.xlu0 %1221
  %v1223 = vlog2.pop %v1222
  %v1224 = vmul.f32 %v1223, 0.6931472
  %v1225 = vsub.f32 %v1217, %v1224
  %1226 = vst.msk [vmem:[%s11] sm:$0xff] %vm1213, %v1225
  %vm1227 = vcmask 15360
  %v1228 = vsel %vm1227, %v1208, -inf
  %1229 = vmax.xlane.f32.xlu0 %v1228
  %v1230 = vpop.xlane.xlu0 %1229
  %v1231 = vsub.f32 %v1208, %v1230
  %v1232 = vmul.f32 %v1231, 1.442695
  %v1233 = vpow.pop %v1232
  %v1234 = vsel %vm1227, %v1233, 0.0
  %1235 = vadd.xlane.f32.xlu0 %v1234
  %v1236 = vpop.xlane.xlu0 %1235
  %v1237 = vlog2.pop %v1236
  %v1238 = vmul.f32 %v1237, 0.6931472
  %v1239 = vsub.f32 %v1231, %v1238
  %1240 = vst.msk [vmem:[%s12] sm:$0xff] %vm1227, %v1239
  // Predicated region
  $region46: #{dda_forward.9} parent=0 // pred_check
    _
  $region47: #{dda_forward.9} parent=0 // pred_check_branch
    %1242 = sbr.rel (0) target = $region49
  $region48: #{dda_forward.9} parent=0 // pred_region
    _
  $region49: #{dda_forward.9} parent=0 // pred_fallthru
    _
  // Predicated region
  $region50: #{dda_forward.9} parent=0 // pred_check
    _
  $region51: #{dda_forward.9} parent=0 // pred_check_branch
    %1244 = sbr.rel (0) target = $region53
  $region52: #{dda_forward.9} parent=0 // pred_region
    _
  $region53: #{dda_forward.9} parent=0 // pred_fallthru
    _
  // Predicated region
  $region54: #{dda_forward.9} parent=0 // pred_check
    _
  $region55: #{dda_forward.9} parent=0 // pred_check_branch
    %1246 = sbr.rel (0) target = $region57
  $region56: #{dda_forward.9} parent=0 // pred_region
    _
  $region57: #{dda_forward.9} parent=0 // pred_fallthru
    _
  // Predicated region
  $region58: #{dda_forward.9} parent=0 // pred_check
    _
  $region59: #{dda_forward.9} parent=0 // pred_check_branch
    %1248 = sbr.rel (0) target = $region61
  $region60: #{dda_forward.9} parent=0 // pred_region
    _
  $region61: #{dda_forward.9} parent=0 // pred_fallthru
    _

</llo_original>
